<compile_context>
chip_gen: v5e
topology: v5e:2x2
jax: 0.10.0
libtpu: 0.0.40
codegen_flags: <defaults>
</compile_context>

<pallas_src>
import jax
import jax.numpy as jnp
from jax import lax
from jax.experimental import pallas as pl
from jax.experimental.pallas import tpu as pltpu

# Static problem configuration.
B = 2          # batch
N = 16         # node_num
DIM_IN = 4     # input feature dim
HID = 32       # dim_out / hidden_dim
CHEB_K = 3     # Chebyshev order
EMB = 8        # embed_dim
CIN = DIM_IN + HID   # graph-conv input channels ([x | state])
BN = B * N
PAD = 128            # every per-d output block is padded to a full 128-lane tile
XPAD = 8             # x-channel count padded to a full sublane tile


def _agcrn_cell_kernel(x_ref, h_ref, s_ref, ebc_ref,
                       wgx_ref, wgh_ref, wux_ref, wuh_ref,
                       bg_ref, bu_ref, out_ref):
    f32 = jnp.float32
    x = x_ref[...]          # (BN, XPAD)          [x | zero-pad]
    h = h_ref[...]          # (BN, HID)           state
    S = s_ref[...]          # ((K-1)*BN, BN)      block-diag Chebyshev supports, k>=1
    ebc = ebc_ref[...]      # (BN, EMB*PAD)       E[n,d] broadcast over each 128-lane block

    # Apply the (non-identity) supports to the x-part and state-part.  Batch
    # stays b-major on sublanes; k blocks are stacked on sublanes (offsets are
    # multiples of BN=32, i.e. sublane-aligned) — no lane stitching anywhere.
    sx = jnp.dot(S, x, preferred_element_type=f32)      # ((K-1)*BN, XPAD)
    sh = jnp.dot(S, h, preferred_element_type=f32)      # ((K-1)*BN, HID)

    def gconv(x_parts, h_parts, wx_ref, wh_ref, bias):
        # G[(b,n), d*PAD+o] = sum_k sum_i xg_k[(b,n),i] * w_pool[d,k,i,o]
        # (weight slabs are channel-split and 128-lane padded in the wrapper)
        G = jnp.dot(x_parts[0], wx_ref[0], preferred_element_type=f32)
        G = G + jnp.dot(h_parts[0], wh_ref[0], preferred_element_type=f32)
        for k in range(1, CHEB_K):
            G = G + jnp.dot(x_parts[k], wx_ref[k], preferred_element_type=f32)
            G = G + jnp.dot(h_parts[k], wh_ref[k], preferred_element_type=f32)
        # node-adaptive contraction over d: aligned 128-lane blocks, pure VPU.
        P = ebc * G                                     # (BN, EMB*PAD)
        acc = bias + P[:, 0:PAD]
        for d in range(1, EMB):
            acc = acc + P[:, d * PAD:(d + 1) * PAD]
        return acc                                      # (BN, PAD); lanes >= c_out are 0

    # ---- gate gconv: input = [x | state] (never materialized; weights split) ----
    x_parts = [x] + [sx[(k - 1) * BN:k * BN, :] for k in range(1, CHEB_K)]
    h_parts = [h] + [sh[(k - 1) * BN:k * BN, :] for k in range(1, CHEB_K)]
    zr = jax.nn.sigmoid(gconv(x_parts, h_parts, wgx_ref, wgh_ref, bg_ref[...]))
    z = zr[:, :HID]                  # (BN, HID)
    r = zr[:, HID:2 * HID]           # (BN, HID)

    # ---- candidate gconv: input = [x | z*state]; x-part supports reused ----
    c = z * h                                            # (BN, HID)
    sc = jnp.dot(S, c, preferred_element_type=f32)       # ((K-1)*BN, HID)
    c_parts = [c] + [sc[(k - 1) * BN:k * BN, :] for k in range(1, CHEB_K)]
    hc = jnp.tanh(gconv(x_parts, c_parts, wux_ref, wuh_ref, bu_ref[...]))

    # ---- GRU blend, single full-block store ----
    out_ref[...] = r * h + (1.0 - r) * hc[:, :HID]


def prepare_agcrn_params(node_embeddings, wg, bg, wu, bu):
    """Hoist every node_embeddings-/parameter-only computation out of the kernel.

    Runs once (outside any scan); everything returned is static w.r.t. x/state.
    """
    E = node_embeddings.astype(jnp.float32)

    # Adaptive adjacency + Chebyshev supports (exact softmax).
    A = jax.nn.softmax(jax.nn.relu(E @ E.T), axis=1)
    sup = [jnp.eye(N, dtype=jnp.float32), A]
    for _ in range(2, CHEB_K):
        sup.append((2.0 * A) @ sup[-1] - sup[-2])
    # Non-identity supports as batch-block-diagonal operators, stacked over k.
    eye_b = jnp.eye(B, dtype=jnp.float32)
    s_blk = jnp.concatenate([jnp.kron(eye_b, s) for s in sup[1:]], axis=0)  # ((K-1)*BN, BN)

    def slabs(w_pool, c_out):
        # w_pool: (EMB, K, CIN, c_out)
        # -> per-k, channel-split, 128-lane padded slabs:
        #    wx[k][i, d*PAD+o] = w_pool[d, k, i, o]          (x channels, i < DIM_IN)
        #    wh[k][i, d*PAD+o] = w_pool[d, k, DIM_IN+i, o]   (state channels)
        w = jnp.transpose(w_pool, (1, 2, 0, 3))                      # (K, CIN, EMB, c_out)
        w = jnp.pad(w, ((0, 0), (0, 0), (0, 0), (0, PAD - c_out)))   # pad o -> 128 lanes
        w = w.reshape(CHEB_K, CIN, EMB * PAD)
        wx = jnp.pad(w[:, :DIM_IN, :], ((0, 0), (0, XPAD - DIM_IN), (0, 0)))
        wh = w[:, DIM_IN:, :]
        return wx, wh                         # (K, XPAD, EMB*PAD), (K, HID, EMB*PAD)

    wgx, wgh = slabs(wg, 2 * HID)
    wux, wuh = slabs(wu, HID)

    # E broadcast over each per-d 128-lane block, replicated over batch rows.
    e_bc = jnp.broadcast_to(E[:, :, None], (N, EMB, PAD)).reshape(N, EMB * PAD)
    e_bc = jnp.tile(e_bc, (B, 1))                                    # (BN, EMB*PAD)

    # Node-adaptive biases, replicated over batch and padded to 128 lanes.
    bias_g = jnp.tile(jnp.pad(E @ bg, ((0, 0), (0, PAD - 2 * HID))), (B, 1))  # (BN, PAD)
    bias_u = jnp.tile(jnp.pad(E @ bu, ((0, 0), (0, PAD - HID))), (B, 1))      # (BN, PAD)

    return (s_blk, e_bc, wgx, wgh, wux, wuh, bias_g, bias_u)


def agcrn_cell(x, state, prepped):
    s_blk, e_bc, wgx, wgh, wux, wuh, bias_g, bias_u = prepped
    # Runtime-input layout plumbing only: flatten batch onto sublanes, pad the
    # tiny x-channel dim to a full sublane tile.
    x2 = jnp.pad(x.reshape(BN, DIM_IN), ((0, 0), (0, XPAD - DIM_IN)))
    h2 = state.reshape(BN, HID)

    vmem = pl.BlockSpec(memory_space=pltpu.MemorySpace.VMEM)
    h_new = pl.pallas_call(
        _agcrn_cell_kernel,
        out_shape=jax.ShapeDtypeStruct((BN, HID), jnp.float32),
        in_specs=[vmem] * 10,
        out_specs=vmem,
    )(x2, h2, s_blk, e_bc, wgx, wgh, wux, wuh, bias_g, bias_u)
    return h_new.reshape(B, N, HID)


# ---- pure-JAX reference (mirrors the PyTorch module) ----
def agcrn_cell_ref(x, state, E, params):
    wg, bg, wu, bu = params
    hp = lax.Precision.HIGHEST

    def avwgcn(xi, wp, bp):
        a = jax.nn.softmax(jax.nn.relu(E @ E.T), axis=1)
        ss = [jnp.eye(N, dtype=jnp.float32), a]
        for _ in range(2, CHEB_K):
            ss.append((2.0 * a) @ ss[-1] - ss[-2])
        sup = jnp.stack(ss, axis=0)
        w = jnp.einsum('nd,dkio->nkio', E, wp, precision=hp)
        b = E @ bp
        xg = jnp.einsum('knm,bmc->bknc', sup, xi, precision=hp).transpose(0, 2, 1, 3)
        return jnp.einsum('bnki,nkio->bno', xg, w, precision=hp) + b

    ins = jnp.concatenate([x, state], axis=-1)
    zr = jax.nn.sigmoid(avwgcn(ins, wg, bg))
    z, r = zr[..., :HID], zr[..., HID:]
    cand = jnp.concatenate([x, z * state], axis=-1)
    hc = jnp.tanh(avwgcn(cand, wu, bu))
    return r * state + (1.0 - r) * hc


if __name__ == "__main__":
    key = jax.random.PRNGKey(0)
    ks = jax.random.split(key, 7)
    x = jax.random.normal(ks[0], (B, N, DIM_IN), dtype=jnp.float32)
    state = jax.random.normal(ks[1], (B, N, HID), dtype=jnp.float32)
    node_embeddings = jax.random.normal(ks[2], (N, EMB), dtype=jnp.float32)
    wg = 0.1 * jax.random.normal(ks[3], (EMB, CHEB_K, CIN, 2 * HID), dtype=jnp.float32)
    bg = 0.1 * jax.random.normal(ks[4], (EMB, 2 * HID), dtype=jnp.float32)
    wu = 0.1 * jax.random.normal(ks[5], (EMB, CHEB_K, CIN, HID), dtype=jnp.float32)
    bu = 0.1 * jax.random.normal(ks[6], (EMB, HID), dtype=jnp.float32)
    params = (wg, bg, wu, bu)

    prepped = prepare_agcrn_params(node_embeddings, wg, bg, wu, bu)
    h = agcrn_cell(x, state, prepped)
    h = jax.block_until_ready(h)

    h_ref = agcrn_cell_ref(x, state, node_embeddings, params)
    assert h.shape == (B, N, HID)
    err = float(jnp.max(jnp.abs(h - h_ref)))
    assert jnp.allclose(h, h_ref, rtol=2e-3, atol=2e-3), f"max abs err {err}"
    print("KERNEL_OK")
</pallas_src>

<mosaic_0001>
module attributes {stable_mosaic.version = 11 : i64} {
  func.func @_agcrn_cell_kernel(%arg0: memref<32x8xf32, #tpu.memory_space<vmem>>, %arg1: memref<32x32xf32, #tpu.memory_space<vmem>>, %arg2: memref<64x32xf32, #tpu.memory_space<vmem>>, %arg3: memref<32x1024xf32, #tpu.memory_space<vmem>>, %arg4: memref<3x8x1024xf32, #tpu.memory_space<vmem>>, %arg5: memref<3x32x1024xf32, #tpu.memory_space<vmem>>, %arg6: memref<3x8x1024xf32, #tpu.memory_space<vmem>>, %arg7: memref<3x32x1024xf32, #tpu.memory_space<vmem>>, %arg8: memref<32x128xf32, #tpu.memory_space<vmem>>, %arg9: memref<32x128xf32, #tpu.memory_space<vmem>>, %arg10: memref<32x32xf32, #tpu.memory_space<vmem>>) attributes {dimension_semantics = [], scalar_prefetch = 0 : i64, scratch_operands = 0 : i64, tpu.core_type = #tpu.core_type<tc>} {
    %c0 = arith.constant 0 : index
    %c0_0 = arith.constant 0 : index
    %0 = vector.load %arg0[%c0, %c0_0] : memref<32x8xf32, #tpu.memory_space<vmem>>, vector<32x8xf32>
    %c0_1 = arith.constant 0 : index
    %c0_2 = arith.constant 0 : index
    %1 = vector.load %arg1[%c0_1, %c0_2] : memref<32x32xf32, #tpu.memory_space<vmem>>, vector<32x32xf32>
    %c0_3 = arith.constant 0 : index
    %c0_4 = arith.constant 0 : index
    %2 = vector.load %arg2[%c0_3, %c0_4] : memref<64x32xf32, #tpu.memory_space<vmem>>, vector<64x32xf32>
    %c0_5 = arith.constant 0 : index
    %c0_6 = arith.constant 0 : index
    %3 = vector.load %arg3[%c0_5, %c0_6] : memref<32x1024xf32, #tpu.memory_space<vmem>>, vector<32x1024xf32>
    %cst = arith.constant dense<0.000000e+00> : vector<64x8xf32>
    %4 = tpu.matmul %2, %0, %cst {dimension_numbers = #tpu.dot_dimension_numbers<[1], [0], [0], [1], [0, 0, 1, 1], [], []>} : vector<64x32xf32>, vector<32x8xf32>, vector<64x8xf32> -> vector<64x8xf32>
    %cst_7 = arith.constant dense<0.000000e+00> : vector<64x32xf32>
    %5 = tpu.matmul %2, %1, %cst_7 {dimension_numbers = #tpu.dot_dimension_numbers<[1], [0], [0], [1], [0, 0, 1, 1], [], []>} : vector<64x32xf32>, vector<32x32xf32>, vector<64x32xf32> -> vector<64x32xf32>
    %6 = vector.extract_strided_slice %4 {offsets = [0, 0], sizes = [32, 8], strides = [1, 1]} : vector<64x8xf32> to vector<32x8xf32>
    %7 = vector.extract_strided_slice %4 {offsets = [32, 0], sizes = [32, 8], strides = [1, 1]} : vector<64x8xf32> to vector<32x8xf32>
    %8 = vector.extract_strided_slice %5 {offsets = [0, 0], sizes = [32, 32], strides = [1, 1]} : vector<64x32xf32> to vector<32x32xf32>
    %9 = vector.extract_strided_slice %5 {offsets = [32, 0], sizes = [32, 32], strides = [1, 1]} : vector<64x32xf32> to vector<32x32xf32>
    %c0_8 = arith.constant 0 : index
    %c0_9 = arith.constant 0 : index
    %10 = vector.load %arg8[%c0_8, %c0_9] : memref<32x128xf32, #tpu.memory_space<vmem>>, vector<32x128xf32>
    %c0_10 = arith.constant 0 : index
    %c0_11 = arith.constant 0 : index
    %c0_12 = arith.constant 0 : index
    %11 = vector.load %arg4[%c0_10, %c0_11, %c0_12] : memref<3x8x1024xf32, #tpu.memory_space<vmem>>, vector<1x8x1024xf32>
    %12 = vector.shape_cast %11 : vector<1x8x1024xf32> to vector<8x1024xf32>
    %cst_13 = arith.constant dense<0.000000e+00> : vector<32x1024xf32>
    %13 = tpu.matmul %0, %12, %cst_13 {dimension_numbers = #tpu.dot_dimension_numbers<[1], [0], [0], [1], [0, 0, 1, 1], [], []>} : vector<32x8xf32>, vector<8x1024xf32>, vector<32x1024xf32> -> vector<32x1024xf32>
    %c0_14 = arith.constant 0 : index
    %c0_15 = arith.constant 0 : index
    %c0_16 = arith.constant 0 : index
    %14 = vector.load %arg5[%c0_14, %c0_15, %c0_16] : memref<3x32x1024xf32, #tpu.memory_space<vmem>>, vector<1x32x1024xf32>
    %15 = vector.shape_cast %14 : vector<1x32x1024xf32> to vector<32x1024xf32>
    %cst_17 = arith.constant dense<0.000000e+00> : vector<32x1024xf32>
    %16 = tpu.matmul %1, %15, %cst_17 {dimension_numbers = #tpu.dot_dimension_numbers<[1], [0], [0], [1], [0, 0, 1, 1], [], []>} : vector<32x32xf32>, vector<32x1024xf32>, vector<32x1024xf32> -> vector<32x1024xf32>
    %17 = arith.addf %13, %16 : vector<32x1024xf32>
    %c1 = arith.constant 1 : index
    %c0_18 = arith.constant 0 : index
    %c0_19 = arith.constant 0 : index
    %18 = vector.load %arg4[%c1, %c0_18, %c0_19] : memref<3x8x1024xf32, #tpu.memory_space<vmem>>, vector<1x8x1024xf32>
    %19 = vector.shape_cast %18 : vector<1x8x1024xf32> to vector<8x1024xf32>
    %cst_20 = arith.constant dense<0.000000e+00> : vector<32x1024xf32>
    %20 = tpu.matmul %6, %19, %cst_20 {dimension_numbers = #tpu.dot_dimension_numbers<[1], [0], [0], [1], [0, 0, 1, 1], [], []>} : vector<32x8xf32>, vector<8x1024xf32>, vector<32x1024xf32> -> vector<32x1024xf32>
    %21 = arith.addf %17, %20 : vector<32x1024xf32>
    %c1_21 = arith.constant 1 : index
    %c0_22 = arith.constant 0 : index
    %c0_23 = arith.constant 0 : index
    %22 = vector.load %arg5[%c1_21, %c0_22, %c0_23] : memref<3x32x1024xf32, #tpu.memory_space<vmem>>, vector<1x32x1024xf32>
    %23 = vector.shape_cast %22 : vector<1x32x1024xf32> to vector<32x1024xf32>
    %cst_24 = arith.constant dense<0.000000e+00> : vector<32x1024xf32>
    %24 = tpu.matmul %8, %23, %cst_24 {dimension_numbers = #tpu.dot_dimension_numbers<[1], [0], [0], [1], [0, 0, 1, 1], [], []>} : vector<32x32xf32>, vector<32x1024xf32>, vector<32x1024xf32> -> vector<32x1024xf32>
    %25 = arith.addf %21, %24 : vector<32x1024xf32>
    %c2 = arith.constant 2 : index
    %c0_25 = arith.constant 0 : index
    %c0_26 = arith.constant 0 : index
    %26 = vector.load %arg4[%c2, %c0_25, %c0_26] : memref<3x8x1024xf32, #tpu.memory_space<vmem>>, vector<1x8x1024xf32>
    %27 = vector.shape_cast %26 : vector<1x8x1024xf32> to vector<8x1024xf32>
    %cst_27 = arith.constant dense<0.000000e+00> : vector<32x1024xf32>
    %28 = tpu.matmul %7, %27, %cst_27 {dimension_numbers = #tpu.dot_dimension_numbers<[1], [0], [0], [1], [0, 0, 1, 1], [], []>} : vector<32x8xf32>, vector<8x1024xf32>, vector<32x1024xf32> -> vector<32x1024xf32>
    %29 = arith.addf %25, %28 : vector<32x1024xf32>
    %c2_28 = arith.constant 2 : index
    %c0_29 = arith.constant 0 : index
    %c0_30 = arith.constant 0 : index
    %30 = vector.load %arg5[%c2_28, %c0_29, %c0_30] : memref<3x32x1024xf32, #tpu.memory_space<vmem>>, vector<1x32x1024xf32>
    %31 = vector.shape_cast %30 : vector<1x32x1024xf32> to vector<32x1024xf32>
    %cst_31 = arith.constant dense<0.000000e+00> : vector<32x1024xf32>
    %32 = tpu.matmul %9, %31, %cst_31 {dimension_numbers = #tpu.dot_dimension_numbers<[1], [0], [0], [1], [0, 0, 1, 1], [], []>} : vector<32x32xf32>, vector<32x1024xf32>, vector<32x1024xf32> -> vector<32x1024xf32>
    %33 = arith.addf %29, %32 : vector<32x1024xf32>
    %34 = arith.mulf %3, %33 : vector<32x1024xf32>
    %35 = vector.extract_strided_slice %34 {offsets = [0, 0], sizes = [32, 128], strides = [1, 1]} : vector<32x1024xf32> to vector<32x128xf32>
    %36 = arith.addf %10, %35 : vector<32x128xf32>
    %37 = vector.extract_strided_slice %34 {offsets = [0, 128], sizes = [32, 128], strides = [1, 1]} : vector<32x1024xf32> to vector<32x128xf32>
    %38 = arith.addf %36, %37 : vector<32x128xf32>
    %39 = vector.extract_strided_slice %34 {offsets = [0, 256], sizes = [32, 128], strides = [1, 1]} : vector<32x1024xf32> to vector<32x128xf32>
    %40 = arith.addf %38, %39 : vector<32x128xf32>
    %41 = vector.extract_strided_slice %34 {offsets = [0, 384], sizes = [32, 128], strides = [1, 1]} : vector<32x1024xf32> to vector<32x128xf32>
    %42 = arith.addf %40, %41 : vector<32x128xf32>
    %43 = vector.extract_strided_slice %34 {offsets = [0, 512], sizes = [32, 128], strides = [1, 1]} : vector<32x1024xf32> to vector<32x128xf32>
    %44 = arith.addf %42, %43 : vector<32x128xf32>
    %45 = vector.extract_strided_slice %34 {offsets = [0, 640], sizes = [32, 128], strides = [1, 1]} : vector<32x1024xf32> to vector<32x128xf32>
    %46 = arith.addf %44, %45 : vector<32x128xf32>
    %47 = vector.extract_strided_slice %34 {offsets = [0, 768], sizes = [32, 128], strides = [1, 1]} : vector<32x1024xf32> to vector<32x128xf32>
    %48 = arith.addf %46, %47 : vector<32x128xf32>
    %49 = vector.extract_strided_slice %34 {offsets = [0, 896], sizes = [32, 128], strides = [1, 1]} : vector<32x1024xf32> to vector<32x128xf32>
    %50 = arith.addf %48, %49 : vector<32x128xf32>
    %51 = arith.negf %50 : vector<32x128xf32>
    %52 = math.exp %51 : vector<32x128xf32>
    %cst_32 = arith.constant 1.000000e+00 : f32
    %53 = vector.broadcast %cst_32 : f32 to vector<32x128xf32>
    %54 = arith.addf %53, %52 : vector<32x128xf32>
    %55 = arith.divf %53, %54 : vector<32x128xf32>
    %56 = vector.extract_strided_slice %55 {offsets = [0, 0], sizes = [32, 32], strides = [1, 1]} : vector<32x128xf32> to vector<32x32xf32>
    %57 = vector.extract_strided_slice %55 {offsets = [0, 32], sizes = [32, 32], strides = [1, 1]} : vector<32x128xf32> to vector<32x32xf32>
    %58 = arith.mulf %56, %1 : vector<32x32xf32>
    %cst_33 = arith.constant dense<0.000000e+00> : vector<64x32xf32>
    %59 = tpu.matmul %2, %58, %cst_33 {dimension_numbers = #tpu.dot_dimension_numbers<[1], [0], [0], [1], [0, 0, 1, 1], [], []>} : vector<64x32xf32>, vector<32x32xf32>, vector<64x32xf32> -> vector<64x32xf32>
    %60 = vector.extract_strided_slice %59 {offsets = [0, 0], sizes = [32, 32], strides = [1, 1]} : vector<64x32xf32> to vector<32x32xf32>
    %61 = vector.extract_strided_slice %59 {offsets = [32, 0], sizes = [32, 32], strides = [1, 1]} : vector<64x32xf32> to vector<32x32xf32>
    %c0_34 = arith.constant 0 : index
    %c0_35 = arith.constant 0 : index
    %62 = vector.load %arg9[%c0_34, %c0_35] : memref<32x128xf32, #tpu.memory_space<vmem>>, vector<32x128xf32>
    %c0_36 = arith.constant 0 : index
    %c0_37 = arith.constant 0 : index
    %c0_38 = arith.constant 0 : index
    %63 = vector.load %arg6[%c0_36, %c0_37, %c0_38] : memref<3x8x1024xf32, #tpu.memory_space<vmem>>, vector<1x8x1024xf32>
    %64 = vector.shape_cast %63 : vector<1x8x1024xf32> to vector<8x1024xf32>
    %cst_39 = arith.constant dense<0.000000e+00> : vector<32x1024xf32>
    %65 = tpu.matmul %0, %64, %cst_39 {dimension_numbers = #tpu.dot_dimension_numbers<[1], [0], [0], [1], [0, 0, 1, 1], [], []>} : vector<32x8xf32>, vector<8x1024xf32>, vector<32x1024xf32> -> vector<32x1024xf32>
    %c0_40 = arith.constant 0 : index
    %c0_41 = arith.constant 0 : index
    %c0_42 = arith.constant 0 : index
    %66 = vector.load %arg7[%c0_40, %c0_41, %c0_42] : memref<3x32x1024xf32, #tpu.memory_space<vmem>>, vector<1x32x1024xf32>
    %67 = vector.shape_cast %66 : vector<1x32x1024xf32> to vector<32x1024xf32>
    %cst_43 = arith.constant dense<0.000000e+00> : vector<32x1024xf32>
    %68 = tpu.matmul %58, %67, %cst_43 {dimension_numbers = #tpu.dot_dimension_numbers<[1], [0], [0], [1], [0, 0, 1, 1], [], []>} : vector<32x32xf32>, vector<32x1024xf32>, vector<32x1024xf32> -> vector<32x1024xf32>
    %69 = arith.addf %65, %68 : vector<32x1024xf32>
    %c1_44 = arith.constant 1 : index
    %c0_45 = arith.constant 0 : index
    %c0_46 = arith.constant 0 : index
    %70 = vector.load %arg6[%c1_44, %c0_45, %c0_46] : memref<3x8x1024xf32, #tpu.memory_space<vmem>>, vector<1x8x1024xf32>
    %71 = vector.shape_cast %70 : vector<1x8x1024xf32> to vector<8x1024xf32>
    %cst_47 = arith.constant dense<0.000000e+00> : vector<32x1024xf32>
    %72 = tpu.matmul %6, %71, %cst_47 {dimension_numbers = #tpu.dot_dimension_numbers<[1], [0], [0], [1], [0, 0, 1, 1], [], []>} : vector<32x8xf32>, vector<8x1024xf32>, vector<32x1024xf32> -> vector<32x1024xf32>
    %73 = arith.addf %69, %72 : vector<32x1024xf32>
    %c1_48 = arith.constant 1 : index
    %c0_49 = arith.constant 0 : index
    %c0_50 = arith.constant 0 : index
    %74 = vector.load %arg7[%c1_48, %c0_49, %c0_50] : memref<3x32x1024xf32, #tpu.memory_space<vmem>>, vector<1x32x1024xf32>
    %75 = vector.shape_cast %74 : vector<1x32x1024xf32> to vector<32x1024xf32>
    %cst_51 = arith.constant dense<0.000000e+00> : vector<32x1024xf32>
    %76 = tpu.matmul %60, %75, %cst_51 {dimension_numbers = #tpu.dot_dimension_numbers<[1], [0], [0], [1], [0, 0, 1, 1], [], []>} : vector<32x32xf32>, vector<32x1024xf32>, vector<32x1024xf32> -> vector<32x1024xf32>
    %77 = arith.addf %73, %76 : vector<32x1024xf32>
    %c2_52 = arith.constant 2 : index
    %c0_53 = arith.constant 0 : index
    %c0_54 = arith.constant 0 : index
    %78 = vector.load %arg6[%c2_52, %c0_53, %c0_54] : memref<3x8x1024xf32, #tpu.memory_space<vmem>>, vector<1x8x1024xf32>
    %79 = vector.shape_cast %78 : vector<1x8x1024xf32> to vector<8x1024xf32>
    %cst_55 = arith.constant dense<0.000000e+00> : vector<32x1024xf32>
    %80 = tpu.matmul %7, %79, %cst_55 {dimension_numbers = #tpu.dot_dimension_numbers<[1], [0], [0], [1], [0, 0, 1, 1], [], []>} : vector<32x8xf32>, vector<8x1024xf32>, vector<32x1024xf32> -> vector<32x1024xf32>
    %81 = arith.addf %77, %80 : vector<32x1024xf32>
    %c2_56 = arith.constant 2 : index
    %c0_57 = arith.constant 0 : index
    %c0_58 = arith.constant 0 : index
    %82 = vector.load %arg7[%c2_56, %c0_57, %c0_58] : memref<3x32x1024xf32, #tpu.memory_space<vmem>>, vector<1x32x1024xf32>
    %83 = vector.shape_cast %82 : vector<1x32x1024xf32> to vector<32x1024xf32>
    %cst_59 = arith.constant dense<0.000000e+00> : vector<32x1024xf32>
    %84 = tpu.matmul %61, %83, %cst_59 {dimension_numbers = #tpu.dot_dimension_numbers<[1], [0], [0], [1], [0, 0, 1, 1], [], []>} : vector<32x32xf32>, vector<32x1024xf32>, vector<32x1024xf32> -> vector<32x1024xf32>
    %85 = arith.addf %81, %84 : vector<32x1024xf32>
    %86 = arith.mulf %3, %85 : vector<32x1024xf32>
    %87 = vector.extract_strided_slice %86 {offsets = [0, 0], sizes = [32, 128], strides = [1, 1]} : vector<32x1024xf32> to vector<32x128xf32>
    %88 = arith.addf %62, %87 : vector<32x128xf32>
    %89 = vector.extract_strided_slice %86 {offsets = [0, 128], sizes = [32, 128], strides = [1, 1]} : vector<32x1024xf32> to vector<32x128xf32>
    %90 = arith.addf %88, %89 : vector<32x128xf32>
    %91 = vector.extract_strided_slice %86 {offsets = [0, 256], sizes = [32, 128], strides = [1, 1]} : vector<32x1024xf32> to vector<32x128xf32>
    %92 = arith.addf %90, %91 : vector<32x128xf32>
    %93 = vector.extract_strided_slice %86 {offsets = [0, 384], sizes = [32, 128], strides = [1, 1]} : vector<32x1024xf32> to vector<32x128xf32>
    %94 = arith.addf %92, %93 : vector<32x128xf32>
    %95 = vector.extract_strided_slice %86 {offsets = [0, 512], sizes = [32, 128], strides = [1, 1]} : vector<32x1024xf32> to vector<32x128xf32>
    %96 = arith.addf %94, %95 : vector<32x128xf32>
    %97 = vector.extract_strided_slice %86 {offsets = [0, 640], sizes = [32, 128], strides = [1, 1]} : vector<32x1024xf32> to vector<32x128xf32>
    %98 = arith.addf %96, %97 : vector<32x128xf32>
    %99 = vector.extract_strided_slice %86 {offsets = [0, 768], sizes = [32, 128], strides = [1, 1]} : vector<32x1024xf32> to vector<32x128xf32>
    %100 = arith.addf %98, %99 : vector<32x128xf32>
    %101 = vector.extract_strided_slice %86 {offsets = [0, 896], sizes = [32, 128], strides = [1, 1]} : vector<32x1024xf32> to vector<32x128xf32>
    %102 = arith.addf %100, %101 : vector<32x128xf32>
    %103 = math.tanh %102 : vector<32x128xf32>
    %104 = arith.mulf %57, %1 : vector<32x32xf32>
    %cst_60 = arith.constant 1.000000e+00 : f32
    %105 = vector.broadcast %cst_60 : f32 to vector<32x32xf32>
    %106 = arith.subf %105, %57 : vector<32x32xf32>
    %107 = vector.extract_strided_slice %103 {offsets = [0, 0], sizes = [32, 32], strides = [1, 1]} : vector<32x128xf32> to vector<32x32xf32>
    %108 = arith.mulf %106, %107 : vector<32x32xf32>
    %109 = arith.addf %104, %108 : vector<32x32xf32>
    %c0_61 = arith.constant 0 : index
    %c0_62 = arith.constant 0 : index
    %110 = vector.load %arg10[%c0_61, %c0_62] : memref<32x32xf32, #tpu.memory_space<vmem>>, vector<32x32xf32>
    tpu.vector_store %arg10[%c0_61, %c0_62], %109 {strides = array<i32>} : memref<32x32xf32, #tpu.memory_space<vmem>>, vector<32x32xf32>,
    return
  }
}

</mosaic_0001>

<llo_original>
// kernel: tpu_custom_call.1
$region0: #{tpu_custom_call.1}
  #allocation0 [shape = 'u32[]', space=smem, size = 0x4, offset = 0x4, fixed_abs, tag = 'smem constant byte address 0x4 - core index']
  #allocation1 [shape = 'u32[72,128]{1,0:T(1,128)}', space=vmem, size = 0x9000, scoped, tag = 'internal scratch']
  %s0 = inlined_call_operand.vmem [shape: f32[32,8], index: 0, kind: input, shape index: {}]
  %s1 = inlined_call_operand.vmem [shape: f32[32,32], index: 1, kind: input, shape index: {}]
  %s2 = inlined_call_operand.vmem [shape: f32[64,32], index: 2, kind: input, shape index: {}]
  %s3 = inlined_call_operand.hbm [shape: f32[32,1024], index: 3, kind: input, shape index: {}]
  %s4 = inlined_call_operand.hbm [shape: f32[3,8,1024], index: 4, kind: input, shape index: {}]
  %s5 = inlined_call_operand.hbm [shape: f32[3,32,1024], index: 5, kind: input, shape index: {}]
  %s6 = inlined_call_operand.hbm [shape: f32[3,8,1024], index: 6, kind: input, shape index: {}]
  %s7 = inlined_call_operand.hbm [shape: f32[3,32,1024], index: 7, kind: input, shape index: {}]
  %s8 = inlined_call_operand.vmem [shape: f32[32,128], index: 8, kind: input, shape index: {}]
  %s9 = inlined_call_operand.vmem [shape: f32[32,128], index: 9, kind: input, shape index: {}]
  %s10 = inlined_call_operand.hbm [shape: f32[32,32], index: 10, kind: output, shape index: {}]
  %s11 = sld [smem:[#allocation0]]
  $region70: #{tpu_custom_call.1} parent=0
    _
  %s13 = ssub.s32 1, %s11
  %s14 = scalar_select 0, %s13, %s11
  $region1: #{tpu_custom_call.1} parent=0
    #allocation2 [shape = 'u8[131072]{0}', space=vmem, size = 0x20000, scoped, tag = 'input window, operand 3, single buffered']
    #allocation3 [shape = 's32[1]{0}', space=sflag, size = 0x4, scoped, tag = 'scoped memory for tpu_custom_call.1']
    #allocation4 [shape = 's32[1]{0}', space=sflag, size = 0x4, scoped, tag = 'scoped memory for tpu_custom_call.1']
    #allocation5 [shape = 'u8[98304]{0}', space=vmem, size = 0x18000, scoped, tag = 'input window, operand 4, single buffered']
    #allocation6 [shape = 's32[1]{0}', space=sflag, size = 0x4, scoped, tag = 'scoped memory for tpu_custom_call.1']
    #allocation7 [shape = 'u8[393216]{0}', space=vmem, size = 0x60000, scoped, tag = 'input window, operand 5, single buffered']
    #allocation8 [shape = 'u8[98304]{0}', space=vmem, size = 0x18000, scoped, tag = 'input window, operand 6, single buffered']
    #allocation9 [shape = 's32[1]{0}', space=sflag, size = 0x4, scoped, tag = 'scoped memory for tpu_custom_call.1']
    #allocation10 [shape = 'u8[393216]{0}', space=vmem, size = 0x60000, scoped, tag = 'input window, operand 7, single buffered']
    #allocation11 [shape = 'u8[16384]{0}', space=vmem, size = 0x4000, scoped, tag = 'output window, operand 0, single buffered']
    %15 = vsyncpa [#allocation3], 0
    %16 = vsyncpa [#allocation6], 0
    %17 = vsyncpa [#allocation9], 0
    %18 = vsyncpa [#allocation4], 0
    // Predicated region
    $region2: #{tpu_custom_call.1} parent=1 // pred_check
      _
    $region3: #{tpu_custom_call.1} parent=1 // pred_check_branch
      %20 = sbr.rel (0) target = $region5
    $region4: #{tpu_custom_call.1} parent=1 // pred_region
      _
    $region5: #{tpu_custom_call.1} parent=1 // pred_fallthru
      _
    // Predicated region
    $region6: #{tpu_custom_call.1} parent=1 // pred_check
      _
    $region7: #{tpu_custom_call.1} parent=1 // pred_check_branch
      %22 = sbr.rel (0) target = $region9
    $region8: #{tpu_custom_call.1} parent=1 // pred_region
      _
    $region9: #{tpu_custom_call.1} parent=1 // pred_fallthru
      _
    // Predicated region
    $region10: #{tpu_custom_call.1} parent=1 // pred_check
      _
    $region11: #{tpu_custom_call.1} parent=1 // pred_check_branch
      %24 = sbr.rel (0) target = $region13
    $region12: #{tpu_custom_call.1} parent=1 // pred_region
      _
    $region13: #{tpu_custom_call.1} parent=1 // pred_fallthru
      _
    // Predicated region
    $region14: #{tpu_custom_call.1} parent=1 // pred_check
      _
    $region15: #{tpu_custom_call.1} parent=1 // pred_check_branch
      %26 = sbr.rel (0) target = $region17
    $region16: #{tpu_custom_call.1} parent=1 // pred_region
      %28 = vsyncadd [#allocation3], 0
      %s29 = sshll.u32 %s3, 4
      %s30 = int_to_ptr.hbm [resolvable:$true] %s29
      %s31 = sshll.u32 [#allocation2], 4
      %s32 = int_to_ptr.vmem [resolvable:$true] %s31
      %37 = dma.hbm_to_vmem [thread:$0]  %s30, 4096, %s32, [#allocation3], 1024, 1024, 64
    $region17: #{tpu_custom_call.1} parent=1 // pred_fallthru
      _
    // Predicated region
    $region18: #{tpu_custom_call.1} parent=1 // pred_check
      _
    $region19: #{tpu_custom_call.1} parent=1 // pred_check_branch
      %39 = sbr.rel (0) target = $region21
    $region20: #{tpu_custom_call.1} parent=1 // pred_region
      %41 = vsyncadd [#allocation6], 0
      %s42 = sshll.u32 %s4, 4
      %s43 = int_to_ptr.hbm [resolvable:$true] %s42
      %s44 = sshll.u32 [#allocation5], 4
      %s45 = int_to_ptr.vmem [resolvable:$true] %s44
      %50 = dma.hbm_to_vmem [thread:$0]  %s43, 3072, %s45, [#allocation6], 1024, 1024, 64
    $region21: #{tpu_custom_call.1} parent=1 // pred_fallthru
      _
    // Predicated region
    $region22: #{tpu_custom_call.1} parent=1 // pred_check
      _
    $region23: #{tpu_custom_call.1} parent=1 // pred_check_branch
      %52 = sbr.rel (0) target = $region25
    $region24: #{tpu_custom_call.1} parent=1 // pred_region
      %54 = vsyncadd [#allocation6], 0
      %s55 = sshll.u32 %s5, 4
      %s56 = int_to_ptr.hbm [resolvable:$true] %s55
      %s57 = sshll.u32 [#allocation7], 4
      %s58 = int_to_ptr.vmem [resolvable:$true] %s57
      %63 = dma.hbm_to_vmem [thread:$0]  %s56, 12288, %s58, [#allocation6], 1024, 1024, 64
    $region25: #{tpu_custom_call.1} parent=1 // pred_fallthru
      _
    // Predicated region
    $region26: #{tpu_custom_call.1} parent=1 // pred_check
      _
    $region27: #{tpu_custom_call.1} parent=1 // pred_check_branch
      %65 = sbr.rel (0) target = $region29
    $region28: #{tpu_custom_call.1} parent=1 // pred_region
      %67 = vsyncadd [#allocation9], 0
      %s68 = sshll.u32 %s6, 4
      %s69 = int_to_ptr.hbm [resolvable:$true] %s68
      %s70 = sshll.u32 [#allocation8], 4
      %s71 = int_to_ptr.vmem [resolvable:$true] %s70
      %76 = dma.hbm_to_vmem [thread:$0]  %s69, 3072, %s71, [#allocation9], 1024, 1024, 64
    $region29: #{tpu_custom_call.1} parent=1 // pred_fallthru
      _
    // Predicated region
    $region30: #{tpu_custom_call.1} parent=1 // pred_check
      _
    $region31: #{tpu_custom_call.1} parent=1 // pred_check_branch
      %78 = sbr.rel (0) target = $region33
    $region32: #{tpu_custom_call.1} parent=1 // pred_region
      %80 = vsyncadd [#allocation9], 0
      %s81 = sshll.u32 %s7, 4
      %s82 = int_to_ptr.hbm [resolvable:$true] %s81
      %s83 = sshll.u32 [#allocation10], 4
      %s84 = int_to_ptr.vmem [resolvable:$true] %s83
      %89 = dma.hbm_to_vmem [thread:$0]  %s82, 12288, %s84, [#allocation9], 1024, 1024, 64
    $region33: #{tpu_custom_call.1} parent=1 // pred_fallthru
      _
    // Predicated region
    $region34: #{tpu_custom_call.1} parent=1 // pred_check
      _
    $region35: #{tpu_custom_call.1} parent=1 // pred_check_branch
      %91 = sbr.rel (0) target = $region37
    $region36: #{tpu_custom_call.1} parent=1 // pred_region
      _
    $region37: #{tpu_custom_call.1} parent=1 // pred_fallthru
      _
    // Predicated region
    $region38: #{tpu_custom_call.1} parent=1 // pred_check
      _
    $region39: #{tpu_custom_call.1} parent=1 // pred_check_branch
      %93 = sbr.rel (0) target = $region41
    $region40: #{tpu_custom_call.1} parent=1 // pred_region
      _
    $region41: #{tpu_custom_call.1} parent=1 // pred_fallthru
      _
    // Predicated region
    $region42: #{tpu_custom_call.1} parent=1 // pred_check
      _
    $region43: #{tpu_custom_call.1} parent=1 // pred_check_branch
      %95 = sbr.rel (0) target = $region45
    $region44: #{tpu_custom_call.1} parent=1 // pred_region
      %97 = dma.done [#allocation3], 4096
    $region45: #{tpu_custom_call.1} parent=1 // pred_fallthru
      _
    // Predicated region
    $region46: #{tpu_custom_call.1} parent=1 // pred_check
      _
    $region47: #{tpu_custom_call.1} parent=1 // pred_check_branch
      %99 = sbr.rel (0) target = $region49
    $region48: #{tpu_custom_call.1} parent=1 // pred_region
      %101 = dma.done [#allocation6], 3072
    $region49: #{tpu_custom_call.1} parent=1 // pred_fallthru
      _
    // Predicated region
    $region50: #{tpu_custom_call.1} parent=1 // pred_check
      _
    $region51: #{tpu_custom_call.1} parent=1 // pred_check_branch
      %103 = sbr.rel (0) target = $region53
    $region52: #{tpu_custom_call.1} parent=1 // pred_region
      %105 = dma.done [#allocation6], 12288
    $region53: #{tpu_custom_call.1} parent=1 // pred_fallthru
      _
    // Predicated region
    $region54: #{tpu_custom_call.1} parent=1 // pred_check
      _
    $region55: #{tpu_custom_call.1} parent=1 // pred_check_branch
      %107 = sbr.rel (0) target = $region57
    $region56: #{tpu_custom_call.1} parent=1 // pred_region
      %109 = dma.done [#allocation9], 3072
    $region57: #{tpu_custom_call.1} parent=1 // pred_fallthru
      _
    // Predicated region
    $region58: #{tpu_custom_call.1} parent=1 // pred_check
      _
    $region59: #{tpu_custom_call.1} parent=1 // pred_check_branch
      %111 = sbr.rel (0) target = $region61
    $region60: #{tpu_custom_call.1} parent=1 // pred_region
      %113 = dma.done [#allocation9], 12288
    $region61: #{tpu_custom_call.1} parent=1 // pred_fallthru
      _
    %v114 = vld [vmem:[%s0] sm:$0xff]
    %v115 = vld [vmem:[%s0 + $0x8] sm:$0xff]
    %v116 = vld [vmem:[%s0 + $0x10] sm:$0xff]
    %v117 = vld [vmem:[%s0 + $0x18] sm:$0xff]
    %v118 = vld [vmem:[%s1] sm:$0xff]
    %v119 = vld [vmem:[%s1 + $0x8] sm:$0xff]
    %v120 = vld [vmem:[%s1 + $0x10] sm:$0xff]
    %v121 = vld [vmem:[%s1 + $0x18] sm:$0xff]
    %v122 = vld [vmem:[%s2] sm:$0xff]
    %v123 = vld [vmem:[%s2 + $0x8] sm:$0xff]
    %v124 = vld [vmem:[%s2 + $0x10] sm:$0xff]
    %v125 = vld [vmem:[%s2 + $0x18] sm:$0xff]
    %v126 = vld [vmem:[%s2 + $0x20] sm:$0xff]
    %v127 = vld [vmem:[%s2 + $0x28] sm:$0xff]
    %v128 = vld [vmem:[%s2 + $0x30] sm:$0xff]
    %v129 = vld [vmem:[%s2 + $0x38] sm:$0xff]
    %v130 = vld [vmem:[#allocation2] sm:$0xff]
    %v131 = vld [vmem:[#allocation2 + $0x8] sm:$0xff]
    %v132 = vld [vmem:[#allocation2 + $0x10] sm:$0xff]
    %v133 = vld [vmem:[#allocation2 + $0x18] sm:$0xff]
    %v134 = vld [vmem:[#allocation2 + $0x20] sm:$0xff]
    %v135 = vld [vmem:[#allocation2 + $0x28] sm:$0xff]
    %v136 = vld [vmem:[#allocation2 + $0x30] sm:$0xff]
    %v137 = vld [vmem:[#allocation2 + $0x38] sm:$0xff]
    %v138 = vld [vmem:[#allocation2 + $0x40] sm:$0xff]
    %v139 = vld [vmem:[#allocation2 + $0x48] sm:$0xff]
    %v140 = vld [vmem:[#allocation2 + $0x50] sm:$0xff]
    %v141 = vld [vmem:[#allocation2 + $0x58] sm:$0xff]
    %v142 = vld [vmem:[#allocation2 + $0x60] sm:$0xff]
    %v143 = vld [vmem:[#allocation2 + $0x68] sm:$0xff]
    %v144 = vld [vmem:[#allocation2 + $0x70] sm:$0xff]
    %v145 = vld [vmem:[#allocation2 + $0x78] sm:$0xff]
    %v146 = vld [vmem:[#allocation2 + $0x80] sm:$0xff]
    %v147 = vld [vmem:[#allocation2 + $0x88] sm:$0xff]
    %v148 = vld [vmem:[#allocation2 + $0x90] sm:$0xff]
    %v149 = vld [vmem:[#allocation2 + $0x98] sm:$0xff]
    %v150 = vld [vmem:[#allocation2 + $0xa0] sm:$0xff]
    %v151 = vld [vmem:[#allocation2 + $0xa8] sm:$0xff]
    %v152 = vld [vmem:[#allocation2 + $0xb0] sm:$0xff]
    %v153 = vld [vmem:[#allocation2 + $0xb8] sm:$0xff]
    %v154 = vld [vmem:[#allocation2 + $0xc0] sm:$0xff]
    %v155 = vld [vmem:[#allocation2 + $0xc8] sm:$0xff]
    %v156 = vld [vmem:[#allocation2 + $0xd0] sm:$0xff]
    %v157 = vld [vmem:[#allocation2 + $0xd8] sm:$0xff]
    %v158 = vld [vmem:[#allocation2 + $0xe0] sm:$0xff]
    %v159 = vld [vmem:[#allocation2 + $0xe8] sm:$0xff]
    %v160 = vld [vmem:[#allocation2 + $0xf0] sm:$0xff]
    %v161 = vld [vmem:[#allocation2 + $0xf8] sm:$0xff]
    %vm162 = vcmask 261120
    %v164 = vsel %vm162, %v122, 0
    %v167 = vsel %vm162, %v123, 0
    %v170 = vsel %vm162, %v124, 0
    %v173 = vsel %vm162, %v125, 0
    %v176 = vsel %vm162, %v126, 0
    %v179 = vsel %vm162, %v127, 0
    %v182 = vsel %vm162, %v128, 0
    %v185 = vsel %vm162, %v129, 0
    %187 = vmatpush.msra.mxu0 0.0
    %188 = vmatpush.msra.mxu0 0.0
    %189 = vmatpush.msra.mxu0 0.0
    %190 = vmatpush.msra.mxu0 0.0
    %191 = vmatpush.msra.mxu0 0.0
    %192 = vmatpush.msra.mxu0 0.0
    %193 = vmatpush.msra.mxu0 0.0
    %194 = vmatpush.msra.mxu0 0.0
    %195 = vmatpush.msra.mxu0 0.0
    %196 = vmatpush.msra.mxu0 0.0
    %197 = vmatpush.msra.mxu0 0.0
    %198 = vmatpush.msra.mxu0 0.0
    %199 = vmatpush.msra.mxu0 %v117
    %200 = vmatpush.msra.mxu0 %v116
    %201 = vmatpush.msra.mxu0 %v115
    %202 = vmatpush.msra.mxu0 %v114
    %203 = vmatmul.f32.gmra.mxu0 %v164
    %v204 = vpop.f32.mrf.mxu0
    %v205 = vadd.f32 0.0, %v204
    %206 = vmatmul.f32.gmra.mxu0 %v167
    %v207 = vpop.f32.mrf.mxu0
    %v208 = vadd.f32 0.0, %v207
    %209 = vmatmul.f32.gmra.mxu0 %v170
    %v210 = vpop.f32.mrf.mxu0
    %v211 = vadd.f32 0.0, %v210
    %212 = vmatmul.f32.gmra.mxu0 %v173
    %v213 = vpop.f32.mrf.mxu0
    %v214 = vadd.f32 0.0, %v213
    %215 = vmatmul.f32.gmra.mxu0 %v176
    %v216 = vpop.f32.mrf.mxu0
    %v217 = vadd.f32 0.0, %v216
    %218 = vmatmul.f32.gmra.mxu0 %v179
    %v219 = vpop.f32.mrf.mxu0
    %v220 = vadd.f32 0.0, %v219
    %221 = vmatmul.f32.gmra.mxu0 %v182
    %v222 = vpop.f32.mrf.mxu0
    %v223 = vadd.f32 0.0, %v222
    %224 = vmatmul.f32.gmra.mxu0 %v185
    %v225 = vpop.f32.mrf.mxu0
    %v226 = vadd.f32 0.0, %v225
    %227 = vdwg.mxu0
    %228 = vmatpush.msra.mxu0 0.0
    %229 = vmatpush.msra.mxu0 0.0
    %230 = vmatpush.msra.mxu0 0.0
    %231 = vmatpush.msra.mxu0 0.0
    %232 = vmatpush.msra.mxu0 0.0
    %233 = vmatpush.msra.mxu0 0.0
    %234 = vmatpush.msra.mxu0 0.0
    %235 = vmatpush.msra.mxu0 0.0
    %236 = vmatpush.msra.mxu0 0.0
    %237 = vmatpush.msra.mxu0 0.0
    %238 = vmatpush.msra.mxu0 0.0
    %239 = vmatpush.msra.mxu0 0.0
    %240 = vmatpush.msra.mxu0 %v121
    %241 = vmatpush.msra.mxu0 %v120
    %242 = vmatpush.msra.mxu0 %v119
    %243 = vmatpush.msra.mxu0 %v118
    %244 = vmatmul.f32.gmra.mxu0 %v164
    %v245 = vpop.f32.mrf.mxu0
    %v246 = vadd.f32 0.0, %v245
    %247 = vmatmul.f32.gmra.mxu0 %v167
    %v248 = vpop.f32.mrf.mxu0
    %v249 = vadd.f32 0.0, %v248
    %250 = vmatmul.f32.gmra.mxu0 %v170
    %v251 = vpop.f32.mrf.mxu0
    %v252 = vadd.f32 0.0, %v251
    %253 = vmatmul.f32.gmra.mxu0 %v173
    %v254 = vpop.f32.mrf.mxu0
    %v255 = vadd.f32 0.0, %v254
    %256 = vmatmul.f32.gmra.mxu0 %v176
    %v257 = vpop.f32.mrf.mxu0
    %v258 = vadd.f32 0.0, %v257
    %259 = vmatmul.f32.gmra.mxu0 %v179
    %v260 = vpop.f32.mrf.mxu0
    %v261 = vadd.f32 0.0, %v260
    %262 = vmatmul.f32.gmra.mxu0 %v182
    %v263 = vpop.f32.mrf.mxu0
    %v264 = vadd.f32 0.0, %v263
    %265 = vmatmul.f32.gmra.mxu0 %v185
    %v266 = vpop.f32.mrf.mxu0
    %v267 = vadd.f32 0.0, %v266
    %268 = vdwg.mxu0
    %v269 = vld [vmem:[%s8] sm:$0xff]
    %v270 = vld [vmem:[%s8 + $0x8] sm:$0xff]
    %v271 = vld [vmem:[%s8 + $0x10] sm:$0xff]
    %v272 = vld [vmem:[%s8 + $0x18] sm:$0xff]
    %v273 = vld [vmem:[#allocation5] sm:$0xff]
    %v274 = vld [vmem:[#allocation5 + $0x8] sm:$0xff]
    %v275 = vld [vmem:[#allocation5 + $0x10] sm:$0xff]
    %v276 = vld [vmem:[#allocation5 + $0x18] sm:$0xff]
    %v277 = vld [vmem:[#allocation5 + $0x20] sm:$0xff]
    %v278 = vld [vmem:[#allocation5 + $0x28] sm:$0xff]
    %v279 = vld [vmem:[#allocation5 + $0x30] sm:$0xff]
    %v280 = vld [vmem:[#allocation5 + $0x38] sm:$0xff]
    %v281 = vld [vmem:[#allocation7] sm:$0xff]
    %v282 = vld [vmem:[#allocation7 + $0x8] sm:$0xff]
    %v283 = vld [vmem:[#allocation7 + $0x10] sm:$0xff]
    %v284 = vld [vmem:[#allocation7 + $0x18] sm:$0xff]
    %v285 = vld [vmem:[#allocation7 + $0x20] sm:$0xff]
    %v286 = vld [vmem:[#allocation7 + $0x28] sm:$0xff]
    %v287 = vld [vmem:[#allocation7 + $0x30] sm:$0xff]
    %v288 = vld [vmem:[#allocation7 + $0x38] sm:$0xff]
    %v289 = vld [vmem:[#allocation7 + $0x40] sm:$0xff]
    %v290 = vld [vmem:[#allocation7 + $0x48] sm:$0xff]
    %v291 = vld [vmem:[#allocation7 + $0x50] sm:$0xff]
    %v292 = vld [vmem:[#allocation7 + $0x58] sm:$0xff]
    %v293 = vld [vmem:[#allocation7 + $0x60] sm:$0xff]
    %v294 = vld [vmem:[#allocation7 + $0x68] sm:$0xff]
    %v295 = vld [vmem:[#allocation7 + $0x70] sm:$0xff]
    %v296 = vld [vmem:[#allocation7 + $0x78] sm:$0xff]
    %v297 = vld [vmem:[#allocation7 + $0x80] sm:$0xff]
    %v298 = vld [vmem:[#allocation7 + $0x88] sm:$0xff]
    %v299 = vld [vmem:[#allocation7 + $0x90] sm:$0xff]
    %v300 = vld [vmem:[#allocation7 + $0x98] sm:$0xff]
    %v301 = vld [vmem:[#allocation7 + $0xa0] sm:$0xff]
    %v302 = vld [vmem:[#allocation7 + $0xa8] sm:$0xff]
    %v303 = vld [vmem:[#allocation7 + $0xb0] sm:$0xff]
    %v304 = vld [vmem:[#allocation7 + $0xb8] sm:$0xff]
    %v305 = vld [vmem:[#allocation7 + $0xc0] sm:$0xff]
    %v306 = vld [vmem:[#allocation7 + $0xc8] sm:$0xff]
    %v307 = vld [vmem:[#allocation7 + $0xd0] sm:$0xff]
    %v308 = vld [vmem:[#allocation7 + $0xd8] sm:$0xff]
    %v309 = vld [vmem:[#allocation7 + $0xe0] sm:$0xff]
    %v310 = vld [vmem:[#allocation7 + $0xe8] sm:$0xff]
    %v311 = vld [vmem:[#allocation7 + $0xf0] sm:$0xff]
    %v312 = vld [vmem:[#allocation7 + $0xf8] sm:$0xff]
    %v314 = vsel %vm162, %v118, 0
    %v317 = vsel %vm162, %v119, 0
    %v320 = vsel %vm162, %v120, 0
    %v323 = vsel %vm162, %v121, 0
    %325 = vmatpush.msra.mxu0 0.0
    %326 = vmatpush.msra.mxu0 0.0
    %327 = vmatpush.msra.mxu0 0.0
    %328 = vmatpush.msra.mxu0 0.0
    %329 = vmatpush.msra.mxu0 0.0
    %330 = vmatpush.msra.mxu0 0.0
    %331 = vmatpush.msra.mxu0 0.0
    %332 = vmatpush.msra.mxu0 0.0
    %333 = vmatpush.msra.mxu0 0.0
    %334 = vmatpush.msra.mxu0 0.0
    %335 = vmatpush.msra.mxu0 0.0
    %336 = vmatpush.msra.mxu0 0.0
    %337 = vmatpush.msra.mxu0 %v305
    %338 = vmatpush.msra.mxu0 %v297
    %339 = vmatpush.msra.mxu0 %v289
    %340 = vmatpush.msra.mxu0 %v281
    %341 = vmatmul.f32.gmra.mxu0 %v314
    %v342 = vpop.f32.mrf.mxu0
    %v343 = vadd.f32 0.0, %v342
    %344 = vmatmul.f32.gmra.mxu0 %v317
    %v345 = vpop.f32.mrf.mxu0
    %v346 = vadd.f32 0.0, %v345
    %347 = vmatmul.f32.gmra.mxu0 %v320
    %v348 = vpop.f32.mrf.mxu0
    %v349 = vadd.f32 0.0, %v348
    %350 = vmatmul.f32.gmra.mxu0 %v323
    %v351 = vpop.f32.mrf.mxu0
    %v352 = vadd.f32 0.0, %v351
    %353 = vdwg.mxu0
    %354 = vmatpush.msra.mxu0 0.0
    %355 = vmatpush.msra.mxu0 0.0
    %356 = vmatpush.msra.mxu0 0.0
    %357 = vmatpush.msra.mxu0 0.0
    %358 = vmatpush.msra.mxu0 0.0
    %359 = vmatpush.msra.mxu0 0.0
    %360 = vmatpush.msra.mxu0 0.0
    %361 = vmatpush.msra.mxu0 0.0
    %362 = vmatpush.msra.mxu0 0.0
    %363 = vmatpush.msra.mxu0 0.0
    %364 = vmatpush.msra.mxu0 0.0
    %365 = vmatpush.msra.mxu0 0.0
    %366 = vmatpush.msra.mxu0 %v306
    %367 = vmatpush.msra.mxu0 %v298
    %368 = vmatpush.msra.mxu0 %v290
    %369 = vmatpush.msra.mxu0 %v282
    %370 = vmatmul.f32.gmra.mxu0 %v314
    %v371 = vpop.f32.mrf.mxu0
    %v372 = vadd.f32 0.0, %v371
    %373 = vmatmul.f32.gmra.mxu0 %v317
    %v374 = vpop.f32.mrf.mxu0
    %v375 = vadd.f32 0.0, %v374
    %376 = vmatmul.f32.gmra.mxu0 %v320
    %v377 = vpop.f32.mrf.mxu0
    %v378 = vadd.f32 0.0, %v377
    %379 = vmatmul.f32.gmra.mxu0 %v323
    %v380 = vpop.f32.mrf.mxu0
    %v381 = vadd.f32 0.0, %v380
    %382 = vdwg.mxu0
    %383 = vmatpush.msra.mxu0 0.0
    %384 = vmatpush.msra.mxu0 0.0
    %385 = vmatpush.msra.mxu0 0.0
    %386 = vmatpush.msra.mxu0 0.0
    %387 = vmatpush.msra.mxu0 0.0
    %388 = vmatpush.msra.mxu0 0.0
    %389 = vmatpush.msra.mxu0 0.0
    %390 = vmatpush.msra.mxu0 0.0
    %391 = vmatpush.msra.mxu0 0.0
    %392 = vmatpush.msra.mxu0 0.0
    %393 = vmatpush.msra.mxu0 0.0
    %394 = vmatpush.msra.mxu0 0.0
    %395 = vmatpush.msra.mxu0 %v307
    %396 = vmatpush.msra.mxu0 %v299
    %397 = vmatpush.msra.mxu0 %v291
    %398 = vmatpush.msra.mxu0 %v283
    %399 = vmatmul.f32.gmra.mxu0 %v314
    %v400 = vpop.f32.mrf.mxu0
    %v401 = vadd.f32 0.0, %v400
    %402 = vmatmul.f32.gmra.mxu0 %v317
    %v403 = vpop.f32.mrf.mxu0
    %v404 = vadd.f32 0.0, %v403
    %405 = vmatmul.f32.gmra.mxu0 %v320
    %v406 = vpop.f32.mrf.mxu0
    %v407 = vadd.f32 0.0, %v406
    %408 = vmatmul.f32.gmra.mxu0 %v323
    %v409 = vpop.f32.mrf.mxu0
    %v410 = vadd.f32 0.0, %v409
    %411 = vdwg.mxu0
    %412 = vmatpush.msra.mxu0 0.0
    %413 = vmatpush.msra.mxu0 0.0
    %414 = vmatpush.msra.mxu0 0.0
    %415 = vmatpush.msra.mxu0 0.0
    %416 = vmatpush.msra.mxu0 0.0
    %417 = vmatpush.msra.mxu0 0.0
    %418 = vmatpush.msra.mxu0 0.0
    %419 = vmatpush.msra.mxu0 0.0
    %420 = vmatpush.msra.mxu0 0.0
    %421 = vmatpush.msra.mxu0 0.0
    %422 = vmatpush.msra.mxu0 0.0
    %423 = vmatpush.msra.mxu0 0.0
    %424 = vmatpush.msra.mxu0 %v308
    %425 = vmatpush.msra.mxu0 %v300
    %426 = vmatpush.msra.mxu0 %v292
    %427 = vmatpush.msra.mxu0 %v284
    %428 = vmatmul.f32.gmra.mxu0 %v314
    %v429 = vpop.f32.mrf.mxu0
    %v430 = vadd.f32 0.0, %v429
    %431 = vmatmul.f32.gmra.mxu0 %v317
    %v432 = vpop.f32.mrf.mxu0
    %v433 = vadd.f32 0.0, %v432
    %434 = vmatmul.f32.gmra.mxu0 %v320
    %v435 = vpop.f32.mrf.mxu0
    %v436 = vadd.f32 0.0, %v435
    %437 = vmatmul.f32.gmra.mxu0 %v323
    %v438 = vpop.f32.mrf.mxu0
    %v439 = vadd.f32 0.0, %v438
    %440 = vdwg.mxu0
    %441 = vmatpush.msra.mxu0 0.0
    %442 = vmatpush.msra.mxu0 0.0
    %443 = vmatpush.msra.mxu0 0.0
    %444 = vmatpush.msra.mxu0 0.0
    %445 = vmatpush.msra.mxu0 0.0
    %446 = vmatpush.msra.mxu0 0.0
    %447 = vmatpush.msra.mxu0 0.0
    %448 = vmatpush.msra.mxu0 0.0
    %449 = vmatpush.msra.mxu0 0.0
    %450 = vmatpush.msra.mxu0 0.0
    %451 = vmatpush.msra.mxu0 0.0
    %452 = vmatpush.msra.mxu0 0.0
    %453 = vmatpush.msra.mxu0 %v309
    %454 = vmatpush.msra.mxu0 %v301
    %455 = vmatpush.msra.mxu0 %v293
    %456 = vmatpush.msra.mxu0 %v285
    %457 = vmatmul.f32.gmra.mxu0 %v314
    %v458 = vpop.f32.mrf.mxu0
    %v459 = vadd.f32 0.0, %v458
    %460 = vmatmul.f32.gmra.mxu0 %v317
    %v461 = vpop.f32.mrf.mxu0
    %v462 = vadd.f32 0.0, %v461
    %463 = vmatmul.f32.gmra.mxu0 %v320
    %v464 = vpop.f32.mrf.mxu0
    %v465 = vadd.f32 0.0, %v464
    %466 = vmatmul.f32.gmra.mxu0 %v323
    %v467 = vpop.f32.mrf.mxu0
    %v468 = vadd.f32 0.0, %v467
    %469 = vdwg.mxu0
    %470 = vmatpush.msra.mxu0 0.0
    %471 = vmatpush.msra.mxu0 0.0
    %472 = vmatpush.msra.mxu0 0.0
    %473 = vmatpush.msra.mxu0 0.0
    %474 = vmatpush.msra.mxu0 0.0
    %475 = vmatpush.msra.mxu0 0.0
    %476 = vmatpush.msra.mxu0 0.0
    %477 = vmatpush.msra.mxu0 0.0
    %478 = vmatpush.msra.mxu0 0.0
    %479 = vmatpush.msra.mxu0 0.0
    %480 = vmatpush.msra.mxu0 0.0
    %481 = vmatpush.msra.mxu0 0.0
    %482 = vmatpush.msra.mxu0 %v310
    %483 = vmatpush.msra.mxu0 %v302
    %484 = vmatpush.msra.mxu0 %v294
    %485 = vmatpush.msra.mxu0 %v286
    %486 = vmatmul.f32.gmra.mxu0 %v314
    %v487 = vpop.f32.mrf.mxu0
    %v488 = vadd.f32 0.0, %v487
    %489 = vmatmul.f32.gmra.mxu0 %v317
    %v490 = vpop.f32.mrf.mxu0
    %v491 = vadd.f32 0.0, %v490
    %492 = vmatmul.f32.gmra.mxu0 %v320
    %v493 = vpop.f32.mrf.mxu0
    %v494 = vadd.f32 0.0, %v493
    %495 = vmatmul.f32.gmra.mxu0 %v323
    %v496 = vpop.f32.mrf.mxu0
    %v497 = vadd.f32 0.0, %v496
    %498 = vdwg.mxu0
    %499 = vmatpush.msra.mxu0 0.0
    %500 = vmatpush.msra.mxu0 0.0
    %501 = vmatpush.msra.mxu0 0.0
    %502 = vmatpush.msra.mxu0 0.0
    %503 = vmatpush.msra.mxu0 0.0
    %504 = vmatpush.msra.mxu0 0.0
    %505 = vmatpush.msra.mxu0 0.0
    %506 = vmatpush.msra.mxu0 0.0
    %507 = vmatpush.msra.mxu0 0.0
    %508 = vmatpush.msra.mxu0 0.0
    %509 = vmatpush.msra.mxu0 0.0
    %510 = vmatpush.msra.mxu0 0.0
    %511 = vmatpush.msra.mxu0 %v311
    %512 = vmatpush.msra.mxu0 %v303
    %513 = vmatpush.msra.mxu0 %v295
    %514 = vmatpush.msra.mxu0 %v287
    %515 = vmatmul.f32.gmra.mxu0 %v314
    %v516 = vpop.f32.mrf.mxu0
    %v517 = vadd.f32 0.0, %v516
    %518 = vmatmul.f32.gmra.mxu0 %v317
    %v519 = vpop.f32.mrf.mxu0
    %v520 = vadd.f32 0.0, %v519
    %521 = vmatmul.f32.gmra.mxu0 %v320
    %v522 = vpop.f32.mrf.mxu0
    %v523 = vadd.f32 0.0, %v522
    %524 = vmatmul.f32.gmra.mxu0 %v323
    %v525 = vpop.f32.mrf.mxu0
    %v526 = vadd.f32 0.0, %v525
    %527 = vdwg.mxu0
    %528 = vmatpush.msra.mxu0 0.0
    %529 = vmatpush.msra.mxu0 0.0
    %530 = vmatpush.msra.mxu0 0.0
    %531 = vmatpush.msra.mxu0 0.0
    %532 = vmatpush.msra.mxu0 0.0
    %533 = vmatpush.msra.mxu0 0.0
    %534 = vmatpush.msra.mxu0 0.0
    %535 = vmatpush.msra.mxu0 0.0
    %536 = vmatpush.msra.mxu0 0.0
    %537 = vmatpush.msra.mxu0 0.0
    %538 = vmatpush.msra.mxu0 0.0
    %539 = vmatpush.msra.mxu0 0.0
    %540 = vmatpush.msra.mxu0 %v312
    %541 = vmatpush.msra.mxu0 %v304
    %542 = vmatpush.msra.mxu0 %v296
    %543 = vmatpush.msra.mxu0 %v288
    %544 = vmatmul.f32.gmra.mxu0 %v314
    %v545 = vpop.f32.mrf.mxu0
    %v546 = vadd.f32 0.0, %v545
    %547 = vmatmul.f32.gmra.mxu0 %v317
    %v548 = vpop.f32.mrf.mxu0
    %v549 = vadd.f32 0.0, %v548
    %550 = vmatmul.f32.gmra.mxu0 %v320
    %v551 = vpop.f32.mrf.mxu0
    %v552 = vadd.f32 0.0, %v551
    %553 = vmatmul.f32.gmra.mxu0 %v323
    %v554 = vpop.f32.mrf.mxu0
    %v555 = vadd.f32 0.0, %v554
    %556 = vdwg.mxu0
    %vm557 = vcmask 64512
    %v559 = vsel %vm557, %v114, 0
    %v562 = vsel %vm557, %v115, 0
    %v565 = vsel %vm557, %v116, 0
    %v568 = vsel %vm557, %v117, 0
    %570 = vmatpush.msra.mxu0 0.0
    %571 = vmatpush.msra.mxu0 0.0
    %572 = vmatpush.msra.mxu0 0.0
    %573 = vmatpush.msra.mxu0 0.0
    %574 = vmatpush.msra.mxu0 0.0
    %575 = vmatpush.msra.mxu0 0.0
    %576 = vmatpush.msra.mxu0 0.0
    %577 = vmatpush.msra.mxu0 0.0
    %578 = vmatpush.msra.mxu0 0.0
    %579 = vmatpush.msra.mxu0 0.0
    %580 = vmatpush.msra.mxu0 0.0
    %581 = vmatpush.msra.mxu0 0.0
    %582 = vmatpush.msra.mxu0 0.0
    %583 = vmatpush.msra.mxu0 0.0
    %584 = vmatpush.msra.mxu0 0.0
    %585 = vmatpush.msra.mxu0 %v273
    %586 = vmatmul.f32.gmra.mxu0 %v559
    %v587 = vpop.f32.mrf.mxu0
    %v588 = vadd.f32 %v343, %v587
    %589 = vmatmul.f32.gmra.mxu0 %v562
    %v590 = vpop.f32.mrf.mxu0
    %v591 = vadd.f32 %v346, %v590
    %592 = vmatmul.f32.gmra.mxu0 %v565
    %v593 = vpop.f32.mrf.mxu0
    %v594 = vadd.f32 %v349, %v593
    %595 = vmatmul.f32.gmra.mxu0 %v568
    %v596 = vpop.f32.mrf.mxu0
    %v597 = vadd.f32 %v352, %v596
    %598 = vdwg.mxu0
    %599 = vmatpush.msra.mxu0 0.0
    %600 = vmatpush.msra.mxu0 0.0
    %601 = vmatpush.msra.mxu0 0.0
    %602 = vmatpush.msra.mxu0 0.0
    %603 = vmatpush.msra.mxu0 0.0
    %604 = vmatpush.msra.mxu0 0.0
    %605 = vmatpush.msra.mxu0 0.0
    %606 = vmatpush.msra.mxu0 0.0
    %607 = vmatpush.msra.mxu0 0.0
    %608 = vmatpush.msra.mxu0 0.0
    %609 = vmatpush.msra.mxu0 0.0
    %610 = vmatpush.msra.mxu0 0.0
    %611 = vmatpush.msra.mxu0 0.0
    %612 = vmatpush.msra.mxu0 0.0
    %613 = vmatpush.msra.mxu0 0.0
    %614 = vmatpush.msra.mxu0 %v274
    %615 = vmatmul.f32.gmra.mxu0 %v559
    %v616 = vpop.f32.mrf.mxu0
    %v617 = vadd.f32 %v372, %v616
    %618 = vmatmul.f32.gmra.mxu0 %v562
    %v619 = vpop.f32.mrf.mxu0
    %v620 = vadd.f32 %v375, %v619
    %621 = vmatmul.f32.gmra.mxu0 %v565
    %v622 = vpop.f32.mrf.mxu0
    %v623 = vadd.f32 %v378, %v622
    %624 = vmatmul.f32.gmra.mxu0 %v568
    %v625 = vpop.f32.mrf.mxu0
    %v626 = vadd.f32 %v381, %v625
    %627 = vdwg.mxu0
    %628 = vmatpush.msra.mxu0 0.0
    %629 = vmatpush.msra.mxu0 0.0
    %630 = vmatpush.msra.mxu0 0.0
    %631 = vmatpush.msra.mxu0 0.0
    %632 = vmatpush.msra.mxu0 0.0
    %633 = vmatpush.msra.mxu0 0.0
    %634 = vmatpush.msra.mxu0 0.0
    %635 = vmatpush.msra.mxu0 0.0
    %636 = vmatpush.msra.mxu0 0.0
    %637 = vmatpush.msra.mxu0 0.0
    %638 = vmatpush.msra.mxu0 0.0
    %639 = vmatpush.msra.mxu0 0.0
    %640 = vmatpush.msra.mxu0 0.0
    %641 = vmatpush.msra.mxu0 0.0
    %642 = vmatpush.msra.mxu0 0.0
    %643 = vmatpush.msra.mxu0 %v275
    %644 = vmatmul.f32.gmra.mxu0 %v559
    %v645 = vpop.f32.mrf.mxu0
    %v646 = vadd.f32 %v401, %v645
    %647 = vmatmul.f32.gmra.mxu0 %v562
    %v648 = vpop.f32.mrf.mxu0
    %v649 = vadd.f32 %v404, %v648
    %650 = vmatmul.f32.gmra.mxu0 %v565
    %v651 = vpop.f32.mrf.mxu0
    %v652 = vadd.f32 %v407, %v651
    %653 = vmatmul.f32.gmra.mxu0 %v568
    %v654 = vpop.f32.mrf.mxu0
    %v655 = vadd.f32 %v410, %v654
    %656 = vdwg.mxu0
    %657 = vmatpush.msra.mxu0 0.0
    %658 = vmatpush.msra.mxu0 0.0
    %659 = vmatpush.msra.mxu0 0.0
    %660 = vmatpush.msra.mxu0 0.0
    %661 = vmatpush.msra.mxu0 0.0
    %662 = vmatpush.msra.mxu0 0.0
    %663 = vmatpush.msra.mxu0 0.0
    %664 = vmatpush.msra.mxu0 0.0
    %665 = vmatpush.msra.mxu0 0.0
    %666 = vmatpush.msra.mxu0 0.0
    %667 = vmatpush.msra.mxu0 0.0
    %668 = vmatpush.msra.mxu0 0.0
    %669 = vmatpush.msra.mxu0 0.0
    %670 = vmatpush.msra.mxu0 0.0
    %671 = vmatpush.msra.mxu0 0.0
    %672 = vmatpush.msra.mxu0 %v276
    %673 = vmatmul.f32.gmra.mxu0 %v559
    %v674 = vpop.f32.mrf.mxu0
    %v675 = vadd.f32 %v430, %v674
    %676 = vmatmul.f32.gmra.mxu0 %v562
    %v677 = vpop.f32.mrf.mxu0
    %v678 = vadd.f32 %v433, %v677
    %679 = vmatmul.f32.gmra.mxu0 %v565
    %v680 = vpop.f32.mrf.mxu0
    %v681 = vadd.f32 %v436, %v680
    %682 = vmatmul.f32.gmra.mxu0 %v568
    %v683 = vpop.f32.mrf.mxu0
    %v684 = vadd.f32 %v439, %v683
    %685 = vdwg.mxu0
    %686 = vmatpush.msra.mxu0 0.0
    %687 = vmatpush.msra.mxu0 0.0
    %688 = vmatpush.msra.mxu0 0.0
    %689 = vmatpush.msra.mxu0 0.0
    %690 = vmatpush.msra.mxu0 0.0
    %691 = vmatpush.msra.mxu0 0.0
    %692 = vmatpush.msra.mxu0 0.0
    %693 = vmatpush.msra.mxu0 0.0
    %694 = vmatpush.msra.mxu0 0.0
    %695 = vmatpush.msra.mxu0 0.0
    %696 = vmatpush.msra.mxu0 0.0
    %697 = vmatpush.msra.mxu0 0.0
    %698 = vmatpush.msra.mxu0 0.0
    %699 = vmatpush.msra.mxu0 0.0
    %700 = vmatpush.msra.mxu0 0.0
    %701 = vmatpush.msra.mxu0 %v277
    %702 = vmatmul.f32.gmra.mxu0 %v559
    %v703 = vpop.f32.mrf.mxu0
    %v704 = vadd.f32 %v459, %v703
    %705 = vmatmul.f32.gmra.mxu0 %v562
    %v706 = vpop.f32.mrf.mxu0
    %v707 = vadd.f32 %v462, %v706
    %708 = vmatmul.f32.gmra.mxu0 %v565
    %v709 = vpop.f32.mrf.mxu0
    %v710 = vadd.f32 %v465, %v709
    %711 = vmatmul.f32.gmra.mxu0 %v568
    %v712 = vpop.f32.mrf.mxu0
    %v713 = vadd.f32 %v468, %v712
    %714 = vdwg.mxu0
    %715 = vmatpush.msra.mxu0 0.0
    %716 = vmatpush.msra.mxu0 0.0
    %717 = vmatpush.msra.mxu0 0.0
    %718 = vmatpush.msra.mxu0 0.0
    %719 = vmatpush.msra.mxu0 0.0
    %720 = vmatpush.msra.mxu0 0.0
    %721 = vmatpush.msra.mxu0 0.0
    %722 = vmatpush.msra.mxu0 0.0
    %723 = vmatpush.msra.mxu0 0.0
    %724 = vmatpush.msra.mxu0 0.0
    %725 = vmatpush.msra.mxu0 0.0
    %726 = vmatpush.msra.mxu0 0.0
    %727 = vmatpush.msra.mxu0 0.0
    %728 = vmatpush.msra.mxu0 0.0
    %729 = vmatpush.msra.mxu0 0.0
    %730 = vmatpush.msra.mxu0 %v278
    %731 = vmatmul.f32.gmra.mxu0 %v559
    %v732 = vpop.f32.mrf.mxu0
    %v733 = vadd.f32 %v488, %v732
    %734 = vmatmul.f32.gmra.mxu0 %v562
    %v735 = vpop.f32.mrf.mxu0
    %v736 = vadd.f32 %v491, %v735
    %737 = vmatmul.f32.gmra.mxu0 %v565
    %v738 = vpop.f32.mrf.mxu0
    %v739 = vadd.f32 %v494, %v738
    %740 = vmatmul.f32.gmra.mxu0 %v568
    %v741 = vpop.f32.mrf.mxu0
    %v742 = vadd.f32 %v497, %v741
    %743 = vdwg.mxu0
    %744 = vmatpush.msra.mxu0 0.0
    %745 = vmatpush.msra.mxu0 0.0
    %746 = vmatpush.msra.mxu0 0.0
    %747 = vmatpush.msra.mxu0 0.0
    %748 = vmatpush.msra.mxu0 0.0
    %749 = vmatpush.msra.mxu0 0.0
    %750 = vmatpush.msra.mxu0 0.0
    %751 = vmatpush.msra.mxu0 0.0
    %752 = vmatpush.msra.mxu0 0.0
    %753 = vmatpush.msra.mxu0 0.0
    %754 = vmatpush.msra.mxu0 0.0
    %755 = vmatpush.msra.mxu0 0.0
    %756 = vmatpush.msra.mxu0 0.0
    %757 = vmatpush.msra.mxu0 0.0
    %758 = vmatpush.msra.mxu0 0.0
    %759 = vmatpush.msra.mxu0 %v279
    %760 = vmatmul.f32.gmra.mxu0 %v559
    %v761 = vpop.f32.mrf.mxu0
    %v762 = vadd.f32 %v517, %v761
    %763 = vmatmul.f32.gmra.mxu0 %v562
    %v764 = vpop.f32.mrf.mxu0
    %v765 = vadd.f32 %v520, %v764
    %766 = vmatmul.f32.gmra.mxu0 %v565
    %v767 = vpop.f32.mrf.mxu0
    %v768 = vadd.f32 %v523, %v767
    %769 = vmatmul.f32.gmra.mxu0 %v568
    %v770 = vpop.f32.mrf.mxu0
    %v771 = vadd.f32 %v526, %v770
    %772 = vdwg.mxu0
    %773 = vmatpush.msra.mxu0 0.0
    %774 = vmatpush.msra.mxu0 0.0
    %775 = vmatpush.msra.mxu0 0.0
    %776 = vmatpush.msra.mxu0 0.0
    %777 = vmatpush.msra.mxu0 0.0
    %778 = vmatpush.msra.mxu0 0.0
    %779 = vmatpush.msra.mxu0 0.0
    %780 = vmatpush.msra.mxu0 0.0
    %781 = vmatpush.msra.mxu0 0.0
    %782 = vmatpush.msra.mxu0 0.0
    %783 = vmatpush.msra.mxu0 0.0
    %784 = vmatpush.msra.mxu0 0.0
    %785 = vmatpush.msra.mxu0 0.0
    %786 = vmatpush.msra.mxu0 0.0
    %787 = vmatpush.msra.mxu0 0.0
    %788 = vmatpush.msra.mxu0 %v280
    %789 = vmatmul.f32.gmra.mxu0 %v559
    %v790 = vpop.f32.mrf.mxu0
    %v791 = vadd.f32 %v546, %v790
    %792 = vmatmul.f32.gmra.mxu0 %v562
    %v793 = vpop.f32.mrf.mxu0
    %v794 = vadd.f32 %v549, %v793
    %795 = vmatmul.f32.gmra.mxu0 %v565
    %v796 = vpop.f32.mrf.mxu0
    %v797 = vadd.f32 %v552, %v796
    %798 = vmatmul.f32.gmra.mxu0 %v568
    %v799 = vpop.f32.mrf.mxu0
    %v800 = vadd.f32 %v555, %v799
    %801 = vdwg.mxu0
    %s802 = scalar_lea.vmem [#allocation5], 64
    %v803 = vld [vmem:[%s802] sm:$0xff]
    %v804 = vld [vmem:[%s802 + $0x8] sm:$0xff]
    %v805 = vld [vmem:[%s802 + $0x10] sm:$0xff]
    %v806 = vld [vmem:[%s802 + $0x18] sm:$0xff]
    %v807 = vld [vmem:[%s802 + $0x20] sm:$0xff]
    %v808 = vld [vmem:[%s802 + $0x28] sm:$0xff]
    %v809 = vld [vmem:[%s802 + $0x30] sm:$0xff]
    %v810 = vld [vmem:[%s802 + $0x38] sm:$0xff]
    %v812 = vsel %vm557, %v205, 0
    %v815 = vsel %vm557, %v208, 0
    %v818 = vsel %vm557, %v211, 0
    %v821 = vsel %vm557, %v214, 0
    %823 = vmatpush.msra.mxu0 0.0
    %824 = vmatpush.msra.mxu0 0.0
    %825 = vmatpush.msra.mxu0 0.0
    %826 = vmatpush.msra.mxu0 0.0
    %827 = vmatpush.msra.mxu0 0.0
    %828 = vmatpush.msra.mxu0 0.0
    %829 = vmatpush.msra.mxu0 0.0
    %830 = vmatpush.msra.mxu0 0.0
    %831 = vmatpush.msra.mxu0 0.0
    %832 = vmatpush.msra.mxu0 0.0
    %833 = vmatpush.msra.mxu0 0.0
    %834 = vmatpush.msra.mxu0 0.0
    %835 = vmatpush.msra.mxu0 0.0
    %836 = vmatpush.msra.mxu0 0.0
    %837 = vmatpush.msra.mxu0 0.0
    %838 = vmatpush.msra.mxu0 %v803
    %839 = vmatmul.f32.gmra.mxu0 %v812
    %v840 = vpop.f32.mrf.mxu0
    %v841 = vadd.f32 0.0, %v840
    %842 = vmatmul.f32.gmra.mxu0 %v815
    %v843 = vpop.f32.mrf.mxu0
    %v844 = vadd.f32 0.0, %v843
    %845 = vmatmul.f32.gmra.mxu0 %v818
    %v846 = vpop.f32.mrf.mxu0
    %v847 = vadd.f32 0.0, %v846
    %848 = vmatmul.f32.gmra.mxu0 %v821
    %v849 = vpop.f32.mrf.mxu0
    %v850 = vadd.f32 0.0, %v849
    %851 = vdwg.mxu0
    %852 = vmatpush.msra.mxu0 0.0
    %853 = vmatpush.msra.mxu0 0.0
    %854 = vmatpush.msra.mxu0 0.0
    %855 = vmatpush.msra.mxu0 0.0
    %856 = vmatpush.msra.mxu0 0.0
    %857 = vmatpush.msra.mxu0 0.0
    %858 = vmatpush.msra.mxu0 0.0
    %859 = vmatpush.msra.mxu0 0.0
    %860 = vmatpush.msra.mxu0 0.0
    %861 = vmatpush.msra.mxu0 0.0
    %862 = vmatpush.msra.mxu0 0.0
    %863 = vmatpush.msra.mxu0 0.0
    %864 = vmatpush.msra.mxu0 0.0
    %865 = vmatpush.msra.mxu0 0.0
    %866 = vmatpush.msra.mxu0 0.0
    %867 = vmatpush.msra.mxu0 %v804
    %868 = vmatmul.f32.gmra.mxu0 %v812
    %v869 = vpop.f32.mrf.mxu0
    %v870 = vadd.f32 0.0, %v869
    %871 = vmatmul.f32.gmra.mxu0 %v815
    %v872 = vpop.f32.mrf.mxu0
    %v873 = vadd.f32 0.0, %v872
    %874 = vmatmul.f32.gmra.mxu0 %v818
    %v875 = vpop.f32.mrf.mxu0
    %v876 = vadd.f32 0.0, %v875
    %877 = vmatmul.f32.gmra.mxu0 %v821
    %v878 = vpop.f32.mrf.mxu0
    %v879 = vadd.f32 0.0, %v878
    %880 = vdwg.mxu0
    %881 = vmatpush.msra.mxu0 0.0
    %882 = vmatpush.msra.mxu0 0.0
    %883 = vmatpush.msra.mxu0 0.0
    %884 = vmatpush.msra.mxu0 0.0
    %885 = vmatpush.msra.mxu0 0.0
    %886 = vmatpush.msra.mxu0 0.0
    %887 = vmatpush.msra.mxu0 0.0
    %888 = vmatpush.msra.mxu0 0.0
    %889 = vmatpush.msra.mxu0 0.0
    %890 = vmatpush.msra.mxu0 0.0
    %891 = vmatpush.msra.mxu0 0.0
    %892 = vmatpush.msra.mxu0 0.0
    %893 = vmatpush.msra.mxu0 0.0
    %894 = vmatpush.msra.mxu0 0.0
    %895 = vmatpush.msra.mxu0 0.0
    %896 = vmatpush.msra.mxu0 %v805
    %897 = vmatmul.f32.gmra.mxu0 %v812
    %v898 = vpop.f32.mrf.mxu0
    %v899 = vadd.f32 0.0, %v898
    %900 = vmatmul.f32.gmra.mxu0 %v815
    %v901 = vpop.f32.mrf.mxu0
    %v902 = vadd.f32 0.0, %v901
    %903 = vmatmul.f32.gmra.mxu0 %v818
    %v904 = vpop.f32.mrf.mxu0
    %v905 = vadd.f32 0.0, %v904
    %906 = vmatmul.f32.gmra.mxu0 %v821
    %v907 = vpop.f32.mrf.mxu0
    %v908 = vadd.f32 0.0, %v907
    %909 = vdwg.mxu0
    %910 = vmatpush.msra.mxu0 0.0
    %911 = vmatpush.msra.mxu0 0.0
    %912 = vmatpush.msra.mxu0 0.0
    %913 = vmatpush.msra.mxu0 0.0
    %914 = vmatpush.msra.mxu0 0.0
    %915 = vmatpush.msra.mxu0 0.0
    %916 = vmatpush.msra.mxu0 0.0
    %917 = vmatpush.msra.mxu0 0.0
    %918 = vmatpush.msra.mxu0 0.0
    %919 = vmatpush.msra.mxu0 0.0
    %920 = vmatpush.msra.mxu0 0.0
    %921 = vmatpush.msra.mxu0 0.0
    %922 = vmatpush.msra.mxu0 0.0
    %923 = vmatpush.msra.mxu0 0.0
    %924 = vmatpush.msra.mxu0 0.0
    %925 = vmatpush.msra.mxu0 %v806
    %926 = vmatmul.f32.gmra.mxu0 %v812
    %v927 = vpop.f32.mrf.mxu0
    %v928 = vadd.f32 0.0, %v927
    %929 = vmatmul.f32.gmra.mxu0 %v815
    %v930 = vpop.f32.mrf.mxu0
    %v931 = vadd.f32 0.0, %v930
    %932 = vmatmul.f32.gmra.mxu0 %v818
    %v933 = vpop.f32.mrf.mxu0
    %v934 = vadd.f32 0.0, %v933
    %935 = vmatmul.f32.gmra.mxu0 %v821
    %v936 = vpop.f32.mrf.mxu0
    %v937 = vadd.f32 0.0, %v936
    %938 = vdwg.mxu0
    %939 = vmatpush.msra.mxu0 0.0
    %940 = vmatpush.msra.mxu0 0.0
    %941 = vmatpush.msra.mxu0 0.0
    %942 = vmatpush.msra.mxu0 0.0
    %943 = vmatpush.msra.mxu0 0.0
    %944 = vmatpush.msra.mxu0 0.0
    %945 = vmatpush.msra.mxu0 0.0
    %946 = vmatpush.msra.mxu0 0.0
    %947 = vmatpush.msra.mxu0 0.0
    %948 = vmatpush.msra.mxu0 0.0
    %949 = vmatpush.msra.mxu0 0.0
    %950 = vmatpush.msra.mxu0 0.0
    %951 = vmatpush.msra.mxu0 0.0
    %952 = vmatpush.msra.mxu0 0.0
    %953 = vmatpush.msra.mxu0 0.0
    %954 = vmatpush.msra.mxu0 %v807
    %955 = vmatmul.f32.gmra.mxu0 %v812
    %v956 = vpop.f32.mrf.mxu0
    %v957 = vadd.f32 0.0, %v956
    %958 = vmatmul.f32.gmra.mxu0 %v815
    %v959 = vpop.f32.mrf.mxu0
    %v960 = vadd.f32 0.0, %v959
    %961 = vmatmul.f32.gmra.mxu0 %v818
    %v962 = vpop.f32.mrf.mxu0
    %v963 = vadd.f32 0.0, %v962
    %964 = vmatmul.f32.gmra.mxu0 %v821
    %v965 = vpop.f32.mrf.mxu0
    %v966 = vadd.f32 0.0, %v965
    %967 = vdwg.mxu0
    %968 = vmatpush.msra.mxu0 0.0
    %969 = vmatpush.msra.mxu0 0.0
    %970 = vmatpush.msra.mxu0 0.0
    %971 = vmatpush.msra.mxu0 0.0
    %972 = vmatpush.msra.mxu0 0.0
    %973 = vmatpush.msra.mxu0 0.0
    %974 = vmatpush.msra.mxu0 0.0
    %975 = vmatpush.msra.mxu0 0.0
    %976 = vmatpush.msra.mxu0 0.0
    %977 = vmatpush.msra.mxu0 0.0
    %978 = vmatpush.msra.mxu0 0.0
    %979 = vmatpush.msra.mxu0 0.0
    %980 = vmatpush.msra.mxu0 0.0
    %981 = vmatpush.msra.mxu0 0.0
    %982 = vmatpush.msra.mxu0 0.0
    %983 = vmatpush.msra.mxu0 %v808
    %984 = vmatmul.f32.gmra.mxu0 %v812
    %v985 = vpop.f32.mrf.mxu0
    %v986 = vadd.f32 0.0, %v985
    %987 = vmatmul.f32.gmra.mxu0 %v815
    %v988 = vpop.f32.mrf.mxu0
    %v989 = vadd.f32 0.0, %v988
    %990 = vmatmul.f32.gmra.mxu0 %v818
    %v991 = vpop.f32.mrf.mxu0
    %v992 = vadd.f32 0.0, %v991
    %993 = vmatmul.f32.gmra.mxu0 %v821
    %v994 = vpop.f32.mrf.mxu0
    %v995 = vadd.f32 0.0, %v994
    %996 = vdwg.mxu0
    %997 = vmatpush.msra.mxu0 0.0
    %998 = vmatpush.msra.mxu0 0.0
    %999 = vmatpush.msra.mxu0 0.0
    %1000 = vmatpush.msra.mxu0 0.0
    %1001 = vmatpush.msra.mxu0 0.0
    %1002 = vmatpush.msra.mxu0 0.0
    %1003 = vmatpush.msra.mxu0 0.0
    %1004 = vmatpush.msra.mxu0 0.0
    %1005 = vmatpush.msra.mxu0 0.0
    %1006 = vmatpush.msra.mxu0 0.0
    %1007 = vmatpush.msra.mxu0 0.0
    %1008 = vmatpush.msra.mxu0 0.0
    %1009 = vmatpush.msra.mxu0 0.0
    %1010 = vmatpush.msra.mxu0 0.0
    %1011 = vmatpush.msra.mxu0 0.0
    %1012 = vmatpush.msra.mxu0 %v809
    %1013 = vmatmul.f32.gmra.mxu0 %v812
    %v1014 = vpop.f32.mrf.mxu0
    %v1015 = vadd.f32 0.0, %v1014
    %1016 = vmatmul.f32.gmra.mxu0 %v815
    %v1017 = vpop.f32.mrf.mxu0
    %v1018 = vadd.f32 0.0, %v1017
    %1019 = vmatmul.f32.gmra.mxu0 %v818
    %v1020 = vpop.f32.mrf.mxu0
    %v1021 = vadd.f32 0.0, %v1020
    %1022 = vmatmul.f32.gmra.mxu0 %v821
    %v1023 = vpop.f32.mrf.mxu0
    %v1024 = vadd.f32 0.0, %v1023
    %1025 = vdwg.mxu0
    %1026 = vmatpush.msra.mxu0 0.0
    %1027 = vmatpush.msra.mxu0 0.0
    %1028 = vmatpush.msra.mxu0 0.0
    %1029 = vmatpush.msra.mxu0 0.0
    %1030 = vmatpush.msra.mxu0 0.0
    %1031 = vmatpush.msra.mxu0 0.0
    %1032 = vmatpush.msra.mxu0 0.0
    %1033 = vmatpush.msra.mxu0 0.0
    %1034 = vmatpush.msra.mxu0 0.0
    %1035 = vmatpush.msra.mxu0 0.0
    %1036 = vmatpush.msra.mxu0 0.0
    %1037 = vmatpush.msra.mxu0 0.0
    %1038 = vmatpush.msra.mxu0 0.0
    %1039 = vmatpush.msra.mxu0 0.0
    %1040 = vmatpush.msra.mxu0 0.0
    %1041 = vmatpush.msra.mxu0 %v810
    %1042 = vmatmul.f32.gmra.mxu0 %v812
    %v1043 = vpop.f32.mrf.mxu0
    %v1044 = vadd.f32 0.0, %v1043
    %1045 = vmatmul.f32.gmra.mxu0 %v815
    %v1046 = vpop.f32.mrf.mxu0
    %v1047 = vadd.f32 0.0, %v1046
    %1048 = vmatmul.f32.gmra.mxu0 %v818
    %v1049 = vpop.f32.mrf.mxu0
    %v1050 = vadd.f32 0.0, %v1049
    %1051 = vmatmul.f32.gmra.mxu0 %v821
    %v1052 = vpop.f32.mrf.mxu0
    %v1053 = vadd.f32 0.0, %v1052
    %1054 = vdwg.mxu0
    %v1055 = vadd.f32 %v588, %v841
    %v1056 = vadd.f32 %v617, %v870
    %v1057 = vadd.f32 %v646, %v899
    %v1058 = vadd.f32 %v675, %v928
    %v1059 = vadd.f32 %v704, %v957
    %v1060 = vadd.f32 %v733, %v986
    %v1061 = vadd.f32 %v762, %v1015
    %v1062 = vadd.f32 %v791, %v1044
    %v1063 = vadd.f32 %v591, %v844
    %v1064 = vadd.f32 %v620, %v873
    %v1065 = vadd.f32 %v649, %v902
    %v1066 = vadd.f32 %v678, %v931
    %v1067 = vadd.f32 %v707, %v960
    %v1068 = vadd.f32 %v736, %v989
    %v1069 = vadd.f32 %v765, %v1018
    %v1070 = vadd.f32 %v794, %v1047
    %v1071 = vadd.f32 %v594, %v847
    %v1072 = vadd.f32 %v623, %v876
    %v1073 = vadd.f32 %v652, %v905
    %v1074 = vadd.f32 %v681, %v934
    %v1075 = vadd.f32 %v710, %v963
    %v1076 = vadd.f32 %v739, %v992
    %v1077 = vadd.f32 %v768, %v1021
    %v1078 = vadd.f32 %v797, %v1050
    %v1079 = vadd.f32 %v597, %v850
    %v1080 = vadd.f32 %v626, %v879
    %v1081 = vadd.f32 %v655, %v908
    %v1082 = vadd.f32 %v684, %v937
    %v1083 = vadd.f32 %v713, %v966
    %v1084 = vadd.f32 %v742, %v995
    %v1085 = vadd.f32 %v771, %v1024
    %v1086 = vadd.f32 %v800, %v1053
    %s1087 = scalar_lea.vmem [#allocation7], 256
    %v1088 = vld [vmem:[%s1087] sm:$0xff]
    %v1089 = vld [vmem:[%s1087 + $0x8] sm:$0xff]
    %v1090 = vld [vmem:[%s1087 + $0x10] sm:$0xff]
    %v1091 = vld [vmem:[%s1087 + $0x18] sm:$0xff]
    %v1092 = vld [vmem:[%s1087 + $0x20] sm:$0xff]
    %v1093 = vld [vmem:[%s1087 + $0x28] sm:$0xff]
    %v1094 = vld [vmem:[%s1087 + $0x30] sm:$0xff]
    %v1095 = vld [vmem:[%s1087 + $0x38] sm:$0xff]
    %v1096 = vld [vmem:[%s1087 + $0x40] sm:$0xff]
    %v1097 = vld [vmem:[%s1087 + $0x48] sm:$0xff]
    %v1098 = vld [vmem:[%s1087 + $0x50] sm:$0xff]
    %v1099 = vld [vmem:[%s1087 + $0x58] sm:$0xff]
    %v1100 = vld [vmem:[%s1087 + $0x60] sm:$0xff]
    %v1101 = vld [vmem:[%s1087 + $0x68] sm:$0xff]
    %v1102 = vld [vmem:[%s1087 + $0x70] sm:$0xff]
    %v1103 = vld [vmem:[%s1087 + $0x78] sm:$0xff]
    %v1104 = vld [vmem:[%s1087 + $0x80] sm:$0xff]
    %v1105 = vld [vmem:[%s1087 + $0x88] sm:$0xff]
    %v1106 = vld [vmem:[%s1087 + $0x90] sm:$0xff]
    %v1107 = vld [vmem:[%s1087 + $0x98] sm:$0xff]
    %v1108 = vld [vmem:[%s1087 + $0xa0] sm:$0xff]
    %v1109 = vld [vmem:[%s1087 + $0xa8] sm:$0xff]
    %v1110 = vld [vmem:[%s1087 + $0xb0] sm:$0xff]
    %v1111 = vld [vmem:[%s1087 + $0xb8] sm:$0xff]
    %v1112 = vld [vmem:[%s1087 + $0xc0] sm:$0xff]
    %v1113 = vld [vmem:[%s1087 + $0xc8] sm:$0xff]
    %v1114 = vld [vmem:[%s1087 + $0xd0] sm:$0xff]
    %v1115 = vld [vmem:[%s1087 + $0xd8] sm:$0xff]
    %v1116 = vld [vmem:[%s1087 + $0xe0] sm:$0xff]
    %v1117 = vld [vmem:[%s1087 + $0xe8] sm:$0xff]
    %v1118 = vld [vmem:[%s1087 + $0xf0] sm:$0xff]
    %v1119 = vld [vmem:[%s1087 + $0xf8] sm:$0xff]
    %v1121 = vsel %vm162, %v246, 0
    %v1124 = vsel %vm162, %v249, 0
    %v1127 = vsel %vm162, %v252, 0
    %v1130 = vsel %vm162, %v255, 0
    %1132 = vmatpush.msra.mxu0 0.0
    %1133 = vmatpush.msra.mxu0 0.0
    %1134 = vmatpush.msra.mxu0 0.0
    %1135 = vmatpush.msra.mxu0 0.0
    %1136 = vmatpush.msra.mxu0 0.0
    %1137 = vmatpush.msra.mxu0 0.0
    %1138 = vmatpush.msra.mxu0 0.0
    %1139 = vmatpush.msra.mxu0 0.0
    %1140 = vmatpush.msra.mxu0 0.0
    %1141 = vmatpush.msra.mxu0 0.0
    %1142 = vmatpush.msra.mxu0 0.0
    %1143 = vmatpush.msra.mxu0 0.0
    %1144 = vmatpush.msra.mxu0 %v1112
    %1145 = vmatpush.msra.mxu0 %v1104
    %1146 = vmatpush.msra.mxu0 %v1096
    %1147 = vmatpush.msra.mxu0 %v1088
    %1148 = vmatmul.f32.gmra.mxu0 %v1121
    %v1149 = vpop.f32.mrf.mxu0
    %v1150 = vadd.f32 0.0, %v1149
    %1151 = vmatmul.f32.gmra.mxu0 %v1124
    %v1152 = vpop.f32.mrf.mxu0
    %v1153 = vadd.f32 0.0, %v1152
    %1154 = vmatmul.f32.gmra.mxu0 %v1127
    %v1155 = vpop.f32.mrf.mxu0
    %v1156 = vadd.f32 0.0, %v1155
    %1157 = vmatmul.f32.gmra.mxu0 %v1130
    %v1158 = vpop.f32.mrf.mxu0
    %v1159 = vadd.f32 0.0, %v1158
    %1160 = vdwg.mxu0
    %1161 = vmatpush.msra.mxu0 0.0
    %1162 = vmatpush.msra.mxu0 0.0
    %1163 = vmatpush.msra.mxu0 0.0
    %1164 = vmatpush.msra.mxu0 0.0
    %1165 = vmatpush.msra.mxu0 0.0
    %1166 = vmatpush.msra.mxu0 0.0
    %1167 = vmatpush.msra.mxu0 0.0
    %1168 = vmatpush.msra.mxu0 0.0
    %1169 = vmatpush.msra.mxu0 0.0
    %1170 = vmatpush.msra.mxu0 0.0
    %1171 = vmatpush.msra.mxu0 0.0
    %1172 = vmatpush.msra.mxu0 0.0
    %1173 = vmatpush.msra.mxu0 %v1113
    %1174 = vmatpush.msra.mxu0 %v1105
    %1175 = vmatpush.msra.mxu0 %v1097
    %1176 = vmatpush.msra.mxu0 %v1089
    %1177 = vmatmul.f32.gmra.mxu0 %v1121
    %v1178 = vpop.f32.mrf.mxu0
    %v1179 = vadd.f32 0.0, %v1178
    %1180 = vmatmul.f32.gmra.mxu0 %v1124
    %v1181 = vpop.f32.mrf.mxu0
    %v1182 = vadd.f32 0.0, %v1181
    %1183 = vmatmul.f32.gmra.mxu0 %v1127
    %v1184 = vpop.f32.mrf.mxu0
    %v1185 = vadd.f32 0.0, %v1184
    %1186 = vmatmul.f32.gmra.mxu0 %v1130
    %v1187 = vpop.f32.mrf.mxu0
    %v1188 = vadd.f32 0.0, %v1187
    %1189 = vdwg.mxu0
    %1190 = vmatpush.msra.mxu0 0.0
    %1191 = vmatpush.msra.mxu0 0.0
    %1192 = vmatpush.msra.mxu0 0.0
    %1193 = vmatpush.msra.mxu0 0.0
    %1194 = vmatpush.msra.mxu0 0.0
    %1195 = vmatpush.msra.mxu0 0.0
    %1196 = vmatpush.msra.mxu0 0.0
    %1197 = vmatpush.msra.mxu0 0.0
    %1198 = vmatpush.msra.mxu0 0.0
    %1199 = vmatpush.msra.mxu0 0.0
    %1200 = vmatpush.msra.mxu0 0.0
    %1201 = vmatpush.msra.mxu0 0.0
    %1202 = vmatpush.msra.mxu0 %v1114
    %1203 = vmatpush.msra.mxu0 %v1106
    %1204 = vmatpush.msra.mxu0 %v1098
    %1205 = vmatpush.msra.mxu0 %v1090
    %1206 = vmatmul.f32.gmra.mxu0 %v1121
    %v1207 = vpop.f32.mrf.mxu0
    %v1208 = vadd.f32 0.0, %v1207
    %1209 = vmatmul.f32.gmra.mxu0 %v1124
    %v1210 = vpop.f32.mrf.mxu0
    %v1211 = vadd.f32 0.0, %v1210
    %1212 = vmatmul.f32.gmra.mxu0 %v1127
    %v1213 = vpop.f32.mrf.mxu0
    %v1214 = vadd.f32 0.0, %v1213
    %1215 = vmatmul.f32.gmra.mxu0 %v1130
    %v1216 = vpop.f32.mrf.mxu0
    %v1217 = vadd.f32 0.0, %v1216
    %1218 = vdwg.mxu0
    %1219 = vmatpush.msra.mxu0 0.0
    %1220 = vmatpush.msra.mxu0 0.0
    %1221 = vmatpush.msra.mxu0 0.0
    %1222 = vmatpush.msra.mxu0 0.0
    %1223 = vmatpush.msra.mxu0 0.0
    %1224 = vmatpush.msra.mxu0 0.0
    %1225 = vmatpush.msra.mxu0 0.0
    %1226 = vmatpush.msra.mxu0 0.0
    %1227 = vmatpush.msra.mxu0 0.0
    %1228 = vmatpush.msra.mxu0 0.0
    %1229 = vmatpush.msra.mxu0 0.0
    %1230 = vmatpush.msra.mxu0 0.0
    %1231 = vmatpush.msra.mxu0 %v1115
    %1232 = vmatpush.msra.mxu0 %v1107
    %1233 = vmatpush.msra.mxu0 %v1099
    %1234 = vmatpush.msra.mxu0 %v1091
    %1235 = vmatmul.f32.gmra.mxu0 %v1121
    %v1236 = vpop.f32.mrf.mxu0
    %v1237 = vadd.f32 0.0, %v1236
    %1238 = vmatmul.f32.gmra.mxu0 %v1124
    %v1239 = vpop.f32.mrf.mxu0
    %v1240 = vadd.f32 0.0, %v1239
    %1241 = vmatmul.f32.gmra.mxu0 %v1127
    %v1242 = vpop.f32.mrf.mxu0
    %v1243 = vadd.f32 0.0, %v1242
    %1244 = vmatmul.f32.gmra.mxu0 %v1130
    %v1245 = vpop.f32.mrf.mxu0
    %v1246 = vadd.f32 0.0, %v1245
    %1247 = vdwg.mxu0
    %1248 = vmatpush.msra.mxu0 0.0
    %1249 = vmatpush.msra.mxu0 0.0
    %1250 = vmatpush.msra.mxu0 0.0
    %1251 = vmatpush.msra.mxu0 0.0
    %1252 = vmatpush.msra.mxu0 0.0
    %1253 = vmatpush.msra.mxu0 0.0
    %1254 = vmatpush.msra.mxu0 0.0
    %1255 = vmatpush.msra.mxu0 0.0
    %1256 = vmatpush.msra.mxu0 0.0
    %1257 = vmatpush.msra.mxu0 0.0
    %1258 = vmatpush.msra.mxu0 0.0
    %1259 = vmatpush.msra.mxu0 0.0
    %1260 = vmatpush.msra.mxu0 %v1116
    %1261 = vmatpush.msra.mxu0 %v1108
    %1262 = vmatpush.msra.mxu0 %v1100
    %1263 = vmatpush.msra.mxu0 %v1092
    %1264 = vmatmul.f32.gmra.mxu0 %v1121
    %v1265 = vpop.f32.mrf.mxu0
    %v1266 = vadd.f32 0.0, %v1265
    %1267 = vmatmul.f32.gmra.mxu0 %v1124
    %v1268 = vpop.f32.mrf.mxu0
    %v1269 = vadd.f32 0.0, %v1268
    %1270 = vmatmul.f32.gmra.mxu0 %v1127
    %v1271 = vpop.f32.mrf.mxu0
    %v1272 = vadd.f32 0.0, %v1271
    %1273 = vmatmul.f32.gmra.mxu0 %v1130
    %v1274 = vpop.f32.mrf.mxu0
    %v1275 = vadd.f32 0.0, %v1274
    %1276 = vdwg.mxu0
    %1277 = vmatpush.msra.mxu0 0.0
    %1278 = vmatpush.msra.mxu0 0.0
    %1279 = vmatpush.msra.mxu0 0.0
    %1280 = vmatpush.msra.mxu0 0.0
    %1281 = vmatpush.msra.mxu0 0.0
    %1282 = vmatpush.msra.mxu0 0.0
    %1283 = vmatpush.msra.mxu0 0.0
    %1284 = vmatpush.msra.mxu0 0.0
    %1285 = vmatpush.msra.mxu0 0.0
    %1286 = vmatpush.msra.mxu0 0.0
    %1287 = vmatpush.msra.mxu0 0.0
    %1288 = vmatpush.msra.mxu0 0.0
    %1289 = vmatpush.msra.mxu0 %v1117
    %1290 = vmatpush.msra.mxu0 %v1109
    %1291 = vmatpush.msra.mxu0 %v1101
    %1292 = vmatpush.msra.mxu0 %v1093
    %1293 = vmatmul.f32.gmra.mxu0 %v1121
    %v1294 = vpop.f32.mrf.mxu0
    %v1295 = vadd.f32 0.0, %v1294
    %1296 = vmatmul.f32.gmra.mxu0 %v1124
    %v1297 = vpop.f32.mrf.mxu0
    %v1298 = vadd.f32 0.0, %v1297
    %1299 = vmatmul.f32.gmra.mxu0 %v1127
    %v1300 = vpop.f32.mrf.mxu0
    %v1301 = vadd.f32 0.0, %v1300
    %1302 = vmatmul.f32.gmra.mxu0 %v1130
    %v1303 = vpop.f32.mrf.mxu0
    %v1304 = vadd.f32 0.0, %v1303
    %1305 = vdwg.mxu0
    %1306 = vmatpush.msra.mxu0 0.0
    %1307 = vmatpush.msra.mxu0 0.0
    %1308 = vmatpush.msra.mxu0 0.0
    %1309 = vmatpush.msra.mxu0 0.0
    %1310 = vmatpush.msra.mxu0 0.0
    %1311 = vmatpush.msra.mxu0 0.0
    %1312 = vmatpush.msra.mxu0 0.0
    %1313 = vmatpush.msra.mxu0 0.0
    %1314 = vmatpush.msra.mxu0 0.0
    %1315 = vmatpush.msra.mxu0 0.0
    %1316 = vmatpush.msra.mxu0 0.0
    %1317 = vmatpush.msra.mxu0 0.0
    %1318 = vmatpush.msra.mxu0 %v1118
    %1319 = vmatpush.msra.mxu0 %v1110
    %1320 = vmatpush.msra.mxu0 %v1102
    %1321 = vmatpush.msra.mxu0 %v1094
    %1322 = vmatmul.f32.gmra.mxu0 %v1121
    %v1323 = vpop.f32.mrf.mxu0
    %v1324 = vadd.f32 0.0, %v1323
    %1325 = vmatmul.f32.gmra.mxu0 %v1124
    %v1326 = vpop.f32.mrf.mxu0
    %v1327 = vadd.f32 0.0, %v1326
    %1328 = vmatmul.f32.gmra.mxu0 %v1127
    %v1329 = vpop.f32.mrf.mxu0
    %v1330 = vadd.f32 0.0, %v1329
    %1331 = vmatmul.f32.gmra.mxu0 %v1130
    %v1332 = vpop.f32.mrf.mxu0
    %v1333 = vadd.f32 0.0, %v1332
    %1334 = vdwg.mxu0
    %1335 = vmatpush.msra.mxu0 0.0
    %1336 = vmatpush.msra.mxu0 0.0
    %1337 = vmatpush.msra.mxu0 0.0
    %1338 = vmatpush.msra.mxu0 0.0
    %1339 = vmatpush.msra.mxu0 0.0
    %1340 = vmatpush.msra.mxu0 0.0
    %1341 = vmatpush.msra.mxu0 0.0
    %1342 = vmatpush.msra.mxu0 0.0
    %1343 = vmatpush.msra.mxu0 0.0
    %1344 = vmatpush.msra.mxu0 0.0
    %1345 = vmatpush.msra.mxu0 0.0
    %1346 = vmatpush.msra.mxu0 0.0
    %1347 = vmatpush.msra.mxu0 %v1119
    %1348 = vmatpush.msra.mxu0 %v1111
    %1349 = vmatpush.msra.mxu0 %v1103
    %1350 = vmatpush.msra.mxu0 %v1095
    %1351 = vmatmul.f32.gmra.mxu0 %v1121
    %v1352 = vpop.f32.mrf.mxu0
    %v1353 = vadd.f32 0.0, %v1352
    %1354 = vmatmul.f32.gmra.mxu0 %v1124
    %v1355 = vpop.f32.mrf.mxu0
    %v1356 = vadd.f32 0.0, %v1355
    %1357 = vmatmul.f32.gmra.mxu0 %v1127
    %v1358 = vpop.f32.mrf.mxu0
    %v1359 = vadd.f32 0.0, %v1358
    %1360 = vmatmul.f32.gmra.mxu0 %v1130
    %v1361 = vpop.f32.mrf.mxu0
    %v1362 = vadd.f32 0.0, %v1361
    %1363 = vdwg.mxu0
    %v1364 = vadd.f32 %v1055, %v1150
    %v1365 = vadd.f32 %v1056, %v1179
    %v1366 = vadd.f32 %v1057, %v1208
    %v1367 = vadd.f32 %v1058, %v1237
    %v1368 = vadd.f32 %v1059, %v1266
    %v1369 = vadd.f32 %v1060, %v1295
    %v1370 = vadd.f32 %v1061, %v1324
    %v1371 = vadd.f32 %v1062, %v1353
    %v1372 = vadd.f32 %v1063, %v1153
    %v1373 = vadd.f32 %v1064, %v1182
    %v1374 = vadd.f32 %v1065, %v1211
    %v1375 = vadd.f32 %v1066, %v1240
    %v1376 = vadd.f32 %v1067, %v1269
    %v1377 = vadd.f32 %v1068, %v1298
    %v1378 = vadd.f32 %v1069, %v1327
    %v1379 = vadd.f32 %v1070, %v1356
    %v1380 = vadd.f32 %v1071, %v1156
    %v1381 = vadd.f32 %v1072, %v1185
    %v1382 = vadd.f32 %v1073, %v1214
    %v1383 = vadd.f32 %v1074, %v1243
    %v1384 = vadd.f32 %v1075, %v1272
    %v1385 = vadd.f32 %v1076, %v1301
    %v1386 = vadd.f32 %v1077, %v1330
    %v1387 = vadd.f32 %v1078, %v1359
    %v1388 = vadd.f32 %v1079, %v1159
    %v1389 = vadd.f32 %v1080, %v1188
    %v1390 = vadd.f32 %v1081, %v1217
    %v1391 = vadd.f32 %v1082, %v1246
    %v1392 = vadd.f32 %v1083, %v1275
    %v1393 = vadd.f32 %v1084, %v1304
    %v1394 = vadd.f32 %v1085, %v1333
    %v1395 = vadd.f32 %v1086, %v1362
    %s1396 = scalar_lea.vmem [#allocation5], 128
    %v1397 = vld [vmem:[%s1396] sm:$0xff]
    %v1398 = vld [vmem:[%s1396 + $0x8] sm:$0xff]
    %v1399 = vld [vmem:[%s1396 + $0x10] sm:$0xff]
    %v1400 = vld [vmem:[%s1396 + $0x18] sm:$0xff]
    %v1401 = vld [vmem:[%s1396 + $0x20] sm:$0xff]
    %v1402 = vld [vmem:[%s1396 + $0x28] sm:$0xff]
    %v1403 = vld [vmem:[%s1396 + $0x30] sm:$0xff]
    %v1404 = vld [vmem:[%s1396 + $0x38] sm:$0xff]
    %v1406 = vsel %vm557, %v217, 0
    %v1409 = vsel %vm557, %v220, 0
    %v1412 = vsel %vm557, %v223, 0
    %v1415 = vsel %vm557, %v226, 0
    %1417 = vmatpush.msra.mxu0 0.0
    %1418 = vmatpush.msra.mxu0 0.0
    %1419 = vmatpush.msra.mxu0 0.0
    %1420 = vmatpush.msra.mxu0 0.0
    %1421 = vmatpush.msra.mxu0 0.0
    %1422 = vmatpush.msra.mxu0 0.0
    %1423 = vmatpush.msra.mxu0 0.0
    %1424 = vmatpush.msra.mxu0 0.0
    %1425 = vmatpush.msra.mxu0 0.0
    %1426 = vmatpush.msra.mxu0 0.0
    %1427 = vmatpush.msra.mxu0 0.0
    %1428 = vmatpush.msra.mxu0 0.0
    %1429 = vmatpush.msra.mxu0 0.0
    %1430 = vmatpush.msra.mxu0 0.0
    %1431 = vmatpush.msra.mxu0 0.0
    %1432 = vmatpush.msra.mxu0 %v1397
    %1433 = vmatmul.f32.gmra.mxu0 %v1406
    %v1434 = vpop.f32.mrf.mxu0
    %v1435 = vadd.f32 0.0, %v1434
    %1436 = vmatmul.f32.gmra.mxu0 %v1409
    %v1437 = vpop.f32.mrf.mxu0
    %v1438 = vadd.f32 0.0, %v1437
    %1439 = vmatmul.f32.gmra.mxu0 %v1412
    %v1440 = vpop.f32.mrf.mxu0
    %v1441 = vadd.f32 0.0, %v1440
    %1442 = vmatmul.f32.gmra.mxu0 %v1415
    %v1443 = vpop.f32.mrf.mxu0
    %v1444 = vadd.f32 0.0, %v1443
    %1445 = vdwg.mxu0
    %1446 = vmatpush.msra.mxu0 0.0
    %1447 = vmatpush.msra.mxu0 0.0
    %1448 = vmatpush.msra.mxu0 0.0
    %1449 = vmatpush.msra.mxu0 0.0
    %1450 = vmatpush.msra.mxu0 0.0
    %1451 = vmatpush.msra.mxu0 0.0
    %1452 = vmatpush.msra.mxu0 0.0
    %1453 = vmatpush.msra.mxu0 0.0
    %1454 = vmatpush.msra.mxu0 0.0
    %1455 = vmatpush.msra.mxu0 0.0
    %1456 = vmatpush.msra.mxu0 0.0
    %1457 = vmatpush.msra.mxu0 0.0
    %1458 = vmatpush.msra.mxu0 0.0
    %1459 = vmatpush.msra.mxu0 0.0
    %1460 = vmatpush.msra.mxu0 0.0
    %1461 = vmatpush.msra.mxu0 %v1398
    %1462 = vmatmul.f32.gmra.mxu0 %v1406
    %v1463 = vpop.f32.mrf.mxu0
    %v1464 = vadd.f32 0.0, %v1463
    %1465 = vmatmul.f32.gmra.mxu0 %v1409
    %v1466 = vpop.f32.mrf.mxu0
    %v1467 = vadd.f32 0.0, %v1466
    %1468 = vmatmul.f32.gmra.mxu0 %v1412
    %v1469 = vpop.f32.mrf.mxu0
    %v1470 = vadd.f32 0.0, %v1469
    %1471 = vmatmul.f32.gmra.mxu0 %v1415
    %v1472 = vpop.f32.mrf.mxu0
    %v1473 = vadd.f32 0.0, %v1472
    %1474 = vdwg.mxu0
    %1475 = vmatpush.msra.mxu0 0.0
    %1476 = vmatpush.msra.mxu0 0.0
    %1477 = vmatpush.msra.mxu0 0.0
    %1478 = vmatpush.msra.mxu0 0.0
    %1479 = vmatpush.msra.mxu0 0.0
    %1480 = vmatpush.msra.mxu0 0.0
    %1481 = vmatpush.msra.mxu0 0.0
    %1482 = vmatpush.msra.mxu0 0.0
    %1483 = vmatpush.msra.mxu0 0.0
    %1484 = vmatpush.msra.mxu0 0.0
    %1485 = vmatpush.msra.mxu0 0.0
    %1486 = vmatpush.msra.mxu0 0.0
    %1487 = vmatpush.msra.mxu0 0.0
    %1488 = vmatpush.msra.mxu0 0.0
    %1489 = vmatpush.msra.mxu0 0.0
    %1490 = vmatpush.msra.mxu0 %v1399
    %1491 = vmatmul.f32.gmra.mxu0 %v1406
    %v1492 = vpop.f32.mrf.mxu0
    %v1493 = vadd.f32 0.0, %v1492
    %1494 = vmatmul.f32.gmra.mxu0 %v1409
    %v1495 = vpop.f32.mrf.mxu0
    %v1496 = vadd.f32 0.0, %v1495
    %1497 = vmatmul.f32.gmra.mxu0 %v1412
    %v1498 = vpop.f32.mrf.mxu0
    %v1499 = vadd.f32 0.0, %v1498
    %1500 = vmatmul.f32.gmra.mxu0 %v1415
    %v1501 = vpop.f32.mrf.mxu0
    %v1502 = vadd.f32 0.0, %v1501
    %1503 = vdwg.mxu0
    %1504 = vmatpush.msra.mxu0 0.0
    %1505 = vmatpush.msra.mxu0 0.0
    %1506 = vmatpush.msra.mxu0 0.0
    %1507 = vmatpush.msra.mxu0 0.0
    %1508 = vmatpush.msra.mxu0 0.0
    %1509 = vmatpush.msra.mxu0 0.0
    %1510 = vmatpush.msra.mxu0 0.0
    %1511 = vmatpush.msra.mxu0 0.0
    %1512 = vmatpush.msra.mxu0 0.0
    %1513 = vmatpush.msra.mxu0 0.0
    %1514 = vmatpush.msra.mxu0 0.0
    %1515 = vmatpush.msra.mxu0 0.0
    %1516 = vmatpush.msra.mxu0 0.0
    %1517 = vmatpush.msra.mxu0 0.0
    %1518 = vmatpush.msra.mxu0 0.0
    %1519 = vmatpush.msra.mxu0 %v1400
    %1520 = vmatmul.f32.gmra.mxu0 %v1406
    %v1521 = vpop.f32.mrf.mxu0
    %v1522 = vadd.f32 0.0, %v1521
    %1523 = vmatmul.f32.gmra.mxu0 %v1409
    %v1524 = vpop.f32.mrf.mxu0
    %v1525 = vadd.f32 0.0, %v1524
    %1526 = vmatmul.f32.gmra.mxu0 %v1412
    %v1527 = vpop.f32.mrf.mxu0
    %v1528 = vadd.f32 0.0, %v1527
    %1529 = vmatmul.f32.gmra.mxu0 %v1415
    %v1530 = vpop.f32.mrf.mxu0
    %v1531 = vadd.f32 0.0, %v1530
    %1532 = vdwg.mxu0
    %1533 = vmatpush.msra.mxu0 0.0
    %1534 = vmatpush.msra.mxu0 0.0
    %1535 = vmatpush.msra.mxu0 0.0
    %1536 = vmatpush.msra.mxu0 0.0
    %1537 = vmatpush.msra.mxu0 0.0
    %1538 = vmatpush.msra.mxu0 0.0
    %1539 = vmatpush.msra.mxu0 0.0
    %1540 = vmatpush.msra.mxu0 0.0
    %1541 = vmatpush.msra.mxu0 0.0
    %1542 = vmatpush.msra.mxu0 0.0
    %1543 = vmatpush.msra.mxu0 0.0
    %1544 = vmatpush.msra.mxu0 0.0
    %1545 = vmatpush.msra.mxu0 0.0
    %1546 = vmatpush.msra.mxu0 0.0
    %1547 = vmatpush.msra.mxu0 0.0
    %1548 = vmatpush.msra.mxu0 %v1401
    %1549 = vmatmul.f32.gmra.mxu0 %v1406
    %v1550 = vpop.f32.mrf.mxu0
    %v1551 = vadd.f32 0.0, %v1550
    %1552 = vmatmul.f32.gmra.mxu0 %v1409
    %v1553 = vpop.f32.mrf.mxu0
    %v1554 = vadd.f32 0.0, %v1553
    %1555 = vmatmul.f32.gmra.mxu0 %v1412
    %v1556 = vpop.f32.mrf.mxu0
    %v1557 = vadd.f32 0.0, %v1556
    %1558 = vmatmul.f32.gmra.mxu0 %v1415
    %v1559 = vpop.f32.mrf.mxu0
    %v1560 = vadd.f32 0.0, %v1559
    %1561 = vdwg.mxu0
    %1562 = vmatpush.msra.mxu0 0.0
    %1563 = vmatpush.msra.mxu0 0.0
    %1564 = vmatpush.msra.mxu0 0.0
    %1565 = vmatpush.msra.mxu0 0.0
    %1566 = vmatpush.msra.mxu0 0.0
    %1567 = vmatpush.msra.mxu0 0.0
    %1568 = vmatpush.msra.mxu0 0.0
    %1569 = vmatpush.msra.mxu0 0.0
    %1570 = vmatpush.msra.mxu0 0.0
    %1571 = vmatpush.msra.mxu0 0.0
    %1572 = vmatpush.msra.mxu0 0.0
    %1573 = vmatpush.msra.mxu0 0.0
    %1574 = vmatpush.msra.mxu0 0.0
    %1575 = vmatpush.msra.mxu0 0.0
    %1576 = vmatpush.msra.mxu0 0.0
    %1577 = vmatpush.msra.mxu0 %v1402
    %1578 = vmatmul.f32.gmra.mxu0 %v1406
    %v1579 = vpop.f32.mrf.mxu0
    %v1580 = vadd.f32 0.0, %v1579
    %1581 = vmatmul.f32.gmra.mxu0 %v1409
    %v1582 = vpop.f32.mrf.mxu0
    %v1583 = vadd.f32 0.0, %v1582
    %1584 = vmatmul.f32.gmra.mxu0 %v1412
    %v1585 = vpop.f32.mrf.mxu0
    %v1586 = vadd.f32 0.0, %v1585
    %1587 = vmatmul.f32.gmra.mxu0 %v1415
    %v1588 = vpop.f32.mrf.mxu0
    %v1589 = vadd.f32 0.0, %v1588
    %1590 = vdwg.mxu0
    %1591 = vmatpush.msra.mxu0 0.0
    %1592 = vmatpush.msra.mxu0 0.0
    %1593 = vmatpush.msra.mxu0 0.0
    %1594 = vmatpush.msra.mxu0 0.0
    %1595 = vmatpush.msra.mxu0 0.0
    %1596 = vmatpush.msra.mxu0 0.0
    %1597 = vmatpush.msra.mxu0 0.0
    %1598 = vmatpush.msra.mxu0 0.0
    %1599 = vmatpush.msra.mxu0 0.0
    %1600 = vmatpush.msra.mxu0 0.0
    %1601 = vmatpush.msra.mxu0 0.0
    %1602 = vmatpush.msra.mxu0 0.0
    %1603 = vmatpush.msra.mxu0 0.0
    %1604 = vmatpush.msra.mxu0 0.0
    %1605 = vmatpush.msra.mxu0 0.0
    %1606 = vmatpush.msra.mxu0 %v1403
    %1607 = vmatmul.f32.gmra.mxu0 %v1406
    %v1608 = vpop.f32.mrf.mxu0
    %v1609 = vadd.f32 0.0, %v1608
    %1610 = vmatmul.f32.gmra.mxu0 %v1409
    %v1611 = vpop.f32.mrf.mxu0
    %v1612 = vadd.f32 0.0, %v1611
    %1613 = vmatmul.f32.gmra.mxu0 %v1412
    %v1614 = vpop.f32.mrf.mxu0
    %v1615 = vadd.f32 0.0, %v1614
    %1616 = vmatmul.f32.gmra.mxu0 %v1415
    %v1617 = vpop.f32.mrf.mxu0
    %v1618 = vadd.f32 0.0, %v1617
    %1619 = vdwg.mxu0
    %1620 = vmatpush.msra.mxu0 0.0
    %1621 = vmatpush.msra.mxu0 0.0
    %1622 = vmatpush.msra.mxu0 0.0
    %1623 = vmatpush.msra.mxu0 0.0
    %1624 = vmatpush.msra.mxu0 0.0
    %1625 = vmatpush.msra.mxu0 0.0
    %1626 = vmatpush.msra.mxu0 0.0
    %1627 = vmatpush.msra.mxu0 0.0
    %1628 = vmatpush.msra.mxu0 0.0
    %1629 = vmatpush.msra.mxu0 0.0
    %1630 = vmatpush.msra.mxu0 0.0
    %1631 = vmatpush.msra.mxu0 0.0
    %1632 = vmatpush.msra.mxu0 0.0
    %1633 = vmatpush.msra.mxu0 0.0
    %1634 = vmatpush.msra.mxu0 0.0
    %1635 = vmatpush.msra.mxu0 %v1404
    %1636 = vmatmul.f32.gmra.mxu0 %v1406
    %v1637 = vpop.f32.mrf.mxu0
    %v1638 = vadd.f32 0.0, %v1637
    %1639 = vmatmul.f32.gmra.mxu0 %v1409
    %v1640 = vpop.f32.mrf.mxu0
    %v1641 = vadd.f32 0.0, %v1640
    %1642 = vmatmul.f32.gmra.mxu0 %v1412
    %v1643 = vpop.f32.mrf.mxu0
    %v1644 = vadd.f32 0.0, %v1643
    %1645 = vmatmul.f32.gmra.mxu0 %v1415
    %v1646 = vpop.f32.mrf.mxu0
    %v1647 = vadd.f32 0.0, %v1646
    %1648 = vdwg.mxu0
    %v1649 = vadd.f32 %v1364, %v1435
    %v1650 = vadd.f32 %v1365, %v1464
    %v1651 = vadd.f32 %v1366, %v1493
    %v1652 = vadd.f32 %v1367, %v1522
    %v1653 = vadd.f32 %v1368, %v1551
    %v1654 = vadd.f32 %v1369, %v1580
    %v1655 = vadd.f32 %v1370, %v1609
    %v1656 = vadd.f32 %v1371, %v1638
    %v1657 = vadd.f32 %v1372, %v1438
    %v1658 = vadd.f32 %v1373, %v1467
    %v1659 = vadd.f32 %v1374, %v1496
    %v1660 = vadd.f32 %v1375, %v1525
    %v1661 = vadd.f32 %v1376, %v1554
    %v1662 = vadd.f32 %v1377, %v1583
    %v1663 = vadd.f32 %v1378, %v1612
    %v1664 = vadd.f32 %v1379, %v1641
    %v1665 = vadd.f32 %v1380, %v1441
    %v1666 = vadd.f32 %v1381, %v1470
    %v1667 = vadd.f32 %v1382, %v1499
    %v1668 = vadd.f32 %v1383, %v1528
    %v1669 = vadd.f32 %v1384, %v1557
    %v1670 = vadd.f32 %v1385, %v1586
    %v1671 = vadd.f32 %v1386, %v1615
    %v1672 = vadd.f32 %v1387, %v1644
    %v1673 = vadd.f32 %v1388, %v1444
    %v1674 = vadd.f32 %v1389, %v1473
    %v1675 = vadd.f32 %v1390, %v1502
    %v1676 = vadd.f32 %v1391, %v1531
    %v1677 = vadd.f32 %v1392, %v1560
    %v1678 = vadd.f32 %v1393, %v1589
    %v1679 = vadd.f32 %v1394, %v1618
    %v1680 = vadd.f32 %v1395, %v1647
    %s1681 = scalar_lea.vmem [#allocation7], 512
    %v1682 = vld [vmem:[%s1681] sm:$0xff]
    %v1683 = vld [vmem:[%s1681 + $0x8] sm:$0xff]
    %v1684 = vld [vmem:[%s1681 + $0x10] sm:$0xff]
    %v1685 = vld [vmem:[%s1681 + $0x18] sm:$0xff]
    %v1686 = vld [vmem:[%s1681 + $0x20] sm:$0xff]
    %v1687 = vld [vmem:[%s1681 + $0x28] sm:$0xff]
    %v1688 = vld [vmem:[%s1681 + $0x30] sm:$0xff]
    %v1689 = vld [vmem:[%s1681 + $0x38] sm:$0xff]
    %v1690 = vld [vmem:[%s1681 + $0x40] sm:$0xff]
    %v1691 = vld [vmem:[%s1681 + $0x48] sm:$0xff]
    %v1692 = vld [vmem:[%s1681 + $0x50] sm:$0xff]
    %v1693 = vld [vmem:[%s1681 + $0x58] sm:$0xff]
    %v1694 = vld [vmem:[%s1681 + $0x60] sm:$0xff]
    %v1695 = vld [vmem:[%s1681 + $0x68] sm:$0xff]
    %v1696 = vld [vmem:[%s1681 + $0x70] sm:$0xff]
    %v1697 = vld [vmem:[%s1681 + $0x78] sm:$0xff]
    %v1698 = vld [vmem:[%s1681 + $0x80] sm:$0xff]
    %v1699 = vld [vmem:[%s1681 + $0x88] sm:$0xff]
    %v1700 = vld [vmem:[%s1681 + $0x90] sm:$0xff]
    %v1701 = vld [vmem:[%s1681 + $0x98] sm:$0xff]
    %v1702 = vld [vmem:[%s1681 + $0xa0] sm:$0xff]
    %v1703 = vld [vmem:[%s1681 + $0xa8] sm:$0xff]
    %v1704 = vld [vmem:[%s1681 + $0xb0] sm:$0xff]
    %v1705 = vld [vmem:[%s1681 + $0xb8] sm:$0xff]
    %v1706 = vld [vmem:[%s1681 + $0xc0] sm:$0xff]
    %v1707 = vld [vmem:[%s1681 + $0xc8] sm:$0xff]
    %v1708 = vld [vmem:[%s1681 + $0xd0] sm:$0xff]
    %v1709 = vld [vmem:[%s1681 + $0xd8] sm:$0xff]
    %v1710 = vld [vmem:[%s1681 + $0xe0] sm:$0xff]
    %v1711 = vld [vmem:[%s1681 + $0xe8] sm:$0xff]
    %v1712 = vld [vmem:[%s1681 + $0xf0] sm:$0xff]
    %v1713 = vld [vmem:[%s1681 + $0xf8] sm:$0xff]
    %v1715 = vsel %vm162, %v258, 0
    %v1718 = vsel %vm162, %v261, 0
    %v1721 = vsel %vm162, %v264, 0
    %v1724 = vsel %vm162, %v267, 0
    %1726 = vmatpush.msra.mxu0 0.0
    %1727 = vmatpush.msra.mxu0 0.0
    %1728 = vmatpush.msra.mxu0 0.0
    %1729 = vmatpush.msra.mxu0 0.0
    %1730 = vmatpush.msra.mxu0 0.0
    %1731 = vmatpush.msra.mxu0 0.0
    %1732 = vmatpush.msra.mxu0 0.0
    %1733 = vmatpush.msra.mxu0 0.0
    %1734 = vmatpush.msra.mxu0 0.0
    %1735 = vmatpush.msra.mxu0 0.0
    %1736 = vmatpush.msra.mxu0 0.0
    %1737 = vmatpush.msra.mxu0 0.0
    %1738 = vmatpush.msra.mxu0 %v1706
    %1739 = vmatpush.msra.mxu0 %v1698
    %1740 = vmatpush.msra.mxu0 %v1690
    %1741 = vmatpush.msra.mxu0 %v1682
    %1742 = vmatmul.f32.gmra.mxu0 %v1715
    %v1743 = vpop.f32.mrf.mxu0
    %v1744 = vadd.f32 0.0, %v1743
    %1745 = vmatmul.f32.gmra.mxu0 %v1718
    %v1746 = vpop.f32.mrf.mxu0
    %v1747 = vadd.f32 0.0, %v1746
    %1748 = vmatmul.f32.gmra.mxu0 %v1721
    %v1749 = vpop.f32.mrf.mxu0
    %v1750 = vadd.f32 0.0, %v1749
    %1751 = vmatmul.f32.gmra.mxu0 %v1724
    %v1752 = vpop.f32.mrf.mxu0
    %v1753 = vadd.f32 0.0, %v1752
    %1754 = vdwg.mxu0
    %1755 = vmatpush.msra.mxu0 0.0
    %1756 = vmatpush.msra.mxu0 0.0
    %1757 = vmatpush.msra.mxu0 0.0
    %1758 = vmatpush.msra.mxu0 0.0
    %1759 = vmatpush.msra.mxu0 0.0
    %1760 = vmatpush.msra.mxu0 0.0
    %1761 = vmatpush.msra.mxu0 0.0
    %1762 = vmatpush.msra.mxu0 0.0
    %1763 = vmatpush.msra.mxu0 0.0
    %1764 = vmatpush.msra.mxu0 0.0
    %1765 = vmatpush.msra.mxu0 0.0
    %1766 = vmatpush.msra.mxu0 0.0
    %1767 = vmatpush.msra.mxu0 %v1707
    %1768 = vmatpush.msra.mxu0 %v1699
    %1769 = vmatpush.msra.mxu0 %v1691
    %1770 = vmatpush.msra.mxu0 %v1683
    %1771 = vmatmul.f32.gmra.mxu0 %v1715
    %v1772 = vpop.f32.mrf.mxu0
    %v1773 = vadd.f32 0.0, %v1772
    %1774 = vmatmul.f32.gmra.mxu0 %v1718
    %v1775 = vpop.f32.mrf.mxu0
    %v1776 = vadd.f32 0.0, %v1775
    %1777 = vmatmul.f32.gmra.mxu0 %v1721
    %v1778 = vpop.f32.mrf.mxu0
    %v1779 = vadd.f32 0.0, %v1778
    %1780 = vmatmul.f32.gmra.mxu0 %v1724
    %v1781 = vpop.f32.mrf.mxu0
    %v1782 = vadd.f32 0.0, %v1781
    %1783 = vdwg.mxu0
    %1784 = vmatpush.msra.mxu0 0.0
    %1785 = vmatpush.msra.mxu0 0.0
    %1786 = vmatpush.msra.mxu0 0.0
    %1787 = vmatpush.msra.mxu0 0.0
    %1788 = vmatpush.msra.mxu0 0.0
    %1789 = vmatpush.msra.mxu0 0.0
    %1790 = vmatpush.msra.mxu0 0.0
    %1791 = vmatpush.msra.mxu0 0.0
    %1792 = vmatpush.msra.mxu0 0.0
    %1793 = vmatpush.msra.mxu0 0.0
    %1794 = vmatpush.msra.mxu0 0.0
    %1795 = vmatpush.msra.mxu0 0.0
    %1796 = vmatpush.msra.mxu0 %v1708
    %1797 = vmatpush.msra.mxu0 %v1700
    %1798 = vmatpush.msra.mxu0 %v1692
    %1799 = vmatpush.msra.mxu0 %v1684
    %1800 = vmatmul.f32.gmra.mxu0 %v1715
    %v1801 = vpop.f32.mrf.mxu0
    %v1802 = vadd.f32 0.0, %v1801
    %1803 = vmatmul.f32.gmra.mxu0 %v1718
    %v1804 = vpop.f32.mrf.mxu0
    %v1805 = vadd.f32 0.0, %v1804
    %1806 = vmatmul.f32.gmra.mxu0 %v1721
    %v1807 = vpop.f32.mrf.mxu0
    %v1808 = vadd.f32 0.0, %v1807
    %1809 = vmatmul.f32.gmra.mxu0 %v1724
    %v1810 = vpop.f32.mrf.mxu0
    %v1811 = vadd.f32 0.0, %v1810
    %1812 = vdwg.mxu0
    %1813 = vmatpush.msra.mxu0 0.0
    %1814 = vmatpush.msra.mxu0 0.0
    %1815 = vmatpush.msra.mxu0 0.0
    %1816 = vmatpush.msra.mxu0 0.0
    %1817 = vmatpush.msra.mxu0 0.0
    %1818 = vmatpush.msra.mxu0 0.0
    %1819 = vmatpush.msra.mxu0 0.0
    %1820 = vmatpush.msra.mxu0 0.0
    %1821 = vmatpush.msra.mxu0 0.0
    %1822 = vmatpush.msra.mxu0 0.0
    %1823 = vmatpush.msra.mxu0 0.0
    %1824 = vmatpush.msra.mxu0 0.0
    %1825 = vmatpush.msra.mxu0 %v1709
    %1826 = vmatpush.msra.mxu0 %v1701
    %1827 = vmatpush.msra.mxu0 %v1693
    %1828 = vmatpush.msra.mxu0 %v1685
    %1829 = vmatmul.f32.gmra.mxu0 %v1715
    %v1830 = vpop.f32.mrf.mxu0
    %v1831 = vadd.f32 0.0, %v1830
    %1832 = vmatmul.f32.gmra.mxu0 %v1718
    %v1833 = vpop.f32.mrf.mxu0
    %v1834 = vadd.f32 0.0, %v1833
    %1835 = vmatmul.f32.gmra.mxu0 %v1721
    %v1836 = vpop.f32.mrf.mxu0
    %v1837 = vadd.f32 0.0, %v1836
    %1838 = vmatmul.f32.gmra.mxu0 %v1724
    %v1839 = vpop.f32.mrf.mxu0
    %v1840 = vadd.f32 0.0, %v1839
    %1841 = vdwg.mxu0
    %1842 = vmatpush.msra.mxu0 0.0
    %1843 = vmatpush.msra.mxu0 0.0
    %1844 = vmatpush.msra.mxu0 0.0
    %1845 = vmatpush.msra.mxu0 0.0
    %1846 = vmatpush.msra.mxu0 0.0
    %1847 = vmatpush.msra.mxu0 0.0
    %1848 = vmatpush.msra.mxu0 0.0
    %1849 = vmatpush.msra.mxu0 0.0
    %1850 = vmatpush.msra.mxu0 0.0
    %1851 = vmatpush.msra.mxu0 0.0
    %1852 = vmatpush.msra.mxu0 0.0
    %1853 = vmatpush.msra.mxu0 0.0
    %1854 = vmatpush.msra.mxu0 %v1710
    %1855 = vmatpush.msra.mxu0 %v1702
    %1856 = vmatpush.msra.mxu0 %v1694
    %1857 = vmatpush.msra.mxu0 %v1686
    %1858 = vmatmul.f32.gmra.mxu0 %v1715
    %v1859 = vpop.f32.mrf.mxu0
    %v1860 = vadd.f32 0.0, %v1859
    %1861 = vmatmul.f32.gmra.mxu0 %v1718
    %v1862 = vpop.f32.mrf.mxu0
    %v1863 = vadd.f32 0.0, %v1862
    %1864 = vmatmul.f32.gmra.mxu0 %v1721
    %v1865 = vpop.f32.mrf.mxu0
    %v1866 = vadd.f32 0.0, %v1865
    %1867 = vmatmul.f32.gmra.mxu0 %v1724
    %v1868 = vpop.f32.mrf.mxu0
    %v1869 = vadd.f32 0.0, %v1868
    %1870 = vdwg.mxu0
    %1871 = vmatpush.msra.mxu0 0.0
    %1872 = vmatpush.msra.mxu0 0.0
    %1873 = vmatpush.msra.mxu0 0.0
    %1874 = vmatpush.msra.mxu0 0.0
    %1875 = vmatpush.msra.mxu0 0.0
    %1876 = vmatpush.msra.mxu0 0.0
    %1877 = vmatpush.msra.mxu0 0.0
    %1878 = vmatpush.msra.mxu0 0.0
    %1879 = vmatpush.msra.mxu0 0.0
    %1880 = vmatpush.msra.mxu0 0.0
    %1881 = vmatpush.msra.mxu0 0.0
    %1882 = vmatpush.msra.mxu0 0.0
    %1883 = vmatpush.msra.mxu0 %v1711
    %1884 = vmatpush.msra.mxu0 %v1703
    %1885 = vmatpush.msra.mxu0 %v1695
    %1886 = vmatpush.msra.mxu0 %v1687
    %1887 = vmatmul.f32.gmra.mxu0 %v1715
    %v1888 = vpop.f32.mrf.mxu0
    %v1889 = vadd.f32 0.0, %v1888
    %1890 = vmatmul.f32.gmra.mxu0 %v1718
    %v1891 = vpop.f32.mrf.mxu0
    %v1892 = vadd.f32 0.0, %v1891
    %1893 = vmatmul.f32.gmra.mxu0 %v1721
    %v1894 = vpop.f32.mrf.mxu0
    %v1895 = vadd.f32 0.0, %v1894
    %1896 = vmatmul.f32.gmra.mxu0 %v1724
    %v1897 = vpop.f32.mrf.mxu0
    %v1898 = vadd.f32 0.0, %v1897
    %1899 = vdwg.mxu0
    %1900 = vmatpush.msra.mxu0 0.0
    %1901 = vmatpush.msra.mxu0 0.0
    %1902 = vmatpush.msra.mxu0 0.0
    %1903 = vmatpush.msra.mxu0 0.0
    %1904 = vmatpush.msra.mxu0 0.0
    %1905 = vmatpush.msra.mxu0 0.0
    %1906 = vmatpush.msra.mxu0 0.0
    %1907 = vmatpush.msra.mxu0 0.0
    %1908 = vmatpush.msra.mxu0 0.0
    %1909 = vmatpush.msra.mxu0 0.0
    %1910 = vmatpush.msra.mxu0 0.0
    %1911 = vmatpush.msra.mxu0 0.0
    %1912 = vmatpush.msra.mxu0 %v1712
    %1913 = vmatpush.msra.mxu0 %v1704
    %1914 = vmatpush.msra.mxu0 %v1696
    %1915 = vmatpush.msra.mxu0 %v1688
    %1916 = vmatmul.f32.gmra.mxu0 %v1715
    %v1917 = vpop.f32.mrf.mxu0
    %v1918 = vadd.f32 0.0, %v1917
    %1919 = vmatmul.f32.gmra.mxu0 %v1718
    %v1920 = vpop.f32.mrf.mxu0
    %v1921 = vadd.f32 0.0, %v1920
    %1922 = vmatmul.f32.gmra.mxu0 %v1721
    %v1923 = vpop.f32.mrf.mxu0
    %v1924 = vadd.f32 0.0, %v1923
    %1925 = vmatmul.f32.gmra.mxu0 %v1724
    %v1926 = vpop.f32.mrf.mxu0
    %v1927 = vadd.f32 0.0, %v1926
    %1928 = vdwg.mxu0
    %1929 = vmatpush.msra.mxu0 0.0
    %1930 = vmatpush.msra.mxu0 0.0
    %1931 = vmatpush.msra.mxu0 0.0
    %1932 = vmatpush.msra.mxu0 0.0
    %1933 = vmatpush.msra.mxu0 0.0
    %1934 = vmatpush.msra.mxu0 0.0
    %1935 = vmatpush.msra.mxu0 0.0
    %1936 = vmatpush.msra.mxu0 0.0
    %1937 = vmatpush.msra.mxu0 0.0
    %1938 = vmatpush.msra.mxu0 0.0
    %1939 = vmatpush.msra.mxu0 0.0
    %1940 = vmatpush.msra.mxu0 0.0
    %1941 = vmatpush.msra.mxu0 %v1713
    %1942 = vmatpush.msra.mxu0 %v1705
    %1943 = vmatpush.msra.mxu0 %v1697
    %1944 = vmatpush.msra.mxu0 %v1689
    %1945 = vmatmul.f32.gmra.mxu0 %v1715
    %v1946 = vpop.f32.mrf.mxu0
    %v1947 = vadd.f32 0.0, %v1946
    %1948 = vmatmul.f32.gmra.mxu0 %v1718
    %v1949 = vpop.f32.mrf.mxu0
    %v1950 = vadd.f32 0.0, %v1949
    %1951 = vmatmul.f32.gmra.mxu0 %v1721
    %v1952 = vpop.f32.mrf.mxu0
    %v1953 = vadd.f32 0.0, %v1952
    %1954 = vmatmul.f32.gmra.mxu0 %v1724
    %v1955 = vpop.f32.mrf.mxu0
    %v1956 = vadd.f32 0.0, %v1955
    %1957 = vdwg.mxu0
    %v1958 = vadd.f32 %v1649, %v1744
    %v1959 = vadd.f32 %v1650, %v1773
    %v1960 = vadd.f32 %v1651, %v1802
    %v1961 = vadd.f32 %v1652, %v1831
    %v1962 = vadd.f32 %v1653, %v1860
    %v1963 = vadd.f32 %v1654, %v1889
    %v1964 = vadd.f32 %v1655, %v1918
    %v1965 = vadd.f32 %v1656, %v1947
    %v1966 = vadd.f32 %v1657, %v1747
    %v1967 = vadd.f32 %v1658, %v1776
    %v1968 = vadd.f32 %v1659, %v1805
    %v1969 = vadd.f32 %v1660, %v1834
    %v1970 = vadd.f32 %v1661, %v1863
    %v1971 = vadd.f32 %v1662, %v1892
    %v1972 = vadd.f32 %v1663, %v1921
    %v1973 = vadd.f32 %v1664, %v1950
    %v1974 = vadd.f32 %v1665, %v1750
    %v1975 = vadd.f32 %v1666, %v1779
    %v1976 = vadd.f32 %v1667, %v1808
    %v1977 = vadd.f32 %v1668, %v1837
    %v1978 = vadd.f32 %v1669, %v1866
    %v1979 = vadd.f32 %v1670, %v1895
    %v1980 = vadd.f32 %v1671, %v1924
    %v1981 = vadd.f32 %v1672, %v1953
    %v1982 = vadd.f32 %v1673, %v1753
    %v1983 = vadd.f32 %v1674, %v1782
    %v1984 = vadd.f32 %v1675, %v1811
    %v1985 = vadd.f32 %v1676, %v1840
    %v1986 = vadd.f32 %v1677, %v1869
    %v1987 = vadd.f32 %v1678, %v1898
    %v1988 = vadd.f32 %v1679, %v1927
    %v1989 = vadd.f32 %v1680, %v1956
    %v1990 = vmul.f32 %v130, %v1958
    %v1991 = vmul.f32 %v131, %v1959
    %v1992 = vmul.f32 %v132, %v1960
    %v1993 = vmul.f32 %v133, %v1961
    %v1994 = vmul.f32 %v134, %v1962
    %v1995 = vmul.f32 %v135, %v1963
    %v1996 = vmul.f32 %v136, %v1964
    %v1997 = vmul.f32 %v137, %v1965
    %v1998 = vmul.f32 %v138, %v1966
    %v1999 = vmul.f32 %v139, %v1967
    %v2000 = vmul.f32 %v140, %v1968
    %v2001 = vmul.f32 %v141, %v1969
    %v2002 = vmul.f32 %v142, %v1970
    %v2003 = vmul.f32 %v143, %v1971
    %v2004 = vmul.f32 %v144, %v1972
    %v2005 = vmul.f32 %v145, %v1973
    %v2006 = vmul.f32 %v146, %v1974
    %v2007 = vmul.f32 %v147, %v1975
    %v2008 = vmul.f32 %v148, %v1976
    %v2009 = vmul.f32 %v149, %v1977
    %v2010 = vmul.f32 %v150, %v1978
    %v2011 = vmul.f32 %v151, %v1979
    %v2012 = vmul.f32 %v152, %v1980
    %v2013 = vmul.f32 %v153, %v1981
    %v2014 = vmul.f32 %v154, %v1982
    %v2015 = vmul.f32 %v155, %v1983
    %v2016 = vmul.f32 %v156, %v1984
    %v2017 = vmul.f32 %v157, %v1985
    %v2018 = vmul.f32 %v158, %v1986
    %v2019 = vmul.f32 %v159, %v1987
    %v2020 = vmul.f32 %v160, %v1988
    %v2021 = vmul.f32 %v161, %v1989
    %v2022 = vadd.f32 %v269, %v1990
    %v2023 = vadd.f32 %v270, %v1998
    %v2024 = vadd.f32 %v271, %v2006
    %v2025 = vadd.f32 %v272, %v2014
    %v2026 = vadd.f32 %v2022, %v1991
    %v2027 = vadd.f32 %v2023, %v1999
    %v2028 = vadd.f32 %v2024, %v2007
    %v2029 = vadd.f32 %v2025, %v2015
    %v2030 = vadd.f32 %v2026, %v1992
    %v2031 = vadd.f32 %v2027, %v2000
    %v2032 = vadd.f32 %v2028, %v2008
    %v2033 = vadd.f32 %v2029, %v2016
    %v2034 = vadd.f32 %v2030, %v1993
    %v2035 = vadd.f32 %v2031, %v2001
    %v2036 = vadd.f32 %v2032, %v2009
    %v2037 = vadd.f32 %v2033, %v2017
    %v2038 = vadd.f32 %v2034, %v1994
    %v2039 = vadd.f32 %v2035, %v2002
    %v2040 = vadd.f32 %v2036, %v2010
    %v2041 = vadd.f32 %v2037, %v2018
    %v2042 = vadd.f32 %v2038, %v1995
    %v2043 = vadd.f32 %v2039, %v2003
    %v2044 = vadd.f32 %v2040, %v2011
    %v2045 = vadd.f32 %v2041, %v2019
    %v2046 = vadd.f32 %v2042, %v1996
    %v2047 = vadd.f32 %v2043, %v2004
    %v2048 = vadd.f32 %v2044, %v2012
    %v2049 = vadd.f32 %v2045, %v2020
    %v2050 = vadd.f32 %v2046, %v1997
    %v2051 = vadd.f32 %v2047, %v2005
    %v2052 = vadd.f32 %v2048, %v2013
    %v2053 = vadd.f32 %v2049, %v2021
    %v2054 = vxor.u32 %v2050, 2147483648
    %v2055 = vxor.u32 %v2051, 2147483648
    %v2056 = vxor.u32 %v2052, 2147483648
    %v2057 = vxor.u32 %v2053, 2147483648
    %v2058 = vmul.f32 %v2054, 1.442695
    %v2059 = vpow.pop %v2058
    %v2060 = vmul.f32 %v2055, 1.442695
    %v2061 = vpow.pop %v2060
    %v2062 = vmul.f32 %v2056, 1.442695
    %v2063 = vpow.pop %v2062
    %v2064 = vmul.f32 %v2057, 1.442695
    %v2065 = vpow.pop %v2064
    %v2066 = vadd.f32 %v2059, 1.0
    %v2067 = vadd.f32 %v2061, 1.0
    %v2068 = vadd.f32 %v2063, 1.0
    %v2069 = vadd.f32 %v2065, 1.0
    %v2070 = vrcp.pop %v2066
    %v2071 = vmul.f32 %v2066, %v2070
    %v2072 = vsub.f32 1.0, %v2071
    %v2073 = vmul.f32 %v2070, %v2072
    %v2074 = vadd.f32 %v2070, %v2073
    %vm2075 = vweird.f32 %v2066
    %vm2076 = vweird.f32 %v2070
    %vm2077 = vmor %vm2075, %vm2076
    %v2078 = vsel %vm2077, %v2070, %v2074
    %v2079 = vand.u32 2147483647, %v2066
    %vm2080 = vcmp.eq.f32.partialorder %v2079, 8.507059e+37
    %v2081 = vand.u32 %v2066, 2147483648
    %v2082 = vor.u32 1.1754944e-38, %v2081
    %v2083 = vsel %vm2080, %v2082, %v2078
    %v2084 = vmul.f32 1.0, %v2083
    %v2085 = vrcp.pop %v2067
    %v2086 = vmul.f32 %v2067, %v2085
    %v2087 = vsub.f32 1.0, %v2086
    %v2088 = vmul.f32 %v2085, %v2087
    %v2089 = vadd.f32 %v2085, %v2088
    %vm2090 = vweird.f32 %v2067
    %vm2091 = vweird.f32 %v2085
    %vm2092 = vmor %vm2090, %vm2091
    %v2093 = vsel %vm2092, %v2085, %v2089
    %v2094 = vand.u32 2147483647, %v2067
    %vm2095 = vcmp.eq.f32.partialorder %v2094, 8.507059e+37
    %v2096 = vand.u32 %v2067, 2147483648
    %v2097 = vor.u32 1.1754944e-38, %v2096
    %v2098 = vsel %vm2095, %v2097, %v2093
    %v2099 = vmul.f32 1.0, %v2098
    %v2100 = vrcp.pop %v2068
    %v2101 = vmul.f32 %v2068, %v2100
    %v2102 = vsub.f32 1.0, %v2101
    %v2103 = vmul.f32 %v2100, %v2102
    %v2104 = vadd.f32 %v2100, %v2103
    %vm2105 = vweird.f32 %v2068
    %vm2106 = vweird.f32 %v2100
    %vm2107 = vmor %vm2105, %vm2106
    %v2108 = vsel %vm2107, %v2100, %v2104
    %v2109 = vand.u32 2147483647, %v2068
    %vm2110 = vcmp.eq.f32.partialorder %v2109, 8.507059e+37
    %v2111 = vand.u32 %v2068, 2147483648
    %v2112 = vor.u32 1.1754944e-38, %v2111
    %v2113 = vsel %vm2110, %v2112, %v2108
    %v2114 = vmul.f32 1.0, %v2113
    %v2115 = vrcp.pop %v2069
    %v2116 = vmul.f32 %v2069, %v2115
    %v2117 = vsub.f32 1.0, %v2116
    %v2118 = vmul.f32 %v2115, %v2117
    %v2119 = vadd.f32 %v2115, %v2118
    %vm2120 = vweird.f32 %v2069
    %vm2121 = vweird.f32 %v2115
    %vm2122 = vmor %vm2120, %vm2121
    %v2123 = vsel %vm2122, %v2115, %v2119
    %v2124 = vand.u32 2147483647, %v2069
    %vm2125 = vcmp.eq.f32.partialorder %v2124, 8.507059e+37
    %v2126 = vand.u32 %v2069, 2147483648
    %v2127 = vor.u32 1.1754944e-38, %v2126
    %v2128 = vsel %vm2125, %v2127, %v2123
    %v2129 = vmul.f32 1.0, %v2128
    %v2130 = vmul.f32 %v2084, %v118
    %v2131 = vmul.f32 %v2099, %v119
    %v2132 = vmul.f32 %v2114, %v120
    %v2133 = vmul.f32 %v2129, %v121
    %2134 = vmatpush.msra.mxu0 0.0
    %2135 = vmatpush.msra.mxu0 0.0
    %2136 = vmatpush.msra.mxu0 0.0
    %2137 = vmatpush.msra.mxu0 0.0
    %2138 = vmatpush.msra.mxu0 0.0
    %2139 = vmatpush.msra.mxu0 0.0
    %2140 = vmatpush.msra.mxu0 0.0
    %2141 = vmatpush.msra.mxu0 0.0
    %2142 = vmatpush.msra.mxu0 0.0
    %2143 = vmatpush.msra.mxu0 0.0
    %2144 = vmatpush.msra.mxu0 0.0
    %2145 = vmatpush.msra.mxu0 0.0
    %2146 = vmatpush.msra.mxu0 %v2133
    %2147 = vmatpush.msra.mxu0 %v2132
    %2148 = vmatpush.msra.mxu0 %v2131
    %2149 = vmatpush.msra.mxu0 %v2130
    %2150 = vmatmul.f32.gmra.mxu0 %v164
    %v2151 = vpop.f32.mrf.mxu0
    %v2152 = vadd.f32 0.0, %v2151
    %2153 = vmatmul.f32.gmra.mxu0 %v167
    %v2154 = vpop.f32.mrf.mxu0
    %v2155 = vadd.f32 0.0, %v2154
    %2156 = vmatmul.f32.gmra.mxu0 %v170
    %v2157 = vpop.f32.mrf.mxu0
    %v2158 = vadd.f32 0.0, %v2157
    %2159 = vmatmul.f32.gmra.mxu0 %v173
    %v2160 = vpop.f32.mrf.mxu0
    %v2161 = vadd.f32 0.0, %v2160
    %2162 = vmatmul.f32.gmra.mxu0 %v176
    %v2163 = vpop.f32.mrf.mxu0
    %v2164 = vadd.f32 0.0, %v2163
    %2165 = vmatmul.f32.gmra.mxu0 %v179
    %v2166 = vpop.f32.mrf.mxu0
    %v2167 = vadd.f32 0.0, %v2166
    %2168 = vmatmul.f32.gmra.mxu0 %v182
    %v2169 = vpop.f32.mrf.mxu0
    %v2170 = vadd.f32 0.0, %v2169
    %2171 = vmatmul.f32.gmra.mxu0 %v185
    %v2172 = vpop.f32.mrf.mxu0
    %v2173 = vadd.f32 0.0, %v2172
    %2174 = vdwg.mxu0
    %v2175 = vld [vmem:[%s9] sm:$0xff]
    %v2176 = vld [vmem:[%s9 + $0x8] sm:$0xff]
    %v2177 = vld [vmem:[%s9 + $0x10] sm:$0xff]
    %v2178 = vld [vmem:[%s9 + $0x18] sm:$0xff]
    %v2179 = vld [vmem:[#allocation8] sm:$0xff]
    %v2180 = vld [vmem:[#allocation8 + $0x8] sm:$0xff]
    %v2181 = vld [vmem:[#allocation8 + $0x10] sm:$0xff]
    %v2182 = vld [vmem:[#allocation8 + $0x18] sm:$0xff]
    %v2183 = vld [vmem:[#allocation8 + $0x20] sm:$0xff]
    %v2184 = vld [vmem:[#allocation8 + $0x28] sm:$0xff]
    %v2185 = vld [vmem:[#allocation8 + $0x30] sm:$0xff]
    %v2186 = vld [vmem:[#allocation8 + $0x38] sm:$0xff]
    %v2187 = vld [vmem:[#allocation10] sm:$0xff]
    %v2188 = vld [vmem:[#allocation10 + $0x8] sm:$0xff]
    %v2189 = vld [vmem:[#allocation10 + $0x10] sm:$0xff]
    %v2190 = vld [vmem:[#allocation10 + $0x18] sm:$0xff]
    %v2191 = vld [vmem:[#allocation10 + $0x20] sm:$0xff]
    %v2192 = vld [vmem:[#allocation10 + $0x28] sm:$0xff]
    %v2193 = vld [vmem:[#allocation10 + $0x30] sm:$0xff]
    %v2194 = vld [vmem:[#allocation10 + $0x38] sm:$0xff]
    %v2195 = vld [vmem:[#allocation10 + $0x40] sm:$0xff]
    %v2196 = vld [vmem:[#allocation10 + $0x48] sm:$0xff]
    %v2197 = vld [vmem:[#allocation10 + $0x50] sm:$0xff]
    %v2198 = vld [vmem:[#allocation10 + $0x58] sm:$0xff]
    %v2199 = vld [vmem:[#allocation10 + $0x60] sm:$0xff]
    %v2200 = vld [vmem:[#allocation10 + $0x68] sm:$0xff]
    %v2201 = vld [vmem:[#allocation10 + $0x70] sm:$0xff]
    %v2202 = vld [vmem:[#allocation10 + $0x78] sm:$0xff]
    %v2203 = vld [vmem:[#allocation10 + $0x80] sm:$0xff]
    %v2204 = vld [vmem:[#allocation10 + $0x88] sm:$0xff]
    %v2205 = vld [vmem:[#allocation10 + $0x90] sm:$0xff]
    %v2206 = vld [vmem:[#allocation10 + $0x98] sm:$0xff]
    %v2207 = vld [vmem:[#allocation10 + $0xa0] sm:$0xff]
    %v2208 = vld [vmem:[#allocation10 + $0xa8] sm:$0xff]
    %v2209 = vld [vmem:[#allocation10 + $0xb0] sm:$0xff]
    %v2210 = vld [vmem:[#allocation10 + $0xb8] sm:$0xff]
    %v2211 = vld [vmem:[#allocation10 + $0xc0] sm:$0xff]
    %v2212 = vld [vmem:[#allocation10 + $0xc8] sm:$0xff]
    %v2213 = vld [vmem:[#allocation10 + $0xd0] sm:$0xff]
    %v2214 = vld [vmem:[#allocation10 + $0xd8] sm:$0xff]
    %v2215 = vld [vmem:[#allocation10 + $0xe0] sm:$0xff]
    %v2216 = vld [vmem:[#allocation10 + $0xe8] sm:$0xff]
    %v2217 = vld [vmem:[#allocation10 + $0xf0] sm:$0xff]
    %v2218 = vld [vmem:[#allocation10 + $0xf8] sm:$0xff]
    %v2220 = vsel %vm162, %v2130, 0
    %v2223 = vsel %vm162, %v2131, 0
    %v2226 = vsel %vm162, %v2132, 0
    %v2229 = vsel %vm162, %v2133, 0
    %2231 = vmatpush.msra.mxu0 0.0
    %2232 = vmatpush.msra.mxu0 0.0
    %2233 = vmatpush.msra.mxu0 0.0
    %2234 = vmatpush.msra.mxu0 0.0
    %2235 = vmatpush.msra.mxu0 0.0
    %2236 = vmatpush.msra.mxu0 0.0
    %2237 = vmatpush.msra.mxu0 0.0
    %2238 = vmatpush.msra.mxu0 0.0
    %2239 = vmatpush.msra.mxu0 0.0
    %2240 = vmatpush.msra.mxu0 0.0
    %2241 = vmatpush.msra.mxu0 0.0
    %2242 = vmatpush.msra.mxu0 0.0
    %2243 = vmatpush.msra.mxu0 %v2211
    %2244 = vmatpush.msra.mxu0 %v2203
    %2245 = vmatpush.msra.mxu0 %v2195
    %2246 = vmatpush.msra.mxu0 %v2187
    %2247 = vmatmul.f32.gmra.mxu0 %v2220
    %v2248 = vpop.f32.mrf.mxu0
    %v2249 = vadd.f32 0.0, %v2248
    %2250 = vmatmul.f32.gmra.mxu0 %v2223
    %v2251 = vpop.f32.mrf.mxu0
    %v2252 = vadd.f32 0.0, %v2251
    %2253 = vmatmul.f32.gmra.mxu0 %v2226
    %v2254 = vpop.f32.mrf.mxu0
    %v2255 = vadd.f32 0.0, %v2254
    %2256 = vmatmul.f32.gmra.mxu0 %v2229
    %v2257 = vpop.f32.mrf.mxu0
    %v2258 = vadd.f32 0.0, %v2257
    %2259 = vdwg.mxu0
    %2260 = vmatpush.msra.mxu0 0.0
    %2261 = vmatpush.msra.mxu0 0.0
    %2262 = vmatpush.msra.mxu0 0.0
    %2263 = vmatpush.msra.mxu0 0.0
    %2264 = vmatpush.msra.mxu0 0.0
    %2265 = vmatpush.msra.mxu0 0.0
    %2266 = vmatpush.msra.mxu0 0.0
    %2267 = vmatpush.msra.mxu0 0.0
    %2268 = vmatpush.msra.mxu0 0.0
    %2269 = vmatpush.msra.mxu0 0.0
    %2270 = vmatpush.msra.mxu0 0.0
    %2271 = vmatpush.msra.mxu0 0.0
    %2272 = vmatpush.msra.mxu0 %v2212
    %2273 = vmatpush.msra.mxu0 %v2204
    %2274 = vmatpush.msra.mxu0 %v2196
    %2275 = vmatpush.msra.mxu0 %v2188
    %2276 = vmatmul.f32.gmra.mxu0 %v2220
    %v2277 = vpop.f32.mrf.mxu0
    %v2278 = vadd.f32 0.0, %v2277
    %2279 = vmatmul.f32.gmra.mxu0 %v2223
    %v2280 = vpop.f32.mrf.mxu0
    %v2281 = vadd.f32 0.0, %v2280
    %2282 = vmatmul.f32.gmra.mxu0 %v2226
    %v2283 = vpop.f32.mrf.mxu0
    %v2284 = vadd.f32 0.0, %v2283
    %2285 = vmatmul.f32.gmra.mxu0 %v2229
    %v2286 = vpop.f32.mrf.mxu0
    %v2287 = vadd.f32 0.0, %v2286
    %2288 = vdwg.mxu0
    %2289 = vmatpush.msra.mxu0 0.0
    %2290 = vmatpush.msra.mxu0 0.0
    %2291 = vmatpush.msra.mxu0 0.0
    %2292 = vmatpush.msra.mxu0 0.0
    %2293 = vmatpush.msra.mxu0 0.0
    %2294 = vmatpush.msra.mxu0 0.0
    %2295 = vmatpush.msra.mxu0 0.0
    %2296 = vmatpush.msra.mxu0 0.0
    %2297 = vmatpush.msra.mxu0 0.0
    %2298 = vmatpush.msra.mxu0 0.0
    %2299 = vmatpush.msra.mxu0 0.0
    %2300 = vmatpush.msra.mxu0 0.0
    %2301 = vmatpush.msra.mxu0 %v2213
    %2302 = vmatpush.msra.mxu0 %v2205
    %2303 = vmatpush.msra.mxu0 %v2197
    %2304 = vmatpush.msra.mxu0 %v2189
    %2305 = vmatmul.f32.gmra.mxu0 %v2220
    %v2306 = vpop.f32.mrf.mxu0
    %v2307 = vadd.f32 0.0, %v2306
    %2308 = vmatmul.f32.gmra.mxu0 %v2223
    %v2309 = vpop.f32.mrf.mxu0
    %v2310 = vadd.f32 0.0, %v2309
    %2311 = vmatmul.f32.gmra.mxu0 %v2226
    %v2312 = vpop.f32.mrf.mxu0
    %v2313 = vadd.f32 0.0, %v2312
    %2314 = vmatmul.f32.gmra.mxu0 %v2229
    %v2315 = vpop.f32.mrf.mxu0
    %v2316 = vadd.f32 0.0, %v2315
    %2317 = vdwg.mxu0
    %2318 = vmatpush.msra.mxu0 0.0
    %2319 = vmatpush.msra.mxu0 0.0
    %2320 = vmatpush.msra.mxu0 0.0
    %2321 = vmatpush.msra.mxu0 0.0
    %2322 = vmatpush.msra.mxu0 0.0
    %2323 = vmatpush.msra.mxu0 0.0
    %2324 = vmatpush.msra.mxu0 0.0
    %2325 = vmatpush.msra.mxu0 0.0
    %2326 = vmatpush.msra.mxu0 0.0
    %2327 = vmatpush.msra.mxu0 0.0
    %2328 = vmatpush.msra.mxu0 0.0
    %2329 = vmatpush.msra.mxu0 0.0
    %2330 = vmatpush.msra.mxu0 %v2214
    %2331 = vmatpush.msra.mxu0 %v2206
    %2332 = vmatpush.msra.mxu0 %v2198
    %2333 = vmatpush.msra.mxu0 %v2190
    %2334 = vmatmul.f32.gmra.mxu0 %v2220
    %v2335 = vpop.f32.mrf.mxu0
    %v2336 = vadd.f32 0.0, %v2335
    %2337 = vmatmul.f32.gmra.mxu0 %v2223
    %v2338 = vpop.f32.mrf.mxu0
    %v2339 = vadd.f32 0.0, %v2338
    %2340 = vmatmul.f32.gmra.mxu0 %v2226
    %v2341 = vpop.f32.mrf.mxu0
    %v2342 = vadd.f32 0.0, %v2341
    %2343 = vmatmul.f32.gmra.mxu0 %v2229
    %v2344 = vpop.f32.mrf.mxu0
    %v2345 = vadd.f32 0.0, %v2344
    %2346 = vdwg.mxu0
    %2347 = vmatpush.msra.mxu0 0.0
    %2348 = vmatpush.msra.mxu0 0.0
    %2349 = vmatpush.msra.mxu0 0.0
    %2350 = vmatpush.msra.mxu0 0.0
    %2351 = vmatpush.msra.mxu0 0.0
    %2352 = vmatpush.msra.mxu0 0.0
    %2353 = vmatpush.msra.mxu0 0.0
    %2354 = vmatpush.msra.mxu0 0.0
    %2355 = vmatpush.msra.mxu0 0.0
    %2356 = vmatpush.msra.mxu0 0.0
    %2357 = vmatpush.msra.mxu0 0.0
    %2358 = vmatpush.msra.mxu0 0.0
    %2359 = vmatpush.msra.mxu0 %v2215
    %2360 = vmatpush.msra.mxu0 %v2207
    %2361 = vmatpush.msra.mxu0 %v2199
    %2362 = vmatpush.msra.mxu0 %v2191
    %2363 = vmatmul.f32.gmra.mxu0 %v2220
    %v2364 = vpop.f32.mrf.mxu0
    %v2365 = vadd.f32 0.0, %v2364
    %2366 = vmatmul.f32.gmra.mxu0 %v2223
    %v2367 = vpop.f32.mrf.mxu0
    %v2368 = vadd.f32 0.0, %v2367
    %2369 = vmatmul.f32.gmra.mxu0 %v2226
    %v2370 = vpop.f32.mrf.mxu0
    %v2371 = vadd.f32 0.0, %v2370
    %2372 = vmatmul.f32.gmra.mxu0 %v2229
    %v2373 = vpop.f32.mrf.mxu0
    %v2374 = vadd.f32 0.0, %v2373
    %2375 = vdwg.mxu0
    %2376 = vmatpush.msra.mxu0 0.0
    %2377 = vmatpush.msra.mxu0 0.0
    %2378 = vmatpush.msra.mxu0 0.0
    %2379 = vmatpush.msra.mxu0 0.0
    %2380 = vmatpush.msra.mxu0 0.0
    %2381 = vmatpush.msra.mxu0 0.0
    %2382 = vmatpush.msra.mxu0 0.0
    %2383 = vmatpush.msra.mxu0 0.0
    %2384 = vmatpush.msra.mxu0 0.0
    %2385 = vmatpush.msra.mxu0 0.0
    %2386 = vmatpush.msra.mxu0 0.0
    %2387 = vmatpush.msra.mxu0 0.0
    %2388 = vmatpush.msra.mxu0 %v2216
    %2389 = vmatpush.msra.mxu0 %v2208
    %2390 = vmatpush.msra.mxu0 %v2200
    %2391 = vmatpush.msra.mxu0 %v2192
    %2392 = vmatmul.f32.gmra.mxu0 %v2220
    %v2393 = vpop.f32.mrf.mxu0
    %v2394 = vadd.f32 0.0, %v2393
    %2395 = vmatmul.f32.gmra.mxu0 %v2223
    %v2396 = vpop.f32.mrf.mxu0
    %v2397 = vadd.f32 0.0, %v2396
    %2398 = vmatmul.f32.gmra.mxu0 %v2226
    %v2399 = vpop.f32.mrf.mxu0
    %v2400 = vadd.f32 0.0, %v2399
    %2401 = vmatmul.f32.gmra.mxu0 %v2229
    %v2402 = vpop.f32.mrf.mxu0
    %v2403 = vadd.f32 0.0, %v2402
    %2404 = vdwg.mxu0
    %2405 = vmatpush.msra.mxu0 0.0
    %2406 = vmatpush.msra.mxu0 0.0
    %2407 = vmatpush.msra.mxu0 0.0
    %2408 = vmatpush.msra.mxu0 0.0
    %2409 = vmatpush.msra.mxu0 0.0
    %2410 = vmatpush.msra.mxu0 0.0
    %2411 = vmatpush.msra.mxu0 0.0
    %2412 = vmatpush.msra.mxu0 0.0
    %2413 = vmatpush.msra.mxu0 0.0
    %2414 = vmatpush.msra.mxu0 0.0
    %2415 = vmatpush.msra.mxu0 0.0
    %2416 = vmatpush.msra.mxu0 0.0
    %2417 = vmatpush.msra.mxu0 %v2217
    %2418 = vmatpush.msra.mxu0 %v2209
    %2419 = vmatpush.msra.mxu0 %v2201
    %2420 = vmatpush.msra.mxu0 %v2193
    %2421 = vmatmul.f32.gmra.mxu0 %v2220
    %v2422 = vpop.f32.mrf.mxu0
    %v2423 = vadd.f32 0.0, %v2422
    %2424 = vmatmul.f32.gmra.mxu0 %v2223
    %v2425 = vpop.f32.mrf.mxu0
    %v2426 = vadd.f32 0.0, %v2425
    %2427 = vmatmul.f32.gmra.mxu0 %v2226
    %v2428 = vpop.f32.mrf.mxu0
    %v2429 = vadd.f32 0.0, %v2428
    %2430 = vmatmul.f32.gmra.mxu0 %v2229
    %v2431 = vpop.f32.mrf.mxu0
    %v2432 = vadd.f32 0.0, %v2431
    %2433 = vdwg.mxu0
    %2434 = vmatpush.msra.mxu0 0.0
    %2435 = vmatpush.msra.mxu0 0.0
    %2436 = vmatpush.msra.mxu0 0.0
    %2437 = vmatpush.msra.mxu0 0.0
    %2438 = vmatpush.msra.mxu0 0.0
    %2439 = vmatpush.msra.mxu0 0.0
    %2440 = vmatpush.msra.mxu0 0.0
    %2441 = vmatpush.msra.mxu0 0.0
    %2442 = vmatpush.msra.mxu0 0.0
    %2443 = vmatpush.msra.mxu0 0.0
    %2444 = vmatpush.msra.mxu0 0.0
    %2445 = vmatpush.msra.mxu0 0.0
    %2446 = vmatpush.msra.mxu0 %v2218
    %2447 = vmatpush.msra.mxu0 %v2210
    %2448 = vmatpush.msra.mxu0 %v2202
    %2449 = vmatpush.msra.mxu0 %v2194
    %2450 = vmatmul.f32.gmra.mxu0 %v2220
    %v2451 = vpop.f32.mrf.mxu0
    %v2452 = vadd.f32 0.0, %v2451
    %2453 = vmatmul.f32.gmra.mxu0 %v2223
    %v2454 = vpop.f32.mrf.mxu0
    %v2455 = vadd.f32 0.0, %v2454
    %2456 = vmatmul.f32.gmra.mxu0 %v2226
    %v2457 = vpop.f32.mrf.mxu0
    %v2458 = vadd.f32 0.0, %v2457
    %2459 = vmatmul.f32.gmra.mxu0 %v2229
    %v2460 = vpop.f32.mrf.mxu0
    %v2461 = vadd.f32 0.0, %v2460
    %2462 = vdwg.mxu0
    %2463 = vmatpush.msra.mxu0 0.0
    %2464 = vmatpush.msra.mxu0 0.0
    %2465 = vmatpush.msra.mxu0 0.0
    %2466 = vmatpush.msra.mxu0 0.0
    %2467 = vmatpush.msra.mxu0 0.0
    %2468 = vmatpush.msra.mxu0 0.0
    %2469 = vmatpush.msra.mxu0 0.0
    %2470 = vmatpush.msra.mxu0 0.0
    %2471 = vmatpush.msra.mxu0 0.0
    %2472 = vmatpush.msra.mxu0 0.0
    %2473 = vmatpush.msra.mxu0 0.0
    %2474 = vmatpush.msra.mxu0 0.0
    %2475 = vmatpush.msra.mxu0 0.0
    %2476 = vmatpush.msra.mxu0 0.0
    %2477 = vmatpush.msra.mxu0 0.0
    %2478 = vmatpush.msra.mxu0 %v2179
    %2479 = vmatmul.f32.gmra.mxu0 %v559
    %v2480 = vpop.f32.mrf.mxu0
    %v2481 = vadd.f32 %v2249, %v2480
    %2482 = vmatmul.f32.gmra.mxu0 %v562
    %v2483 = vpop.f32.mrf.mxu0
    %v2484 = vadd.f32 %v2252, %v2483
    %2485 = vmatmul.f32.gmra.mxu0 %v565
    %v2486 = vpop.f32.mrf.mxu0
    %v2487 = vadd.f32 %v2255, %v2486
    %2488 = vmatmul.f32.gmra.mxu0 %v568
    %v2489 = vpop.f32.mrf.mxu0
    %v2490 = vadd.f32 %v2258, %v2489
    %2491 = vdwg.mxu0
    %2492 = vmatpush.msra.mxu0 0.0
    %2493 = vmatpush.msra.mxu0 0.0
    %2494 = vmatpush.msra.mxu0 0.0
    %2495 = vmatpush.msra.mxu0 0.0
    %2496 = vmatpush.msra.mxu0 0.0
    %2497 = vmatpush.msra.mxu0 0.0
    %2498 = vmatpush.msra.mxu0 0.0
    %2499 = vmatpush.msra.mxu0 0.0
    %2500 = vmatpush.msra.mxu0 0.0
    %2501 = vmatpush.msra.mxu0 0.0
    %2502 = vmatpush.msra.mxu0 0.0
    %2503 = vmatpush.msra.mxu0 0.0
    %2504 = vmatpush.msra.mxu0 0.0
    %2505 = vmatpush.msra.mxu0 0.0
    %2506 = vmatpush.msra.mxu0 0.0
    %2507 = vmatpush.msra.mxu0 %v2180
    %2508 = vmatmul.f32.gmra.mxu0 %v559
    %v2509 = vpop.f32.mrf.mxu0
    %v2510 = vadd.f32 %v2278, %v2509
    %2511 = vmatmul.f32.gmra.mxu0 %v562
    %v2512 = vpop.f32.mrf.mxu0
    %v2513 = vadd.f32 %v2281, %v2512
    %2514 = vmatmul.f32.gmra.mxu0 %v565
    %v2515 = vpop.f32.mrf.mxu0
    %v2516 = vadd.f32 %v2284, %v2515
    %2517 = vmatmul.f32.gmra.mxu0 %v568
    %v2518 = vpop.f32.mrf.mxu0
    %v2519 = vadd.f32 %v2287, %v2518
    %2520 = vdwg.mxu0
    %2521 = vmatpush.msra.mxu0 0.0
    %2522 = vmatpush.msra.mxu0 0.0
    %2523 = vmatpush.msra.mxu0 0.0
    %2524 = vmatpush.msra.mxu0 0.0
    %2525 = vmatpush.msra.mxu0 0.0
    %2526 = vmatpush.msra.mxu0 0.0
    %2527 = vmatpush.msra.mxu0 0.0
    %2528 = vmatpush.msra.mxu0 0.0
    %2529 = vmatpush.msra.mxu0 0.0
    %2530 = vmatpush.msra.mxu0 0.0
    %2531 = vmatpush.msra.mxu0 0.0
    %2532 = vmatpush.msra.mxu0 0.0
    %2533 = vmatpush.msra.mxu0 0.0
    %2534 = vmatpush.msra.mxu0 0.0
    %2535 = vmatpush.msra.mxu0 0.0
    %2536 = vmatpush.msra.mxu0 %v2181
    %2537 = vmatmul.f32.gmra.mxu0 %v559
    %v2538 = vpop.f32.mrf.mxu0
    %v2539 = vadd.f32 %v2307, %v2538
    %2540 = vmatmul.f32.gmra.mxu0 %v562
    %v2541 = vpop.f32.mrf.mxu0
    %v2542 = vadd.f32 %v2310, %v2541
    %2543 = vmatmul.f32.gmra.mxu0 %v565
    %v2544 = vpop.f32.mrf.mxu0
    %v2545 = vadd.f32 %v2313, %v2544
    %2546 = vmatmul.f32.gmra.mxu0 %v568
    %v2547 = vpop.f32.mrf.mxu0
    %v2548 = vadd.f32 %v2316, %v2547
    %2549 = vdwg.mxu0
    %2550 = vmatpush.msra.mxu0 0.0
    %2551 = vmatpush.msra.mxu0 0.0
    %2552 = vmatpush.msra.mxu0 0.0
    %2553 = vmatpush.msra.mxu0 0.0
    %2554 = vmatpush.msra.mxu0 0.0
    %2555 = vmatpush.msra.mxu0 0.0
    %2556 = vmatpush.msra.mxu0 0.0
    %2557 = vmatpush.msra.mxu0 0.0
    %2558 = vmatpush.msra.mxu0 0.0
    %2559 = vmatpush.msra.mxu0 0.0
    %2560 = vmatpush.msra.mxu0 0.0
    %2561 = vmatpush.msra.mxu0 0.0
    %2562 = vmatpush.msra.mxu0 0.0
    %2563 = vmatpush.msra.mxu0 0.0
    %2564 = vmatpush.msra.mxu0 0.0
    %2565 = vmatpush.msra.mxu0 %v2182
    %2566 = vmatmul.f32.gmra.mxu0 %v559
    %v2567 = vpop.f32.mrf.mxu0
    %v2568 = vadd.f32 %v2336, %v2567
    %2569 = vmatmul.f32.gmra.mxu0 %v562
    %v2570 = vpop.f32.mrf.mxu0
    %v2571 = vadd.f32 %v2339, %v2570
    %2572 = vmatmul.f32.gmra.mxu0 %v565
    %v2573 = vpop.f32.mrf.mxu0
    %v2574 = vadd.f32 %v2342, %v2573
    %2575 = vmatmul.f32.gmra.mxu0 %v568
    %v2576 = vpop.f32.mrf.mxu0
    %v2577 = vadd.f32 %v2345, %v2576
    %2578 = vdwg.mxu0
    %2579 = vmatpush.msra.mxu0 0.0
    %2580 = vmatpush.msra.mxu0 0.0
    %2581 = vmatpush.msra.mxu0 0.0
    %2582 = vmatpush.msra.mxu0 0.0
    %2583 = vmatpush.msra.mxu0 0.0
    %2584 = vmatpush.msra.mxu0 0.0
    %2585 = vmatpush.msra.mxu0 0.0
    %2586 = vmatpush.msra.mxu0 0.0
    %2587 = vmatpush.msra.mxu0 0.0
    %2588 = vmatpush.msra.mxu0 0.0
    %2589 = vmatpush.msra.mxu0 0.0
    %2590 = vmatpush.msra.mxu0 0.0
    %2591 = vmatpush.msra.mxu0 0.0
    %2592 = vmatpush.msra.mxu0 0.0
    %2593 = vmatpush.msra.mxu0 0.0
    %2594 = vmatpush.msra.mxu0 %v2183
    %2595 = vmatmul.f32.gmra.mxu0 %v559
    %v2596 = vpop.f32.mrf.mxu0
    %v2597 = vadd.f32 %v2365, %v2596
    %2598 = vmatmul.f32.gmra.mxu0 %v562
    %v2599 = vpop.f32.mrf.mxu0
    %v2600 = vadd.f32 %v2368, %v2599
    %2601 = vmatmul.f32.gmra.mxu0 %v565
    %v2602 = vpop.f32.mrf.mxu0
    %v2603 = vadd.f32 %v2371, %v2602
    %2604 = vmatmul.f32.gmra.mxu0 %v568
    %v2605 = vpop.f32.mrf.mxu0
    %v2606 = vadd.f32 %v2374, %v2605
    %2607 = vdwg.mxu0
    %2608 = vmatpush.msra.mxu0 0.0
    %2609 = vmatpush.msra.mxu0 0.0
    %2610 = vmatpush.msra.mxu0 0.0
    %2611 = vmatpush.msra.mxu0 0.0
    %2612 = vmatpush.msra.mxu0 0.0
    %2613 = vmatpush.msra.mxu0 0.0
    %2614 = vmatpush.msra.mxu0 0.0
    %2615 = vmatpush.msra.mxu0 0.0
    %2616 = vmatpush.msra.mxu0 0.0
    %2617 = vmatpush.msra.mxu0 0.0
    %2618 = vmatpush.msra.mxu0 0.0
    %2619 = vmatpush.msra.mxu0 0.0
    %2620 = vmatpush.msra.mxu0 0.0
    %2621 = vmatpush.msra.mxu0 0.0
    %2622 = vmatpush.msra.mxu0 0.0
    %2623 = vmatpush.msra.mxu0 %v2184
    %2624 = vmatmul.f32.gmra.mxu0 %v559
    %v2625 = vpop.f32.mrf.mxu0
    %v2626 = vadd.f32 %v2394, %v2625
    %2627 = vmatmul.f32.gmra.mxu0 %v562
    %v2628 = vpop.f32.mrf.mxu0
    %v2629 = vadd.f32 %v2397, %v2628
    %2630 = vmatmul.f32.gmra.mxu0 %v565
    %v2631 = vpop.f32.mrf.mxu0
    %v2632 = vadd.f32 %v2400, %v2631
    %2633 = vmatmul.f32.gmra.mxu0 %v568
    %v2634 = vpop.f32.mrf.mxu0
    %v2635 = vadd.f32 %v2403, %v2634
    %2636 = vdwg.mxu0
    %2637 = vmatpush.msra.mxu0 0.0
    %2638 = vmatpush.msra.mxu0 0.0
    %2639 = vmatpush.msra.mxu0 0.0
    %2640 = vmatpush.msra.mxu0 0.0
    %2641 = vmatpush.msra.mxu0 0.0
    %2642 = vmatpush.msra.mxu0 0.0
    %2643 = vmatpush.msra.mxu0 0.0
    %2644 = vmatpush.msra.mxu0 0.0
    %2645 = vmatpush.msra.mxu0 0.0
    %2646 = vmatpush.msra.mxu0 0.0
    %2647 = vmatpush.msra.mxu0 0.0
    %2648 = vmatpush.msra.mxu0 0.0
    %2649 = vmatpush.msra.mxu0 0.0
    %2650 = vmatpush.msra.mxu0 0.0
    %2651 = vmatpush.msra.mxu0 0.0
    %2652 = vmatpush.msra.mxu0 %v2185
    %2653 = vmatmul.f32.gmra.mxu0 %v559
    %v2654 = vpop.f32.mrf.mxu0
    %v2655 = vadd.f32 %v2423, %v2654
    %2656 = vmatmul.f32.gmra.mxu0 %v562
    %v2657 = vpop.f32.mrf.mxu0
    %v2658 = vadd.f32 %v2426, %v2657
    %2659 = vmatmul.f32.gmra.mxu0 %v565
    %v2660 = vpop.f32.mrf.mxu0
    %v2661 = vadd.f32 %v2429, %v2660
    %2662 = vmatmul.f32.gmra.mxu0 %v568
    %v2663 = vpop.f32.mrf.mxu0
    %v2664 = vadd.f32 %v2432, %v2663
    %2665 = vdwg.mxu0
    %2666 = vmatpush.msra.mxu0 0.0
    %2667 = vmatpush.msra.mxu0 0.0
    %2668 = vmatpush.msra.mxu0 0.0
    %2669 = vmatpush.msra.mxu0 0.0
    %2670 = vmatpush.msra.mxu0 0.0
    %2671 = vmatpush.msra.mxu0 0.0
    %2672 = vmatpush.msra.mxu0 0.0
    %2673 = vmatpush.msra.mxu0 0.0
    %2674 = vmatpush.msra.mxu0 0.0
    %2675 = vmatpush.msra.mxu0 0.0
    %2676 = vmatpush.msra.mxu0 0.0
    %2677 = vmatpush.msra.mxu0 0.0
    %2678 = vmatpush.msra.mxu0 0.0
    %2679 = vmatpush.msra.mxu0 0.0
    %2680 = vmatpush.msra.mxu0 0.0
    %2681 = vmatpush.msra.mxu0 %v2186
    %2682 = vmatmul.f32.gmra.mxu0 %v559
    %v2683 = vpop.f32.mrf.mxu0
    %v2684 = vadd.f32 %v2452, %v2683
    %2685 = vmatmul.f32.gmra.mxu0 %v562
    %v2686 = vpop.f32.mrf.mxu0
    %v2687 = vadd.f32 %v2455, %v2686
    %2688 = vmatmul.f32.gmra.mxu0 %v565
    %v2689 = vpop.f32.mrf.mxu0
    %v2690 = vadd.f32 %v2458, %v2689
    %2691 = vmatmul.f32.gmra.mxu0 %v568
    %v2692 = vpop.f32.mrf.mxu0
    %v2693 = vadd.f32 %v2461, %v2692
    %2694 = vdwg.mxu0
    %s2695 = scalar_lea.vmem [#allocation8], 64
    %v2696 = vld [vmem:[%s2695] sm:$0xff]
    %v2697 = vld [vmem:[%s2695 + $0x8] sm:$0xff]
    %v2698 = vld [vmem:[%s2695 + $0x10] sm:$0xff]
    %v2699 = vld [vmem:[%s2695 + $0x18] sm:$0xff]
    %v2700 = vld [vmem:[%s2695 + $0x20] sm:$0xff]
    %v2701 = vld [vmem:[%s2695 + $0x28] sm:$0xff]
    %v2702 = vld [vmem:[%s2695 + $0x30] sm:$0xff]
    %v2703 = vld [vmem:[%s2695 + $0x38] sm:$0xff]
    %2704 = vmatpush.msra.mxu0 0.0
    %2705 = vmatpush.msra.mxu0 0.0
    %2706 = vmatpush.msra.mxu0 0.0
    %2707 = vmatpush.msra.mxu0 0.0
    %2708 = vmatpush.msra.mxu0 0.0
    %2709 = vmatpush.msra.mxu0 0.0
    %2710 = vmatpush.msra.mxu0 0.0
    %2711 = vmatpush.msra.mxu0 0.0
    %2712 = vmatpush.msra.mxu0 0.0
    %2713 = vmatpush.msra.mxu0 0.0
    %2714 = vmatpush.msra.mxu0 0.0
    %2715 = vmatpush.msra.mxu0 0.0
    %2716 = vmatpush.msra.mxu0 0.0
    %2717 = vmatpush.msra.mxu0 0.0
    %2718 = vmatpush.msra.mxu0 0.0
    %2719 = vmatpush.msra.mxu0 %v2696
    %2720 = vmatmul.f32.gmra.mxu0 %v812
    %v2721 = vpop.f32.mrf.mxu0
    %v2722 = vadd.f32 0.0, %v2721
    %2723 = vmatmul.f32.gmra.mxu0 %v815
    %v2724 = vpop.f32.mrf.mxu0
    %v2725 = vadd.f32 0.0, %v2724
    %2726 = vmatmul.f32.gmra.mxu0 %v818
    %v2727 = vpop.f32.mrf.mxu0
    %v2728 = vadd.f32 0.0, %v2727
    %2729 = vmatmul.f32.gmra.mxu0 %v821
    %v2730 = vpop.f32.mrf.mxu0
    %v2731 = vadd.f32 0.0, %v2730
    %2732 = vdwg.mxu0
    %2733 = vmatpush.msra.mxu0 0.0
    %2734 = vmatpush.msra.mxu0 0.0
    %2735 = vmatpush.msra.mxu0 0.0
    %2736 = vmatpush.msra.mxu0 0.0
    %2737 = vmatpush.msra.mxu0 0.0
    %2738 = vmatpush.msra.mxu0 0.0
    %2739 = vmatpush.msra.mxu0 0.0
    %2740 = vmatpush.msra.mxu0 0.0
    %2741 = vmatpush.msra.mxu0 0.0
    %2742 = vmatpush.msra.mxu0 0.0
    %2743 = vmatpush.msra.mxu0 0.0
    %2744 = vmatpush.msra.mxu0 0.0
    %2745 = vmatpush.msra.mxu0 0.0
    %2746 = vmatpush.msra.mxu0 0.0
    %2747 = vmatpush.msra.mxu0 0.0
    %2748 = vmatpush.msra.mxu0 %v2697
    %2749 = vmatmul.f32.gmra.mxu0 %v812
    %v2750 = vpop.f32.mrf.mxu0
    %v2751 = vadd.f32 0.0, %v2750
    %2752 = vmatmul.f32.gmra.mxu0 %v815
    %v2753 = vpop.f32.mrf.mxu0
    %v2754 = vadd.f32 0.0, %v2753
    %2755 = vmatmul.f32.gmra.mxu0 %v818
    %v2756 = vpop.f32.mrf.mxu0
    %v2757 = vadd.f32 0.0, %v2756
    %2758 = vmatmul.f32.gmra.mxu0 %v821
    %v2759 = vpop.f32.mrf.mxu0
    %v2760 = vadd.f32 0.0, %v2759
    %2761 = vdwg.mxu0
    %2762 = vmatpush.msra.mxu0 0.0
    %2763 = vmatpush.msra.mxu0 0.0
    %2764 = vmatpush.msra.mxu0 0.0
    %2765 = vmatpush.msra.mxu0 0.0
    %2766 = vmatpush.msra.mxu0 0.0
    %2767 = vmatpush.msra.mxu0 0.0
    %2768 = vmatpush.msra.mxu0 0.0
    %2769 = vmatpush.msra.mxu0 0.0
    %2770 = vmatpush.msra.mxu0 0.0
    %2771 = vmatpush.msra.mxu0 0.0
    %2772 = vmatpush.msra.mxu0 0.0
    %2773 = vmatpush.msra.mxu0 0.0
    %2774 = vmatpush.msra.mxu0 0.0
    %2775 = vmatpush.msra.mxu0 0.0
    %2776 = vmatpush.msra.mxu0 0.0
    %2777 = vmatpush.msra.mxu0 %v2698
    %2778 = vmatmul.f32.gmra.mxu0 %v812
    %v2779 = vpop.f32.mrf.mxu0
    %v2780 = vadd.f32 0.0, %v2779
    %2781 = vmatmul.f32.gmra.mxu0 %v815
    %v2782 = vpop.f32.mrf.mxu0
    %v2783 = vadd.f32 0.0, %v2782
    %2784 = vmatmul.f32.gmra.mxu0 %v818
    %v2785 = vpop.f32.mrf.mxu0
    %v2786 = vadd.f32 0.0, %v2785
    %2787 = vmatmul.f32.gmra.mxu0 %v821
    %v2788 = vpop.f32.mrf.mxu0
    %v2789 = vadd.f32 0.0, %v2788
    %2790 = vdwg.mxu0
    %2791 = vmatpush.msra.mxu0 0.0
    %2792 = vmatpush.msra.mxu0 0.0
    %2793 = vmatpush.msra.mxu0 0.0
    %2794 = vmatpush.msra.mxu0 0.0
    %2795 = vmatpush.msra.mxu0 0.0
    %2796 = vmatpush.msra.mxu0 0.0
    %2797 = vmatpush.msra.mxu0 0.0
    %2798 = vmatpush.msra.mxu0 0.0
    %2799 = vmatpush.msra.mxu0 0.0
    %2800 = vmatpush.msra.mxu0 0.0
    %2801 = vmatpush.msra.mxu0 0.0
    %2802 = vmatpush.msra.mxu0 0.0
    %2803 = vmatpush.msra.mxu0 0.0
    %2804 = vmatpush.msra.mxu0 0.0
    %2805 = vmatpush.msra.mxu0 0.0
    %2806 = vmatpush.msra.mxu0 %v2699
    %2807 = vmatmul.f32.gmra.mxu0 %v812
    %v2808 = vpop.f32.mrf.mxu0
    %v2809 = vadd.f32 0.0, %v2808
    %2810 = vmatmul.f32.gmra.mxu0 %v815
    %v2811 = vpop.f32.mrf.mxu0
    %v2812 = vadd.f32 0.0, %v2811
    %2813 = vmatmul.f32.gmra.mxu0 %v818
    %v2814 = vpop.f32.mrf.mxu0
    %v2815 = vadd.f32 0.0, %v2814
    %2816 = vmatmul.f32.gmra.mxu0 %v821
    %v2817 = vpop.f32.mrf.mxu0
    %v2818 = vadd.f32 0.0, %v2817
    %2819 = vdwg.mxu0
    %2820 = vmatpush.msra.mxu0 0.0
    %2821 = vmatpush.msra.mxu0 0.0
    %2822 = vmatpush.msra.mxu0 0.0
    %2823 = vmatpush.msra.mxu0 0.0
    %2824 = vmatpush.msra.mxu0 0.0
    %2825 = vmatpush.msra.mxu0 0.0
    %2826 = vmatpush.msra.mxu0 0.0
    %2827 = vmatpush.msra.mxu0 0.0
    %2828 = vmatpush.msra.mxu0 0.0
    %2829 = vmatpush.msra.mxu0 0.0
    %2830 = vmatpush.msra.mxu0 0.0
    %2831 = vmatpush.msra.mxu0 0.0
    %2832 = vmatpush.msra.mxu0 0.0
    %2833 = vmatpush.msra.mxu0 0.0
    %2834 = vmatpush.msra.mxu0 0.0
    %2835 = vmatpush.msra.mxu0 %v2700
    %2836 = vmatmul.f32.gmra.mxu0 %v812
    %v2837 = vpop.f32.mrf.mxu0
    %v2838 = vadd.f32 0.0, %v2837
    %2839 = vmatmul.f32.gmra.mxu0 %v815
    %v2840 = vpop.f32.mrf.mxu0
    %v2841 = vadd.f32 0.0, %v2840
    %2842 = vmatmul.f32.gmra.mxu0 %v818
    %v2843 = vpop.f32.mrf.mxu0
    %v2844 = vadd.f32 0.0, %v2843
    %2845 = vmatmul.f32.gmra.mxu0 %v821
    %v2846 = vpop.f32.mrf.mxu0
    %v2847 = vadd.f32 0.0, %v2846
    %2848 = vdwg.mxu0
    %2849 = vmatpush.msra.mxu0 0.0
    %2850 = vmatpush.msra.mxu0 0.0
    %2851 = vmatpush.msra.mxu0 0.0
    %2852 = vmatpush.msra.mxu0 0.0
    %2853 = vmatpush.msra.mxu0 0.0
    %2854 = vmatpush.msra.mxu0 0.0
    %2855 = vmatpush.msra.mxu0 0.0
    %2856 = vmatpush.msra.mxu0 0.0
    %2857 = vmatpush.msra.mxu0 0.0
    %2858 = vmatpush.msra.mxu0 0.0
    %2859 = vmatpush.msra.mxu0 0.0
    %2860 = vmatpush.msra.mxu0 0.0
    %2861 = vmatpush.msra.mxu0 0.0
    %2862 = vmatpush.msra.mxu0 0.0
    %2863 = vmatpush.msra.mxu0 0.0
    %2864 = vmatpush.msra.mxu0 %v2701
    %2865 = vmatmul.f32.gmra.mxu0 %v812
    %v2866 = vpop.f32.mrf.mxu0
    %v2867 = vadd.f32 0.0, %v2866
    %2868 = vmatmul.f32.gmra.mxu0 %v815
    %v2869 = vpop.f32.mrf.mxu0
    %v2870 = vadd.f32 0.0, %v2869
    %2871 = vmatmul.f32.gmra.mxu0 %v818
    %v2872 = vpop.f32.mrf.mxu0
    %v2873 = vadd.f32 0.0, %v2872
    %2874 = vmatmul.f32.gmra.mxu0 %v821
    %v2875 = vpop.f32.mrf.mxu0
    %v2876 = vadd.f32 0.0, %v2875
    %2877 = vdwg.mxu0
    %2878 = vmatpush.msra.mxu0 0.0
    %2879 = vmatpush.msra.mxu0 0.0
    %2880 = vmatpush.msra.mxu0 0.0
    %2881 = vmatpush.msra.mxu0 0.0
    %2882 = vmatpush.msra.mxu0 0.0
    %2883 = vmatpush.msra.mxu0 0.0
    %2884 = vmatpush.msra.mxu0 0.0
    %2885 = vmatpush.msra.mxu0 0.0
    %2886 = vmatpush.msra.mxu0 0.0
    %2887 = vmatpush.msra.mxu0 0.0
    %2888 = vmatpush.msra.mxu0 0.0
    %2889 = vmatpush.msra.mxu0 0.0
    %2890 = vmatpush.msra.mxu0 0.0
    %2891 = vmatpush.msra.mxu0 0.0
    %2892 = vmatpush.msra.mxu0 0.0
    %2893 = vmatpush.msra.mxu0 %v2702
    %2894 = vmatmul.f32.gmra.mxu0 %v812
    %v2895 = vpop.f32.mrf.mxu0
    %v2896 = vadd.f32 0.0, %v2895
    %2897 = vmatmul.f32.gmra.mxu0 %v815
    %v2898 = vpop.f32.mrf.mxu0
    %v2899 = vadd.f32 0.0, %v2898
    %2900 = vmatmul.f32.gmra.mxu0 %v818
    %v2901 = vpop.f32.mrf.mxu0
    %v2902 = vadd.f32 0.0, %v2901
    %2903 = vmatmul.f32.gmra.mxu0 %v821
    %v2904 = vpop.f32.mrf.mxu0
    %v2905 = vadd.f32 0.0, %v2904
    %2906 = vdwg.mxu0
    %2907 = vmatpush.msra.mxu0 0.0
    %2908 = vmatpush.msra.mxu0 0.0
    %2909 = vmatpush.msra.mxu0 0.0
    %2910 = vmatpush.msra.mxu0 0.0
    %2911 = vmatpush.msra.mxu0 0.0
    %2912 = vmatpush.msra.mxu0 0.0
    %2913 = vmatpush.msra.mxu0 0.0
    %2914 = vmatpush.msra.mxu0 0.0
    %2915 = vmatpush.msra.mxu0 0.0
    %2916 = vmatpush.msra.mxu0 0.0
    %2917 = vmatpush.msra.mxu0 0.0
    %2918 = vmatpush.msra.mxu0 0.0
    %2919 = vmatpush.msra.mxu0 0.0
    %2920 = vmatpush.msra.mxu0 0.0
    %2921 = vmatpush.msra.mxu0 0.0
    %2922 = vmatpush.msra.mxu0 %v2703
    %2923 = vmatmul.f32.gmra.mxu0 %v812
    %v2924 = vpop.f32.mrf.mxu0
    %v2925 = vadd.f32 0.0, %v2924
    %2926 = vmatmul.f32.gmra.mxu0 %v815
    %v2927 = vpop.f32.mrf.mxu0
    %v2928 = vadd.f32 0.0, %v2927
    %2929 = vmatmul.f32.gmra.mxu0 %v818
    %v2930 = vpop.f32.mrf.mxu0
    %v2931 = vadd.f32 0.0, %v2930
    %2932 = vmatmul.f32.gmra.mxu0 %v821
    %v2933 = vpop.f32.mrf.mxu0
    %v2934 = vadd.f32 0.0, %v2933
    %2935 = vdwg.mxu0
    %v2936 = vadd.f32 %v2481, %v2722
    %v2937 = vadd.f32 %v2510, %v2751
    %v2938 = vadd.f32 %v2539, %v2780
    %v2939 = vadd.f32 %v2568, %v2809
    %v2940 = vadd.f32 %v2597, %v2838
    %v2941 = vadd.f32 %v2626, %v2867
    %v2942 = vadd.f32 %v2655, %v2896
    %v2943 = vadd.f32 %v2684, %v2925
    %v2944 = vadd.f32 %v2484, %v2725
    %v2945 = vadd.f32 %v2513, %v2754
    %v2946 = vadd.f32 %v2542, %v2783
    %v2947 = vadd.f32 %v2571, %v2812
    %v2948 = vadd.f32 %v2600, %v2841
    %v2949 = vadd.f32 %v2629, %v2870
    %v2950 = vadd.f32 %v2658, %v2899
    %v2951 = vadd.f32 %v2687, %v2928
    %v2952 = vadd.f32 %v2487, %v2728
    %v2953 = vadd.f32 %v2516, %v2757
    %v2954 = vadd.f32 %v2545, %v2786
    %v2955 = vadd.f32 %v2574, %v2815
    %v2956 = vadd.f32 %v2603, %v2844
    %v2957 = vadd.f32 %v2632, %v2873
    %v2958 = vadd.f32 %v2661, %v2902
    %v2959 = vadd.f32 %v2690, %v2931
    %v2960 = vadd.f32 %v2490, %v2731
    %v2961 = vadd.f32 %v2519, %v2760
    %v2962 = vadd.f32 %v2548, %v2789
    %v2963 = vadd.f32 %v2577, %v2818
    %v2964 = vadd.f32 %v2606, %v2847
    %v2965 = vadd.f32 %v2635, %v2876
    %v2966 = vadd.f32 %v2664, %v2905
    %v2967 = vadd.f32 %v2693, %v2934
    %s2968 = scalar_lea.vmem [#allocation10], 256
    %v2969 = vld [vmem:[%s2968] sm:$0xff]
    %v2970 = vld [vmem:[%s2968 + $0x8] sm:$0xff]
    %v2971 = vld [vmem:[%s2968 + $0x10] sm:$0xff]
    %v2972 = vld [vmem:[%s2968 + $0x18] sm:$0xff]
    %v2973 = vld [vmem:[%s2968 + $0x20] sm:$0xff]
    %v2974 = vld [vmem:[%s2968 + $0x28] sm:$0xff]
    %v2975 = vld [vmem:[%s2968 + $0x30] sm:$0xff]
    %v2976 = vld [vmem:[%s2968 + $0x38] sm:$0xff]
    %v2977 = vld [vmem:[%s2968 + $0x40] sm:$0xff]
    %v2978 = vld [vmem:[%s2968 + $0x48] sm:$0xff]
    %v2979 = vld [vmem:[%s2968 + $0x50] sm:$0xff]
    %v2980 = vld [vmem:[%s2968 + $0x58] sm:$0xff]
    %v2981 = vld [vmem:[%s2968 + $0x60] sm:$0xff]
    %v2982 = vld [vmem:[%s2968 + $0x68] sm:$0xff]
    %v2983 = vld [vmem:[%s2968 + $0x70] sm:$0xff]
    %v2984 = vld [vmem:[%s2968 + $0x78] sm:$0xff]
    %v2985 = vld [vmem:[%s2968 + $0x80] sm:$0xff]
    %v2986 = vld [vmem:[%s2968 + $0x88] sm:$0xff]
    %v2987 = vld [vmem:[%s2968 + $0x90] sm:$0xff]
    %v2988 = vld [vmem:[%s2968 + $0x98] sm:$0xff]
    %v2989 = vld [vmem:[%s2968 + $0xa0] sm:$0xff]
    %v2990 = vld [vmem:[%s2968 + $0xa8] sm:$0xff]
    %v2991 = vld [vmem:[%s2968 + $0xb0] sm:$0xff]
    %v2992 = vld [vmem:[%s2968 + $0xb8] sm:$0xff]
    %v2993 = vld [vmem:[%s2968 + $0xc0] sm:$0xff]
    %v2994 = vld [vmem:[%s2968 + $0xc8] sm:$0xff]
    %v2995 = vld [vmem:[%s2968 + $0xd0] sm:$0xff]
    %v2996 = vld [vmem:[%s2968 + $0xd8] sm:$0xff]
    %v2997 = vld [vmem:[%s2968 + $0xe0] sm:$0xff]
    %v2998 = vld [vmem:[%s2968 + $0xe8] sm:$0xff]
    %v2999 = vld [vmem:[%s2968 + $0xf0] sm:$0xff]
    %v3000 = vld [vmem:[%s2968 + $0xf8] sm:$0xff]
    %v3002 = vsel %vm162, %v2152, 0
    %v3005 = vsel %vm162, %v2155, 0
    %v3008 = vsel %vm162, %v2158, 0
    %v3011 = vsel %vm162, %v2161, 0
    %3013 = vmatpush.msra.mxu0 0.0
    %3014 = vmatpush.msra.mxu0 0.0
    %3015 = vmatpush.msra.mxu0 0.0
    %3016 = vmatpush.msra.mxu0 0.0
    %3017 = vmatpush.msra.mxu0 0.0
    %3018 = vmatpush.msra.mxu0 0.0
    %3019 = vmatpush.msra.mxu0 0.0
    %3020 = vmatpush.msra.mxu0 0.0
    %3021 = vmatpush.msra.mxu0 0.0
    %3022 = vmatpush.msra.mxu0 0.0
    %3023 = vmatpush.msra.mxu0 0.0
    %3024 = vmatpush.msra.mxu0 0.0
    %3025 = vmatpush.msra.mxu0 %v2993
    %3026 = vmatpush.msra.mxu0 %v2985
    %3027 = vmatpush.msra.mxu0 %v2977
    %3028 = vmatpush.msra.mxu0 %v2969
    %3029 = vmatmul.f32.gmra.mxu0 %v3002
    %v3030 = vpop.f32.mrf.mxu0
    %v3031 = vadd.f32 0.0, %v3030
    %3032 = vmatmul.f32.gmra.mxu0 %v3005
    %v3033 = vpop.f32.mrf.mxu0
    %v3034 = vadd.f32 0.0, %v3033
    %3035 = vmatmul.f32.gmra.mxu0 %v3008
    %v3036 = vpop.f32.mrf.mxu0
    %v3037 = vadd.f32 0.0, %v3036
    %3038 = vmatmul.f32.gmra.mxu0 %v3011
    %v3039 = vpop.f32.mrf.mxu0
    %v3040 = vadd.f32 0.0, %v3039
    %3041 = vdwg.mxu0
    %3042 = vmatpush.msra.mxu0 0.0
    %3043 = vmatpush.msra.mxu0 0.0
    %3044 = vmatpush.msra.mxu0 0.0
    %3045 = vmatpush.msra.mxu0 0.0
    %3046 = vmatpush.msra.mxu0 0.0
    %3047 = vmatpush.msra.mxu0 0.0
    %3048 = vmatpush.msra.mxu0 0.0
    %3049 = vmatpush.msra.mxu0 0.0
    %3050 = vmatpush.msra.mxu0 0.0
    %3051 = vmatpush.msra.mxu0 0.0
    %3052 = vmatpush.msra.mxu0 0.0
    %3053 = vmatpush.msra.mxu0 0.0
    %3054 = vmatpush.msra.mxu0 %v2994
    %3055 = vmatpush.msra.mxu0 %v2986
    %3056 = vmatpush.msra.mxu0 %v2978
    %3057 = vmatpush.msra.mxu0 %v2970
    %3058 = vmatmul.f32.gmra.mxu0 %v3002
    %v3059 = vpop.f32.mrf.mxu0
    %v3060 = vadd.f32 0.0, %v3059
    %3061 = vmatmul.f32.gmra.mxu0 %v3005
    %v3062 = vpop.f32.mrf.mxu0
    %v3063 = vadd.f32 0.0, %v3062
    %3064 = vmatmul.f32.gmra.mxu0 %v3008
    %v3065 = vpop.f32.mrf.mxu0
    %v3066 = vadd.f32 0.0, %v3065
    %3067 = vmatmul.f32.gmra.mxu0 %v3011
    %v3068 = vpop.f32.mrf.mxu0
    %v3069 = vadd.f32 0.0, %v3068
    %3070 = vdwg.mxu0
    %3071 = vmatpush.msra.mxu0 0.0
    %3072 = vmatpush.msra.mxu0 0.0
    %3073 = vmatpush.msra.mxu0 0.0
    %3074 = vmatpush.msra.mxu0 0.0
    %3075 = vmatpush.msra.mxu0 0.0
    %3076 = vmatpush.msra.mxu0 0.0
    %3077 = vmatpush.msra.mxu0 0.0
    %3078 = vmatpush.msra.mxu0 0.0
    %3079 = vmatpush.msra.mxu0 0.0
    %3080 = vmatpush.msra.mxu0 0.0
    %3081 = vmatpush.msra.mxu0 0.0
    %3082 = vmatpush.msra.mxu0 0.0
    %3083 = vmatpush.msra.mxu0 %v2995
    %3084 = vmatpush.msra.mxu0 %v2987
    %3085 = vmatpush.msra.mxu0 %v2979
    %3086 = vmatpush.msra.mxu0 %v2971
    %3087 = vmatmul.f32.gmra.mxu0 %v3002
    %v3088 = vpop.f32.mrf.mxu0
    %v3089 = vadd.f32 0.0, %v3088
    %3090 = vmatmul.f32.gmra.mxu0 %v3005
    %v3091 = vpop.f32.mrf.mxu0
    %v3092 = vadd.f32 0.0, %v3091
    %3093 = vmatmul.f32.gmra.mxu0 %v3008
    %v3094 = vpop.f32.mrf.mxu0
    %v3095 = vadd.f32 0.0, %v3094
    %3096 = vmatmul.f32.gmra.mxu0 %v3011
    %v3097 = vpop.f32.mrf.mxu0
    %v3098 = vadd.f32 0.0, %v3097
    %3099 = vdwg.mxu0
    %3100 = vmatpush.msra.mxu0 0.0
    %3101 = vmatpush.msra.mxu0 0.0
    %3102 = vmatpush.msra.mxu0 0.0
    %3103 = vmatpush.msra.mxu0 0.0
    %3104 = vmatpush.msra.mxu0 0.0
    %3105 = vmatpush.msra.mxu0 0.0
    %3106 = vmatpush.msra.mxu0 0.0
    %3107 = vmatpush.msra.mxu0 0.0
    %3108 = vmatpush.msra.mxu0 0.0
    %3109 = vmatpush.msra.mxu0 0.0
    %3110 = vmatpush.msra.mxu0 0.0
    %3111 = vmatpush.msra.mxu0 0.0
    %3112 = vmatpush.msra.mxu0 %v2996
    %3113 = vmatpush.msra.mxu0 %v2988
    %3114 = vmatpush.msra.mxu0 %v2980
    %3115 = vmatpush.msra.mxu0 %v2972
    %3116 = vmatmul.f32.gmra.mxu0 %v3002
    %v3117 = vpop.f32.mrf.mxu0
    %v3118 = vadd.f32 0.0, %v3117
    %3119 = vmatmul.f32.gmra.mxu0 %v3005
    %v3120 = vpop.f32.mrf.mxu0
    %v3121 = vadd.f32 0.0, %v3120
    %3122 = vmatmul.f32.gmra.mxu0 %v3008
    %v3123 = vpop.f32.mrf.mxu0
    %v3124 = vadd.f32 0.0, %v3123
    %3125 = vmatmul.f32.gmra.mxu0 %v3011
    %v3126 = vpop.f32.mrf.mxu0
    %v3127 = vadd.f32 0.0, %v3126
    %3128 = vdwg.mxu0
    %3129 = vmatpush.msra.mxu0 0.0
    %3130 = vmatpush.msra.mxu0 0.0
    %3131 = vmatpush.msra.mxu0 0.0
    %3132 = vmatpush.msra.mxu0 0.0
    %3133 = vmatpush.msra.mxu0 0.0
    %3134 = vmatpush.msra.mxu0 0.0
    %3135 = vmatpush.msra.mxu0 0.0
    %3136 = vmatpush.msra.mxu0 0.0
    %3137 = vmatpush.msra.mxu0 0.0
    %3138 = vmatpush.msra.mxu0 0.0
    %3139 = vmatpush.msra.mxu0 0.0
    %3140 = vmatpush.msra.mxu0 0.0
    %3141 = vmatpush.msra.mxu0 %v2997
    %3142 = vmatpush.msra.mxu0 %v2989
    %3143 = vmatpush.msra.mxu0 %v2981
    %3144 = vmatpush.msra.mxu0 %v2973
    %3145 = vmatmul.f32.gmra.mxu0 %v3002
    %v3146 = vpop.f32.mrf.mxu0
    %v3147 = vadd.f32 0.0, %v3146
    %3148 = vmatmul.f32.gmra.mxu0 %v3005
    %v3149 = vpop.f32.mrf.mxu0
    %v3150 = vadd.f32 0.0, %v3149
    %3151 = vmatmul.f32.gmra.mxu0 %v3008
    %v3152 = vpop.f32.mrf.mxu0
    %v3153 = vadd.f32 0.0, %v3152
    %3154 = vmatmul.f32.gmra.mxu0 %v3011
    %v3155 = vpop.f32.mrf.mxu0
    %v3156 = vadd.f32 0.0, %v3155
    %3157 = vdwg.mxu0
    %3158 = vmatpush.msra.mxu0 0.0
    %3159 = vmatpush.msra.mxu0 0.0
    %3160 = vmatpush.msra.mxu0 0.0
    %3161 = vmatpush.msra.mxu0 0.0
    %3162 = vmatpush.msra.mxu0 0.0
    %3163 = vmatpush.msra.mxu0 0.0
    %3164 = vmatpush.msra.mxu0 0.0
    %3165 = vmatpush.msra.mxu0 0.0
    %3166 = vmatpush.msra.mxu0 0.0
    %3167 = vmatpush.msra.mxu0 0.0
    %3168 = vmatpush.msra.mxu0 0.0
    %3169 = vmatpush.msra.mxu0 0.0
    %3170 = vmatpush.msra.mxu0 %v2998
    %3171 = vmatpush.msra.mxu0 %v2990
    %3172 = vmatpush.msra.mxu0 %v2982
    %3173 = vmatpush.msra.mxu0 %v2974
    %3174 = vmatmul.f32.gmra.mxu0 %v3002
    %v3175 = vpop.f32.mrf.mxu0
    %v3176 = vadd.f32 0.0, %v3175
    %3177 = vmatmul.f32.gmra.mxu0 %v3005
    %v3178 = vpop.f32.mrf.mxu0
    %v3179 = vadd.f32 0.0, %v3178
    %3180 = vmatmul.f32.gmra.mxu0 %v3008
    %v3181 = vpop.f32.mrf.mxu0
    %v3182 = vadd.f32 0.0, %v3181
    %3183 = vmatmul.f32.gmra.mxu0 %v3011
    %v3184 = vpop.f32.mrf.mxu0
    %v3185 = vadd.f32 0.0, %v3184
    %3186 = vdwg.mxu0
    %3187 = vmatpush.msra.mxu0 0.0
    %3188 = vmatpush.msra.mxu0 0.0
    %3189 = vmatpush.msra.mxu0 0.0
    %3190 = vmatpush.msra.mxu0 0.0
    %3191 = vmatpush.msra.mxu0 0.0
    %3192 = vmatpush.msra.mxu0 0.0
    %3193 = vmatpush.msra.mxu0 0.0
    %3194 = vmatpush.msra.mxu0 0.0
    %3195 = vmatpush.msra.mxu0 0.0
    %3196 = vmatpush.msra.mxu0 0.0
    %3197 = vmatpush.msra.mxu0 0.0
    %3198 = vmatpush.msra.mxu0 0.0
    %3199 = vmatpush.msra.mxu0 %v2999
    %3200 = vmatpush.msra.mxu0 %v2991
    %3201 = vmatpush.msra.mxu0 %v2983
    %3202 = vmatpush.msra.mxu0 %v2975
    %3203 = vmatmul.f32.gmra.mxu0 %v3002
    %v3204 = vpop.f32.mrf.mxu0
    %v3205 = vadd.f32 0.0, %v3204
    %3206 = vmatmul.f32.gmra.mxu0 %v3005
    %v3207 = vpop.f32.mrf.mxu0
    %v3208 = vadd.f32 0.0, %v3207
    %3209 = vmatmul.f32.gmra.mxu0 %v3008
    %v3210 = vpop.f32.mrf.mxu0
    %v3211 = vadd.f32 0.0, %v3210
    %3212 = vmatmul.f32.gmra.mxu0 %v3011
    %v3213 = vpop.f32.mrf.mxu0
    %v3214 = vadd.f32 0.0, %v3213
    %3215 = vdwg.mxu0
    %3216 = vmatpush.msra.mxu0 0.0
    %3217 = vmatpush.msra.mxu0 0.0
    %3218 = vmatpush.msra.mxu0 0.0
    %3219 = vmatpush.msra.mxu0 0.0
    %3220 = vmatpush.msra.mxu0 0.0
    %3221 = vmatpush.msra.mxu0 0.0
    %3222 = vmatpush.msra.mxu0 0.0
    %3223 = vmatpush.msra.mxu0 0.0
    %3224 = vmatpush.msra.mxu0 0.0
    %3225 = vmatpush.msra.mxu0 0.0
    %3226 = vmatpush.msra.mxu0 0.0
    %3227 = vmatpush.msra.mxu0 0.0
    %3228 = vmatpush.msra.mxu0 %v3000
    %3229 = vmatpush.msra.mxu0 %v2992
    %3230 = vmatpush.msra.mxu0 %v2984
    %3231 = vmatpush.msra.mxu0 %v2976
    %3232 = vmatmul.f32.gmra.mxu0 %v3002
    %v3233 = vpop.f32.mrf.mxu0
    %v3234 = vadd.f32 0.0, %v3233
    %3235 = vmatmul.f32.gmra.mxu0 %v3005
    %v3236 = vpop.f32.mrf.mxu0
    %v3237 = vadd.f32 0.0, %v3236
    %3238 = vmatmul.f32.gmra.mxu0 %v3008
    %v3239 = vpop.f32.mrf.mxu0
    %v3240 = vadd.f32 0.0, %v3239
    %3241 = vmatmul.f32.gmra.mxu0 %v3011
    %v3242 = vpop.f32.mrf.mxu0
    %v3243 = vadd.f32 0.0, %v3242
    %3244 = vdwg.mxu0
    %v3245 = vadd.f32 %v2936, %v3031
    %v3246 = vadd.f32 %v2937, %v3060
    %v3247 = vadd.f32 %v2938, %v3089
    %v3248 = vadd.f32 %v2939, %v3118
    %v3249 = vadd.f32 %v2940, %v3147
    %v3250 = vadd.f32 %v2941, %v3176
    %v3251 = vadd.f32 %v2942, %v3205
    %v3252 = vadd.f32 %v2943, %v3234
    %v3253 = vadd.f32 %v2944, %v3034
    %v3254 = vadd.f32 %v2945, %v3063
    %v3255 = vadd.f32 %v2946, %v3092
    %v3256 = vadd.f32 %v2947, %v3121
    %v3257 = vadd.f32 %v2948, %v3150
    %v3258 = vadd.f32 %v2949, %v3179
    %v3259 = vadd.f32 %v2950, %v3208
    %v3260 = vadd.f32 %v2951, %v3237
    %v3261 = vadd.f32 %v2952, %v3037
    %v3262 = vadd.f32 %v2953, %v3066
    %v3263 = vadd.f32 %v2954, %v3095
    %v3264 = vadd.f32 %v2955, %v3124
    %v3265 = vadd.f32 %v2956, %v3153
    %v3266 = vadd.f32 %v2957, %v3182
    %v3267 = vadd.f32 %v2958, %v3211
    %v3268 = vadd.f32 %v2959, %v3240
    %v3269 = vadd.f32 %v2960, %v3040
    %v3270 = vadd.f32 %v2961, %v3069
    %v3271 = vadd.f32 %v2962, %v3098
    %v3272 = vadd.f32 %v2963, %v3127
    %v3273 = vadd.f32 %v2964, %v3156
    %v3274 = vadd.f32 %v2965, %v3185
    %v3275 = vadd.f32 %v2966, %v3214
    %v3276 = vadd.f32 %v2967, %v3243
    %s3277 = scalar_lea.vmem [#allocation8], 128
    %v3278 = vld [vmem:[%s3277] sm:$0xff]
    %v3279 = vld [vmem:[%s3277 + $0x8] sm:$0xff]
    %v3280 = vld [vmem:[%s3277 + $0x10] sm:$0xff]
    %v3281 = vld [vmem:[%s3277 + $0x18] sm:$0xff]
    %v3282 = vld [vmem:[%s3277 + $0x20] sm:$0xff]
    %v3283 = vld [vmem:[%s3277 + $0x28] sm:$0xff]
    %v3284 = vld [vmem:[%s3277 + $0x30] sm:$0xff]
    %v3285 = vld [vmem:[%s3277 + $0x38] sm:$0xff]
    %3286 = vmatpush.msra.mxu0 0.0
    %3287 = vmatpush.msra.mxu0 0.0
    %3288 = vmatpush.msra.mxu0 0.0
    %3289 = vmatpush.msra.mxu0 0.0
    %3290 = vmatpush.msra.mxu0 0.0
    %3291 = vmatpush.msra.mxu0 0.0
    %3292 = vmatpush.msra.mxu0 0.0
    %3293 = vmatpush.msra.mxu0 0.0
    %3294 = vmatpush.msra.mxu0 0.0
    %3295 = vmatpush.msra.mxu0 0.0
    %3296 = vmatpush.msra.mxu0 0.0
    %3297 = vmatpush.msra.mxu0 0.0
    %3298 = vmatpush.msra.mxu0 0.0
    %3299 = vmatpush.msra.mxu0 0.0
    %3300 = vmatpush.msra.mxu0 0.0
    %3301 = vmatpush.msra.mxu0 %v3278
    %3302 = vmatmul.f32.gmra.mxu0 %v1406
    %v3303 = vpop.f32.mrf.mxu0
    %v3304 = vadd.f32 0.0, %v3303
    %3305 = vmatmul.f32.gmra.mxu0 %v1409
    %v3306 = vpop.f32.mrf.mxu0
    %v3307 = vadd.f32 0.0, %v3306
    %3308 = vmatmul.f32.gmra.mxu0 %v1412
    %v3309 = vpop.f32.mrf.mxu0
    %v3310 = vadd.f32 0.0, %v3309
    %3311 = vmatmul.f32.gmra.mxu0 %v1415
    %v3312 = vpop.f32.mrf.mxu0
    %v3313 = vadd.f32 0.0, %v3312
    %3314 = vdwg.mxu0
    %3315 = vmatpush.msra.mxu0 0.0
    %3316 = vmatpush.msra.mxu0 0.0
    %3317 = vmatpush.msra.mxu0 0.0
    %3318 = vmatpush.msra.mxu0 0.0
    %3319 = vmatpush.msra.mxu0 0.0
    %3320 = vmatpush.msra.mxu0 0.0
    %3321 = vmatpush.msra.mxu0 0.0
    %3322 = vmatpush.msra.mxu0 0.0
    %3323 = vmatpush.msra.mxu0 0.0
    %3324 = vmatpush.msra.mxu0 0.0
    %3325 = vmatpush.msra.mxu0 0.0
    %3326 = vmatpush.msra.mxu0 0.0
    %3327 = vmatpush.msra.mxu0 0.0
    %3328 = vmatpush.msra.mxu0 0.0
    %3329 = vmatpush.msra.mxu0 0.0
    %3330 = vmatpush.msra.mxu0 %v3279
    %3331 = vmatmul.f32.gmra.mxu0 %v1406
    %v3332 = vpop.f32.mrf.mxu0
    %v3333 = vadd.f32 0.0, %v3332
    %3334 = vmatmul.f32.gmra.mxu0 %v1409
    %v3335 = vpop.f32.mrf.mxu0
    %v3336 = vadd.f32 0.0, %v3335
    %3337 = vmatmul.f32.gmra.mxu0 %v1412
    %v3338 = vpop.f32.mrf.mxu0
    %v3339 = vadd.f32 0.0, %v3338
    %3340 = vmatmul.f32.gmra.mxu0 %v1415
    %v3341 = vpop.f32.mrf.mxu0
    %v3342 = vadd.f32 0.0, %v3341
    %3343 = vdwg.mxu0
    %3344 = vmatpush.msra.mxu0 0.0
    %3345 = vmatpush.msra.mxu0 0.0
    %3346 = vmatpush.msra.mxu0 0.0
    %3347 = vmatpush.msra.mxu0 0.0
    %3348 = vmatpush.msra.mxu0 0.0
    %3349 = vmatpush.msra.mxu0 0.0
    %3350 = vmatpush.msra.mxu0 0.0
    %3351 = vmatpush.msra.mxu0 0.0
    %3352 = vmatpush.msra.mxu0 0.0
    %3353 = vmatpush.msra.mxu0 0.0
    %3354 = vmatpush.msra.mxu0 0.0
    %3355 = vmatpush.msra.mxu0 0.0
    %3356 = vmatpush.msra.mxu0 0.0
    %3357 = vmatpush.msra.mxu0 0.0
    %3358 = vmatpush.msra.mxu0 0.0
    %3359 = vmatpush.msra.mxu0 %v3280
    %3360 = vmatmul.f32.gmra.mxu0 %v1406
    %v3361 = vpop.f32.mrf.mxu0
    %v3362 = vadd.f32 0.0, %v3361
    %3363 = vmatmul.f32.gmra.mxu0 %v1409
    %v3364 = vpop.f32.mrf.mxu0
    %v3365 = vadd.f32 0.0, %v3364
    %3366 = vmatmul.f32.gmra.mxu0 %v1412
    %v3367 = vpop.f32.mrf.mxu0
    %v3368 = vadd.f32 0.0, %v3367
    %3369 = vmatmul.f32.gmra.mxu0 %v1415
    %v3370 = vpop.f32.mrf.mxu0
    %v3371 = vadd.f32 0.0, %v3370
    %3372 = vdwg.mxu0
    %3373 = vmatpush.msra.mxu0 0.0
    %3374 = vmatpush.msra.mxu0 0.0
    %3375 = vmatpush.msra.mxu0 0.0
    %3376 = vmatpush.msra.mxu0 0.0
    %3377 = vmatpush.msra.mxu0 0.0
    %3378 = vmatpush.msra.mxu0 0.0
    %3379 = vmatpush.msra.mxu0 0.0
    %3380 = vmatpush.msra.mxu0 0.0
    %3381 = vmatpush.msra.mxu0 0.0
    %3382 = vmatpush.msra.mxu0 0.0
    %3383 = vmatpush.msra.mxu0 0.0
    %3384 = vmatpush.msra.mxu0 0.0
    %3385 = vmatpush.msra.mxu0 0.0
    %3386 = vmatpush.msra.mxu0 0.0
    %3387 = vmatpush.msra.mxu0 0.0
    %3388 = vmatpush.msra.mxu0 %v3281
    %3389 = vmatmul.f32.gmra.mxu0 %v1406
    %v3390 = vpop.f32.mrf.mxu0
    %v3391 = vadd.f32 0.0, %v3390
    %3392 = vmatmul.f32.gmra.mxu0 %v1409
    %v3393 = vpop.f32.mrf.mxu0
    %v3394 = vadd.f32 0.0, %v3393
    %3395 = vmatmul.f32.gmra.mxu0 %v1412
    %v3396 = vpop.f32.mrf.mxu0
    %v3397 = vadd.f32 0.0, %v3396
    %3398 = vmatmul.f32.gmra.mxu0 %v1415
    %v3399 = vpop.f32.mrf.mxu0
    %v3400 = vadd.f32 0.0, %v3399
    %3401 = vdwg.mxu0
    %3402 = vmatpush.msra.mxu0 0.0
    %3403 = vmatpush.msra.mxu0 0.0
    %3404 = vmatpush.msra.mxu0 0.0
    %3405 = vmatpush.msra.mxu0 0.0
    %3406 = vmatpush.msra.mxu0 0.0
    %3407 = vmatpush.msra.mxu0 0.0
    %3408 = vmatpush.msra.mxu0 0.0
    %3409 = vmatpush.msra.mxu0 0.0
    %3410 = vmatpush.msra.mxu0 0.0
    %3411 = vmatpush.msra.mxu0 0.0
    %3412 = vmatpush.msra.mxu0 0.0
    %3413 = vmatpush.msra.mxu0 0.0
    %3414 = vmatpush.msra.mxu0 0.0
    %3415 = vmatpush.msra.mxu0 0.0
    %3416 = vmatpush.msra.mxu0 0.0
    %3417 = vmatpush.msra.mxu0 %v3282
    %3418 = vmatmul.f32.gmra.mxu0 %v1406
    %v3419 = vpop.f32.mrf.mxu0
    %v3420 = vadd.f32 0.0, %v3419
    %3421 = vmatmul.f32.gmra.mxu0 %v1409
    %v3422 = vpop.f32.mrf.mxu0
    %v3423 = vadd.f32 0.0, %v3422
    %3424 = vmatmul.f32.gmra.mxu0 %v1412
    %v3425 = vpop.f32.mrf.mxu0
    %v3426 = vadd.f32 0.0, %v3425
    %3427 = vmatmul.f32.gmra.mxu0 %v1415
    %v3428 = vpop.f32.mrf.mxu0
    %v3429 = vadd.f32 0.0, %v3428
    %3430 = vdwg.mxu0
    %3431 = vmatpush.msra.mxu0 0.0
    %3432 = vmatpush.msra.mxu0 0.0
    %3433 = vmatpush.msra.mxu0 0.0
    %3434 = vmatpush.msra.mxu0 0.0
    %3435 = vmatpush.msra.mxu0 0.0
    %3436 = vmatpush.msra.mxu0 0.0
    %3437 = vmatpush.msra.mxu0 0.0
    %3438 = vmatpush.msra.mxu0 0.0
    %3439 = vmatpush.msra.mxu0 0.0
    %3440 = vmatpush.msra.mxu0 0.0
    %3441 = vmatpush.msra.mxu0 0.0
    %3442 = vmatpush.msra.mxu0 0.0
    %3443 = vmatpush.msra.mxu0 0.0
    %3444 = vmatpush.msra.mxu0 0.0
    %3445 = vmatpush.msra.mxu0 0.0
    %3446 = vmatpush.msra.mxu0 %v3283
    %3447 = vmatmul.f32.gmra.mxu0 %v1406
    %v3448 = vpop.f32.mrf.mxu0
    %v3449 = vadd.f32 0.0, %v3448
    %3450 = vmatmul.f32.gmra.mxu0 %v1409
    %v3451 = vpop.f32.mrf.mxu0
    %v3452 = vadd.f32 0.0, %v3451
    %3453 = vmatmul.f32.gmra.mxu0 %v1412
    %v3454 = vpop.f32.mrf.mxu0
    %v3455 = vadd.f32 0.0, %v3454
    %3456 = vmatmul.f32.gmra.mxu0 %v1415
    %v3457 = vpop.f32.mrf.mxu0
    %v3458 = vadd.f32 0.0, %v3457
    %3459 = vdwg.mxu0
    %3460 = vmatpush.msra.mxu0 0.0
    %3461 = vmatpush.msra.mxu0 0.0
    %3462 = vmatpush.msra.mxu0 0.0
    %3463 = vmatpush.msra.mxu0 0.0
    %3464 = vmatpush.msra.mxu0 0.0
    %3465 = vmatpush.msra.mxu0 0.0
    %3466 = vmatpush.msra.mxu0 0.0
    %3467 = vmatpush.msra.mxu0 0.0
    %3468 = vmatpush.msra.mxu0 0.0
    %3469 = vmatpush.msra.mxu0 0.0
    %3470 = vmatpush.msra.mxu0 0.0
    %3471 = vmatpush.msra.mxu0 0.0
    %3472 = vmatpush.msra.mxu0 0.0
    %3473 = vmatpush.msra.mxu0 0.0
    %3474 = vmatpush.msra.mxu0 0.0
    %3475 = vmatpush.msra.mxu0 %v3284
    %3476 = vmatmul.f32.gmra.mxu0 %v1406
    %v3477 = vpop.f32.mrf.mxu0
    %v3478 = vadd.f32 0.0, %v3477
    %3479 = vmatmul.f32.gmra.mxu0 %v1409
    %v3480 = vpop.f32.mrf.mxu0
    %v3481 = vadd.f32 0.0, %v3480
    %3482 = vmatmul.f32.gmra.mxu0 %v1412
    %v3483 = vpop.f32.mrf.mxu0
    %v3484 = vadd.f32 0.0, %v3483
    %3485 = vmatmul.f32.gmra.mxu0 %v1415
    %v3486 = vpop.f32.mrf.mxu0
    %v3487 = vadd.f32 0.0, %v3486
    %3488 = vdwg.mxu0
    %3489 = vmatpush.msra.mxu0 0.0
    %3490 = vmatpush.msra.mxu0 0.0
    %3491 = vmatpush.msra.mxu0 0.0
    %3492 = vmatpush.msra.mxu0 0.0
    %3493 = vmatpush.msra.mxu0 0.0
    %3494 = vmatpush.msra.mxu0 0.0
    %3495 = vmatpush.msra.mxu0 0.0
    %3496 = vmatpush.msra.mxu0 0.0
    %3497 = vmatpush.msra.mxu0 0.0
    %3498 = vmatpush.msra.mxu0 0.0
    %3499 = vmatpush.msra.mxu0 0.0
    %3500 = vmatpush.msra.mxu0 0.0
    %3501 = vmatpush.msra.mxu0 0.0
    %3502 = vmatpush.msra.mxu0 0.0
    %3503 = vmatpush.msra.mxu0 0.0
    %3504 = vmatpush.msra.mxu0 %v3285
    %3505 = vmatmul.f32.gmra.mxu0 %v1406
    %v3506 = vpop.f32.mrf.mxu0
    %v3507 = vadd.f32 0.0, %v3506
    %3508 = vmatmul.f32.gmra.mxu0 %v1409
    %v3509 = vpop.f32.mrf.mxu0
    %v3510 = vadd.f32 0.0, %v3509
    %3511 = vmatmul.f32.gmra.mxu0 %v1412
    %v3512 = vpop.f32.mrf.mxu0
    %v3513 = vadd.f32 0.0, %v3512
    %3514 = vmatmul.f32.gmra.mxu0 %v1415
    %v3515 = vpop.f32.mrf.mxu0
    %v3516 = vadd.f32 0.0, %v3515
    %3517 = vdwg.mxu0
    %v3518 = vadd.f32 %v3245, %v3304
    %v3519 = vadd.f32 %v3246, %v3333
    %v3520 = vadd.f32 %v3247, %v3362
    %v3521 = vadd.f32 %v3248, %v3391
    %v3522 = vadd.f32 %v3249, %v3420
    %v3523 = vadd.f32 %v3250, %v3449
    %v3524 = vadd.f32 %v3251, %v3478
    %v3525 = vadd.f32 %v3252, %v3507
    %v3526 = vadd.f32 %v3253, %v3307
    %v3527 = vadd.f32 %v3254, %v3336
    %v3528 = vadd.f32 %v3255, %v3365
    %v3529 = vadd.f32 %v3256, %v3394
    %v3530 = vadd.f32 %v3257, %v3423
    %v3531 = vadd.f32 %v3258, %v3452
    %v3532 = vadd.f32 %v3259, %v3481
    %v3533 = vadd.f32 %v3260, %v3510
    %v3534 = vadd.f32 %v3261, %v3310
    %v3535 = vadd.f32 %v3262, %v3339
    %v3536 = vadd.f32 %v3263, %v3368
    %v3537 = vadd.f32 %v3264, %v3397
    %v3538 = vadd.f32 %v3265, %v3426
    %v3539 = vadd.f32 %v3266, %v3455
    %v3540 = vadd.f32 %v3267, %v3484
    %v3541 = vadd.f32 %v3268, %v3513
    %v3542 = vadd.f32 %v3269, %v3313
    %v3543 = vadd.f32 %v3270, %v3342
    %v3544 = vadd.f32 %v3271, %v3371
    %v3545 = vadd.f32 %v3272, %v3400
    %v3546 = vadd.f32 %v3273, %v3429
    %v3547 = vadd.f32 %v3274, %v3458
    %v3548 = vadd.f32 %v3275, %v3487
    %v3549 = vadd.f32 %v3276, %v3516
    %s3550 = scalar_lea.vmem [#allocation10], 512
    %v3551 = vld [vmem:[%s3550] sm:$0xff]
    %v3552 = vld [vmem:[%s3550 + $0x8] sm:$0xff]
    %v3553 = vld [vmem:[%s3550 + $0x10] sm:$0xff]
    %v3554 = vld [vmem:[%s3550 + $0x18] sm:$0xff]
    %v3555 = vld [vmem:[%s3550 + $0x20] sm:$0xff]
    %v3556 = vld [vmem:[%s3550 + $0x28] sm:$0xff]
    %v3557 = vld [vmem:[%s3550 + $0x30] sm:$0xff]
    %v3558 = vld [vmem:[%s3550 + $0x38] sm:$0xff]
    %v3559 = vld [vmem:[%s3550 + $0x40] sm:$0xff]
    %v3560 = vld [vmem:[%s3550 + $0x48] sm:$0xff]
    %v3561 = vld [vmem:[%s3550 + $0x50] sm:$0xff]
    %v3562 = vld [vmem:[%s3550 + $0x58] sm:$0xff]
    %v3563 = vld [vmem:[%s3550 + $0x60] sm:$0xff]
    %v3564 = vld [vmem:[%s3550 + $0x68] sm:$0xff]
    %v3565 = vld [vmem:[%s3550 + $0x70] sm:$0xff]
    %v3566 = vld [vmem:[%s3550 + $0x78] sm:$0xff]
    %v3567 = vld [vmem:[%s3550 + $0x80] sm:$0xff]
    %v3568 = vld [vmem:[%s3550 + $0x88] sm:$0xff]
    %v3569 = vld [vmem:[%s3550 + $0x90] sm:$0xff]
    %v3570 = vld [vmem:[%s3550 + $0x98] sm:$0xff]
    %v3571 = vld [vmem:[%s3550 + $0xa0] sm:$0xff]
    %v3572 = vld [vmem:[%s3550 + $0xa8] sm:$0xff]
    %v3573 = vld [vmem:[%s3550 + $0xb0] sm:$0xff]
    %v3574 = vld [vmem:[%s3550 + $0xb8] sm:$0xff]
    %v3575 = vld [vmem:[%s3550 + $0xc0] sm:$0xff]
    %v3576 = vld [vmem:[%s3550 + $0xc8] sm:$0xff]
    %v3577 = vld [vmem:[%s3550 + $0xd0] sm:$0xff]
    %v3578 = vld [vmem:[%s3550 + $0xd8] sm:$0xff]
    %v3579 = vld [vmem:[%s3550 + $0xe0] sm:$0xff]
    %v3580 = vld [vmem:[%s3550 + $0xe8] sm:$0xff]
    %v3581 = vld [vmem:[%s3550 + $0xf0] sm:$0xff]
    %v3582 = vld [vmem:[%s3550 + $0xf8] sm:$0xff]
    %v3584 = vsel %vm162, %v2164, 0
    %v3587 = vsel %vm162, %v2167, 0
    %v3590 = vsel %vm162, %v2170, 0
    %v3593 = vsel %vm162, %v2173, 0
    %3595 = vmatpush.msra.mxu0 0.0
    %3596 = vmatpush.msra.mxu0 0.0
    %3597 = vmatpush.msra.mxu0 0.0
    %3598 = vmatpush.msra.mxu0 0.0
    %3599 = vmatpush.msra.mxu0 0.0
    %3600 = vmatpush.msra.mxu0 0.0
    %3601 = vmatpush.msra.mxu0 0.0
    %3602 = vmatpush.msra.mxu0 0.0
    %3603 = vmatpush.msra.mxu0 0.0
    %3604 = vmatpush.msra.mxu0 0.0
    %3605 = vmatpush.msra.mxu0 0.0
    %3606 = vmatpush.msra.mxu0 0.0
    %3607 = vmatpush.msra.mxu0 %v3575
    %3608 = vmatpush.msra.mxu0 %v3567
    %3609 = vmatpush.msra.mxu0 %v3559
    %3610 = vmatpush.msra.mxu0 %v3551
    %3611 = vmatmul.f32.gmra.mxu0 %v3584
    %v3612 = vpop.f32.mrf.mxu0
    %v3613 = vadd.f32 0.0, %v3612
    %3614 = vmatmul.f32.gmra.mxu0 %v3587
    %v3615 = vpop.f32.mrf.mxu0
    %v3616 = vadd.f32 0.0, %v3615
    %3617 = vmatmul.f32.gmra.mxu0 %v3590
    %v3618 = vpop.f32.mrf.mxu0
    %v3619 = vadd.f32 0.0, %v3618
    %3620 = vmatmul.f32.gmra.mxu0 %v3593
    %v3621 = vpop.f32.mrf.mxu0
    %v3622 = vadd.f32 0.0, %v3621
    %3623 = vdwg.mxu0
    %3624 = vmatpush.msra.mxu0 0.0
    %3625 = vmatpush.msra.mxu0 0.0
    %3626 = vmatpush.msra.mxu0 0.0
    %3627 = vmatpush.msra.mxu0 0.0
    %3628 = vmatpush.msra.mxu0 0.0
    %3629 = vmatpush.msra.mxu0 0.0
    %3630 = vmatpush.msra.mxu0 0.0
    %3631 = vmatpush.msra.mxu0 0.0
    %3632 = vmatpush.msra.mxu0 0.0
    %3633 = vmatpush.msra.mxu0 0.0
    %3634 = vmatpush.msra.mxu0 0.0
    %3635 = vmatpush.msra.mxu0 0.0
    %3636 = vmatpush.msra.mxu0 %v3576
    %3637 = vmatpush.msra.mxu0 %v3568
    %3638 = vmatpush.msra.mxu0 %v3560
    %3639 = vmatpush.msra.mxu0 %v3552
    %3640 = vmatmul.f32.gmra.mxu0 %v3584
    %v3641 = vpop.f32.mrf.mxu0
    %v3642 = vadd.f32 0.0, %v3641
    %3643 = vmatmul.f32.gmra.mxu0 %v3587
    %v3644 = vpop.f32.mrf.mxu0
    %v3645 = vadd.f32 0.0, %v3644
    %3646 = vmatmul.f32.gmra.mxu0 %v3590
    %v3647 = vpop.f32.mrf.mxu0
    %v3648 = vadd.f32 0.0, %v3647
    %3649 = vmatmul.f32.gmra.mxu0 %v3593
    %v3650 = vpop.f32.mrf.mxu0
    %v3651 = vadd.f32 0.0, %v3650
    %3652 = vdwg.mxu0
    %3653 = vmatpush.msra.mxu0 0.0
    %3654 = vmatpush.msra.mxu0 0.0
    %3655 = vmatpush.msra.mxu0 0.0
    %3656 = vmatpush.msra.mxu0 0.0
    %3657 = vmatpush.msra.mxu0 0.0
    %3658 = vmatpush.msra.mxu0 0.0
    %3659 = vmatpush.msra.mxu0 0.0
    %3660 = vmatpush.msra.mxu0 0.0
    %3661 = vmatpush.msra.mxu0 0.0
    %3662 = vmatpush.msra.mxu0 0.0
    %3663 = vmatpush.msra.mxu0 0.0
    %3664 = vmatpush.msra.mxu0 0.0
    %3665 = vmatpush.msra.mxu0 %v3577
    %3666 = vmatpush.msra.mxu0 %v3569
    %3667 = vmatpush.msra.mxu0 %v3561
    %3668 = vmatpush.msra.mxu0 %v3553
    %3669 = vmatmul.f32.gmra.mxu0 %v3584
    %v3670 = vpop.f32.mrf.mxu0
    %v3671 = vadd.f32 0.0, %v3670
    %3672 = vmatmul.f32.gmra.mxu0 %v3587
    %v3673 = vpop.f32.mrf.mxu0
    %v3674 = vadd.f32 0.0, %v3673
    %3675 = vmatmul.f32.gmra.mxu0 %v3590
    %v3676 = vpop.f32.mrf.mxu0
    %v3677 = vadd.f32 0.0, %v3676
    %3678 = vmatmul.f32.gmra.mxu0 %v3593
    %v3679 = vpop.f32.mrf.mxu0
    %v3680 = vadd.f32 0.0, %v3679
    %3681 = vdwg.mxu0
    %3682 = vmatpush.msra.mxu0 0.0
    %3683 = vmatpush.msra.mxu0 0.0
    %3684 = vmatpush.msra.mxu0 0.0
    %3685 = vmatpush.msra.mxu0 0.0
    %3686 = vmatpush.msra.mxu0 0.0
    %3687 = vmatpush.msra.mxu0 0.0
    %3688 = vmatpush.msra.mxu0 0.0
    %3689 = vmatpush.msra.mxu0 0.0
    %3690 = vmatpush.msra.mxu0 0.0
    %3691 = vmatpush.msra.mxu0 0.0
    %3692 = vmatpush.msra.mxu0 0.0
    %3693 = vmatpush.msra.mxu0 0.0
    %3694 = vmatpush.msra.mxu0 %v3578
    %3695 = vmatpush.msra.mxu0 %v3570
    %3696 = vmatpush.msra.mxu0 %v3562
    %3697 = vmatpush.msra.mxu0 %v3554
    %3698 = vmatmul.f32.gmra.mxu0 %v3584
    %v3699 = vpop.f32.mrf.mxu0
    %v3700 = vadd.f32 0.0, %v3699
    %3701 = vmatmul.f32.gmra.mxu0 %v3587
    %v3702 = vpop.f32.mrf.mxu0
    %v3703 = vadd.f32 0.0, %v3702
    %3704 = vmatmul.f32.gmra.mxu0 %v3590
    %v3705 = vpop.f32.mrf.mxu0
    %v3706 = vadd.f32 0.0, %v3705
    %3707 = vmatmul.f32.gmra.mxu0 %v3593
    %v3708 = vpop.f32.mrf.mxu0
    %v3709 = vadd.f32 0.0, %v3708
    %3710 = vdwg.mxu0
    %3711 = vmatpush.msra.mxu0 0.0
    %3712 = vmatpush.msra.mxu0 0.0
    %3713 = vmatpush.msra.mxu0 0.0
    %3714 = vmatpush.msra.mxu0 0.0
    %3715 = vmatpush.msra.mxu0 0.0
    %3716 = vmatpush.msra.mxu0 0.0
    %3717 = vmatpush.msra.mxu0 0.0
    %3718 = vmatpush.msra.mxu0 0.0
    %3719 = vmatpush.msra.mxu0 0.0
    %3720 = vmatpush.msra.mxu0 0.0
    %3721 = vmatpush.msra.mxu0 0.0
    %3722 = vmatpush.msra.mxu0 0.0
    %3723 = vmatpush.msra.mxu0 %v3579
    %3724 = vmatpush.msra.mxu0 %v3571
    %3725 = vmatpush.msra.mxu0 %v3563
    %3726 = vmatpush.msra.mxu0 %v3555
    %3727 = vmatmul.f32.gmra.mxu0 %v3584
    %v3728 = vpop.f32.mrf.mxu0
    %v3729 = vadd.f32 0.0, %v3728
    %3730 = vmatmul.f32.gmra.mxu0 %v3587
    %v3731 = vpop.f32.mrf.mxu0
    %v3732 = vadd.f32 0.0, %v3731
    %3733 = vmatmul.f32.gmra.mxu0 %v3590
    %v3734 = vpop.f32.mrf.mxu0
    %v3735 = vadd.f32 0.0, %v3734
    %3736 = vmatmul.f32.gmra.mxu0 %v3593
    %v3737 = vpop.f32.mrf.mxu0
    %v3738 = vadd.f32 0.0, %v3737
    %3739 = vdwg.mxu0
    %3740 = vmatpush.msra.mxu0 0.0
    %3741 = vmatpush.msra.mxu0 0.0
    %3742 = vmatpush.msra.mxu0 0.0
    %3743 = vmatpush.msra.mxu0 0.0
    %3744 = vmatpush.msra.mxu0 0.0
    %3745 = vmatpush.msra.mxu0 0.0
    %3746 = vmatpush.msra.mxu0 0.0
    %3747 = vmatpush.msra.mxu0 0.0
    %3748 = vmatpush.msra.mxu0 0.0
    %3749 = vmatpush.msra.mxu0 0.0
    %3750 = vmatpush.msra.mxu0 0.0
    %3751 = vmatpush.msra.mxu0 0.0
    %3752 = vmatpush.msra.mxu0 %v3580
    %3753 = vmatpush.msra.mxu0 %v3572
    %3754 = vmatpush.msra.mxu0 %v3564
    %3755 = vmatpush.msra.mxu0 %v3556
    %3756 = vmatmul.f32.gmra.mxu0 %v3584
    %v3757 = vpop.f32.mrf.mxu0
    %v3758 = vadd.f32 0.0, %v3757
    %3759 = vmatmul.f32.gmra.mxu0 %v3587
    %v3760 = vpop.f32.mrf.mxu0
    %v3761 = vadd.f32 0.0, %v3760
    %3762 = vmatmul.f32.gmra.mxu0 %v3590
    %v3763 = vpop.f32.mrf.mxu0
    %v3764 = vadd.f32 0.0, %v3763
    %3765 = vmatmul.f32.gmra.mxu0 %v3593
    %v3766 = vpop.f32.mrf.mxu0
    %v3767 = vadd.f32 0.0, %v3766
    %3768 = vdwg.mxu0
    %3769 = vmatpush.msra.mxu0 0.0
    %3770 = vmatpush.msra.mxu0 0.0
    %3771 = vmatpush.msra.mxu0 0.0
    %3772 = vmatpush.msra.mxu0 0.0
    %3773 = vmatpush.msra.mxu0 0.0
    %3774 = vmatpush.msra.mxu0 0.0
    %3775 = vmatpush.msra.mxu0 0.0
    %3776 = vmatpush.msra.mxu0 0.0
    %3777 = vmatpush.msra.mxu0 0.0
    %3778 = vmatpush.msra.mxu0 0.0
    %3779 = vmatpush.msra.mxu0 0.0
    %3780 = vmatpush.msra.mxu0 0.0
    %3781 = vmatpush.msra.mxu0 %v3581
    %3782 = vmatpush.msra.mxu0 %v3573
    %3783 = vmatpush.msra.mxu0 %v3565
    %3784 = vmatpush.msra.mxu0 %v3557
    %3785 = vmatmul.f32.gmra.mxu0 %v3584
    %v3786 = vpop.f32.mrf.mxu0
    %v3787 = vadd.f32 0.0, %v3786
    %3788 = vmatmul.f32.gmra.mxu0 %v3587
    %v3789 = vpop.f32.mrf.mxu0
    %v3790 = vadd.f32 0.0, %v3789
    %3791 = vmatmul.f32.gmra.mxu0 %v3590
    %v3792 = vpop.f32.mrf.mxu0
    %v3793 = vadd.f32 0.0, %v3792
    %3794 = vmatmul.f32.gmra.mxu0 %v3593
    %v3795 = vpop.f32.mrf.mxu0
    %v3796 = vadd.f32 0.0, %v3795
    %3797 = vdwg.mxu0
    %3798 = vmatpush.msra.mxu0 0.0
    %3799 = vmatpush.msra.mxu0 0.0
    %3800 = vmatpush.msra.mxu0 0.0
    %3801 = vmatpush.msra.mxu0 0.0
    %3802 = vmatpush.msra.mxu0 0.0
    %3803 = vmatpush.msra.mxu0 0.0
    %3804 = vmatpush.msra.mxu0 0.0
    %3805 = vmatpush.msra.mxu0 0.0
    %3806 = vmatpush.msra.mxu0 0.0
    %3807 = vmatpush.msra.mxu0 0.0
    %3808 = vmatpush.msra.mxu0 0.0
    %3809 = vmatpush.msra.mxu0 0.0
    %3810 = vmatpush.msra.mxu0 %v3582
    %3811 = vmatpush.msra.mxu0 %v3574
    %3812 = vmatpush.msra.mxu0 %v3566
    %3813 = vmatpush.msra.mxu0 %v3558
    %3814 = vmatmul.f32.gmra.mxu0 %v3584
    %v3815 = vpop.f32.mrf.mxu0
    %v3816 = vadd.f32 0.0, %v3815
    %3817 = vmatmul.f32.gmra.mxu0 %v3587
    %v3818 = vpop.f32.mrf.mxu0
    %v3819 = vadd.f32 0.0, %v3818
    %3820 = vmatmul.f32.gmra.mxu0 %v3590
    %v3821 = vpop.f32.mrf.mxu0
    %v3822 = vadd.f32 0.0, %v3821
    %3823 = vmatmul.f32.gmra.mxu0 %v3593
    %v3824 = vpop.f32.mrf.mxu0
    %v3825 = vadd.f32 0.0, %v3824
    %3826 = vdwg.mxu0
    %v3827 = vadd.f32 %v3518, %v3613
    %v3828 = vadd.f32 %v3519, %v3642
    %v3829 = vadd.f32 %v3520, %v3671
    %v3830 = vadd.f32 %v3521, %v3700
    %v3831 = vadd.f32 %v3522, %v3729
    %v3832 = vadd.f32 %v3523, %v3758
    %v3833 = vadd.f32 %v3524, %v3787
    %v3834 = vadd.f32 %v3525, %v3816
    %v3835 = vadd.f32 %v3526, %v3616
    %v3836 = vadd.f32 %v3527, %v3645
    %v3837 = vadd.f32 %v3528, %v3674
    %v3838 = vadd.f32 %v3529, %v3703
    %v3839 = vadd.f32 %v3530, %v3732
    %v3840 = vadd.f32 %v3531, %v3761
    %v3841 = vadd.f32 %v3532, %v3790
    %v3842 = vadd.f32 %v3533, %v3819
    %v3843 = vadd.f32 %v3534, %v3619
    %v3844 = vadd.f32 %v3535, %v3648
    %v3845 = vadd.f32 %v3536, %v3677
    %v3846 = vadd.f32 %v3537, %v3706
    %v3847 = vadd.f32 %v3538, %v3735
    %v3848 = vadd.f32 %v3539, %v3764
    %v3849 = vadd.f32 %v3540, %v3793
    %v3850 = vadd.f32 %v3541, %v3822
    %v3851 = vadd.f32 %v3542, %v3622
    %v3852 = vadd.f32 %v3543, %v3651
    %v3853 = vadd.f32 %v3544, %v3680
    %v3854 = vadd.f32 %v3545, %v3709
    %v3855 = vadd.f32 %v3546, %v3738
    %v3856 = vadd.f32 %v3547, %v3767
    %v3857 = vadd.f32 %v3548, %v3796
    %v3858 = vadd.f32 %v3549, %v3825
    %v3859 = vmul.f32 %v130, %v3827
    %v3860 = vmul.f32 %v131, %v3828
    %v3861 = vmul.f32 %v132, %v3829
    %v3862 = vmul.f32 %v133, %v3830
    %v3863 = vmul.f32 %v134, %v3831
    %v3864 = vmul.f32 %v135, %v3832
    %v3865 = vmul.f32 %v136, %v3833
    %v3866 = vmul.f32 %v137, %v3834
    %v3867 = vmul.f32 %v138, %v3835
    %v3868 = vmul.f32 %v139, %v3836
    %v3869 = vmul.f32 %v140, %v3837
    %v3870 = vmul.f32 %v141, %v3838
    %v3871 = vmul.f32 %v142, %v3839
    %v3872 = vmul.f32 %v143, %v3840
    %v3873 = vmul.f32 %v144, %v3841
    %v3874 = vmul.f32 %v145, %v3842
    %v3875 = vmul.f32 %v146, %v3843
    %v3876 = vmul.f32 %v147, %v3844
    %v3877 = vmul.f32 %v148, %v3845
    %v3878 = vmul.f32 %v149, %v3846
    %v3879 = vmul.f32 %v150, %v3847
    %v3880 = vmul.f32 %v151, %v3848
    %v3881 = vmul.f32 %v152, %v3849
    %v3882 = vmul.f32 %v153, %v3850
    %v3883 = vmul.f32 %v154, %v3851
    %v3884 = vmul.f32 %v155, %v3852
    %v3885 = vmul.f32 %v156, %v3853
    %v3886 = vmul.f32 %v157, %v3854
    %v3887 = vmul.f32 %v158, %v3855
    %v3888 = vmul.f32 %v159, %v3856
    %v3889 = vmul.f32 %v160, %v3857
    %v3890 = vmul.f32 %v161, %v3858
    %v3891 = vadd.f32 %v2175, %v3859
    %v3892 = vadd.f32 %v2176, %v3867
    %v3893 = vadd.f32 %v2177, %v3875
    %v3894 = vadd.f32 %v2178, %v3883
    %v3895 = vadd.f32 %v3891, %v3860
    %v3896 = vadd.f32 %v3892, %v3868
    %v3897 = vadd.f32 %v3893, %v3876
    %v3898 = vadd.f32 %v3894, %v3884
    %v3899 = vadd.f32 %v3895, %v3861
    %v3900 = vadd.f32 %v3896, %v3869
    %v3901 = vadd.f32 %v3897, %v3877
    %v3902 = vadd.f32 %v3898, %v3885
    %v3903 = vadd.f32 %v3899, %v3862
    %v3904 = vadd.f32 %v3900, %v3870
    %v3905 = vadd.f32 %v3901, %v3878
    %v3906 = vadd.f32 %v3902, %v3886
    %v3907 = vadd.f32 %v3903, %v3863
    %v3908 = vadd.f32 %v3904, %v3871
    %v3909 = vadd.f32 %v3905, %v3879
    %v3910 = vadd.f32 %v3906, %v3887
    %v3911 = vadd.f32 %v3907, %v3864
    %v3912 = vadd.f32 %v3908, %v3872
    %v3913 = vadd.f32 %v3909, %v3880
    %v3914 = vadd.f32 %v3910, %v3888
    %v3915 = vadd.f32 %v3911, %v3865
    %v3916 = vadd.f32 %v3912, %v3873
    %v3917 = vadd.f32 %v3913, %v3881
    %v3918 = vadd.f32 %v3914, %v3889
    %v3919 = vadd.f32 %v3915, %v3866
    %v3920 = vadd.f32 %v3916, %v3874
    %v3921 = vadd.f32 %v3917, %v3882
    %v3922 = vadd.f32 %v3918, %v3890
    %v3923 = vtanh.pop %v3919
    %v3924 = vtanh.pop %v3920
    %v3925 = vtanh.pop %v3921
    %v3926 = vtanh.pop %v3922
    %3927 = vrot.lane.b32.xlu0 %v118, 32
    %v3928 = vpop.permute.xlu0 %3927
    %3929 = vrot.lane.b32.xlu0 %v119, 32
    %v3930 = vpop.permute.xlu0 %3929
    %3931 = vrot.lane.b32.xlu0 %v120, 32
    %v3932 = vpop.permute.xlu0 %3931
    %3933 = vrot.lane.b32.xlu0 %v121, 32
    %v3934 = vpop.permute.xlu0 %3933
    %v3939 = vmul.f32 %v2084, %v3928
    %v3940 = vmul.f32 %v2099, %v3930
    %v3941 = vmul.f32 %v2114, %v3932
    %v3942 = vmul.f32 %v2129, %v3934
    %v3943 = vsub.f32 1.0, %v2084
    %v3944 = vsub.f32 1.0, %v2099
    %v3945 = vsub.f32 1.0, %v2114
    %v3946 = vsub.f32 1.0, %v2129
    %3951 = vrot.lane.b32.xlu0 %v3923, 32
    %v3952 = vpop.permute.xlu0 %3951
    %3953 = vrot.lane.b32.xlu0 %v3924, 32
    %v3954 = vpop.permute.xlu0 %3953
    %3955 = vrot.lane.b32.xlu0 %v3925, 32
    %v3956 = vpop.permute.xlu0 %3955
    %3957 = vrot.lane.b32.xlu0 %v3926, 32
    %v3958 = vpop.permute.xlu0 %3957
    %v3963 = vmul.f32 %v3943, %v3952
    %v3964 = vmul.f32 %v3944, %v3954
    %v3965 = vmul.f32 %v3945, %v3956
    %v3966 = vmul.f32 %v3946, %v3958
    %v3967 = vadd.f32 %v3939, %v3963
    %v3968 = vadd.f32 %v3940, %v3964
    %v3969 = vadd.f32 %v3941, %v3965
    %v3970 = vadd.f32 %v3942, %v3966
    %3975 = vrot.lane.b32.xlu0 %v3967, 96
    %v3976 = vpop.permute.xlu0 %3975
    %3977 = vrot.lane.b32.xlu0 %v3968, 96
    %v3978 = vpop.permute.xlu0 %3977
    %3979 = vrot.lane.b32.xlu0 %v3969, 96
    %v3980 = vpop.permute.xlu0 %3979
    %3981 = vrot.lane.b32.xlu0 %v3970, 96
    %v3982 = vpop.permute.xlu0 %3981
    %3987 = vst.msk [vmem:[#allocation11] sm:$0xff] %vm162, %v3976
    %3988 = vst.msk [vmem:[#allocation11 + $0x8] sm:$0xff] %vm162, %v3978
    %3989 = vst.msk [vmem:[#allocation11 + $0x10] sm:$0xff] %vm162, %v3980
    %3990 = vst.msk [vmem:[#allocation11 + $0x18] sm:$0xff] %vm162, %v3982
    // Predicated region
    $region62: #{tpu_custom_call.1} parent=1 // pred_check
      _
    $region63: #{tpu_custom_call.1} parent=1 // pred_check_branch
      %3992 = sbr.rel (0) target = $region65
    $region64: #{tpu_custom_call.1} parent=1 // pred_region
      %3994 = vsyncadd [#allocation4], 0
      %s3995 = sshll.u32 [#allocation11], 4
      %s3996 = int_to_ptr.vmem [resolvable:$true] %s3995
      %s3997 = sshll.u32 %s10, 4
      %s3998 = int_to_ptr.hbm [resolvable:$true] %s3997
      %4003 = dma.vmem_to_hbm [thread:$0]  %s3996, 512, %s3998, [#allocation4], 128, 128, 8
    $region65: #{tpu_custom_call.1} parent=1 // pred_fallthru
      _
    // Predicated region
    $region66: #{tpu_custom_call.1} parent=1 // pred_check
      _
    $region67: #{tpu_custom_call.1} parent=1 // pred_check_branch
      %4005 = sbr.rel (0) target = $region69
    $region68: #{tpu_custom_call.1} parent=1 // pred_region
      %4007 = dma.done [#allocation4], 512
    $region69: #{tpu_custom_call.1} parent=1 // pred_fallthru
      _
    %4008 = vsyncpa [#allocation3], 1
    %4009 = vsyncpa [#allocation6], 1
    %4010 = vsyncpa [#allocation9], 1
    %4011 = vsyncpa [#allocation4], 1

</llo_original>
